<compile_context>
chip_gen: v7x
topology: tpu7x:2x2x1
jax: 0.10.0
libtpu: 0.0.40
codegen_flags: <defaults>
</compile_context>

<pallas_src>
import functools

import jax
import jax.numpy as jnp
import numpy as np
from jax import lax
from jax.experimental import pallas as pl
from jax.experimental.pallas import tpu as pltpu

BN_EPS = 1e-5
B_TILE = 32  # default samples per grid step (tunable, multiple of 16)


def _round_up(x, m):
    return ((x + m - 1) // m) * m


def _conv_bot_multi_kernel(
    bt, L,
    x1_ref,                # (L, bt, K1p)  bf16   host-built im2col for conv1
    w1_ref, sh1_ref,       # (K1p, 128)   bf16 , (1, 128) f32
    w2_ref, sh2_ref,       # (640, 256)   bf16 , (1, 256) f32
    w3_ref, sh3_ref,       # (2048, 128)  bf16 , (1, 128) f32
    wf1_ref, bf1_ref,      # (128, 64)    bf16 (1/L folded), (1, 64) f32
    wf2_ref, bf2_ref,      # (64, 128)    bf16 zero-padded,  (1, 128) f32
    out_ref,               # (bt, 128)    f32   (only first 4 columns are real)
    pad2_ref, pad3_ref,    # bf16 scratch: (L+4, bt, 128), (L+7, bt, 256)
):
    f32 = jnp.float32
    bf16 = jnp.bfloat16
    LBT = L * bt
    C1, C2, C3 = 128, 256, 128
    K1p = x1_ref.shape[-1]

    # ---- conv1 (k=3, 'same', pad 1/1): single im2col matmul, BN scale folded ----
    h1 = jnp.dot(x1_ref[...].reshape(LBT, K1p), w1_ref[...],
                 preferred_element_type=f32)
    h1 = jnp.maximum(h1 + sh1_ref[...], 0.0)                       # (LBT, 128)

    # ---- conv2 (k=5, pad 2/2): bf16 pad scratch + per-tap accumulating matmuls ----
    pad2_ref[0:2, :, :] = jnp.zeros((2, bt, C1), bf16)             # left halo
    pad2_ref[2 + L:4 + L, :, :] = jnp.zeros((2, bt, C1), bf16)     # right halo
    pad2_ref[2:2 + L, :, :] = h1.astype(bf16).reshape(L, bt, C1)   # cast once
    h2 = jnp.dot(pad2_ref[0:L, :, :].reshape(LBT, C1), w2_ref[0:C1, :],
                 preferred_element_type=f32)
    for k in range(1, 5):
        h2 = h2 + jnp.dot(pad2_ref[k:k + L, :, :].reshape(LBT, C1),
                          w2_ref[k * C1:(k + 1) * C1, :],
                          preferred_element_type=f32)
    h2 = jnp.maximum(h2 + sh2_ref[...], 0.0)                       # (LBT, 256)

    # ---- conv3 (k=8, PyTorch 'same' => asymmetric pad 3/4): per-tap matmuls ----
    pad3_ref[0:3, :, :] = jnp.zeros((3, bt, C2), bf16)             # left halo
    pad3_ref[3 + L:7 + L, :, :] = jnp.zeros((4, bt, C2), bf16)     # right halo
    pad3_ref[3:3 + L, :, :] = h2.astype(bf16).reshape(L, bt, C2)   # cast once
    h3 = jnp.dot(pad3_ref[0:L, :, :].reshape(LBT, C2), w3_ref[0:C2, :],
                 preferred_element_type=f32)
    for k in range(1, 8):
        h3 = h3 + jnp.dot(pad3_ref[k:k + L, :, :].reshape(LBT, C2),
                          w3_ref[k * C2:(k + 1) * C2, :],
                          preferred_element_type=f32)
    h3 = jnp.maximum(h3 + sh3_ref[...], 0.0)                       # (LBT, 128)

    # ---- adaptive_avg_pool1d(1) + flatten: sum over L (1/L folded into wf1) ----
    pooled = jnp.sum(h3.reshape(L, bt, C3), axis=0)                # (bt, 128)

    # ---- fc1 + ReLU, fc2 (output padded to 128 lanes) ----
    z = jnp.maximum(
        jnp.dot(pooled.astype(bf16), wf1_ref[...], preferred_element_type=f32)
        + bf1_ref[...], 0.0)
    out = jnp.dot(z.astype(bf16), wf2_ref[...], preferred_element_type=f32) \
        + bf2_ref[...]
    out_ref[...] = out.astype(out_ref.dtype)


def conv_bot_multi_forward(x_ncw, p, *, b_tile=B_TILE):
    """x_ncw: (B, n_features, L) float32, PyTorch layout. Returns (B, 4) f32."""
    B, F, L = x_ncw.shape
    assert b_tile % 16 == 0, "b_tile must be a multiple of 16"
    # Batch-tile choice: as large as requested, but keep >= 2 grid steps when
    # possible so the 'parallel' axis can split across v7x's two TensorCores.
    bt = min(b_tile, _round_up(B, 16))
    if B > 16:
        bt = min(bt, _round_up((B + 1) // 2, 16))
    bt = max(bt, 16)
    Bp = _round_up(B, bt)

    # ---- host-side input packing: channels-last + im2col for conv1 ----
    x_blc = jnp.transpose(x_ncw, (0, 2, 1)).astype(jnp.float32)    # (B, L, F)
    if Bp != B:
        x_blc = jnp.pad(x_blc, ((0, Bp - B), (0, 0), (0, 0)))
    x_padded = jnp.pad(x_blc, ((0, 0), (1, 1), (0, 0)))            # pad 1/1
    x1 = jnp.concatenate([x_padded[:, k:k + L, :] for k in range(3)],
                         axis=-1)                                  # (Bp, L, 3F)
    x1 = jnp.transpose(x1, (1, 0, 2))                              # (L, Bp, 3F)
    K1 = 3 * F
    K1p = _round_up(K1, 16)                    # bf16 sublane-pack friendly depth
    if K1p != K1:
        x1 = jnp.pad(x1, ((0, 0), (0, 0), (0, K1p - K1)))
    x1 = x1.astype(jnp.bfloat16)

    # ---- host-side weight packing: fold BN scale into weights (tap-major rows) ----
    def fold(w, b, g, be, m, v, rows_pad=None):
        # w: (Cout, Cin, K) torch layout -> (K*Cin, Cout) bf16 with BN scale
        # folded; returns a (1, Cout) f32 shift for the kernel.
        s = g / jnp.sqrt(v + BN_EPS)
        K = w.shape[2]
        wk = jnp.concatenate([w[:, :, k].T for k in range(K)], axis=0)
        wk = wk * s[None, :]
        if rows_pad is not None and rows_pad != wk.shape[0]:
            wk = jnp.pad(wk, ((0, rows_pad - wk.shape[0]), (0, 0)))
        shift = ((b - m) * s + be).reshape(1, -1).astype(jnp.float32)
        return wk.astype(jnp.bfloat16), shift

    w1, sh1 = fold(p["w1"], p["b1"], p["g1"], p["be1"], p["m1"], p["v1"], K1p)
    w2, sh2 = fold(p["w2"], p["b2"], p["g2"], p["be2"], p["m2"], p["v2"])
    w3, sh3 = fold(p["w3"], p["b3"], p["g3"], p["be3"], p["m3"], p["v3"])
    wf1 = (p["wfc1"].T / float(L)).astype(jnp.bfloat16)   # (128, 64), 1/L folded
    bf1 = p["bfc1"].reshape(1, -1).astype(jnp.float32)    # (1, 64)
    # fc2 padded to a lane-dense 128-wide output; real logits are columns 0..3.
    NOUT = p["wfc2"].shape[0]                             # 4
    NOUTP = 128
    wf2 = jnp.zeros((p["wfc2"].shape[1], NOUTP), jnp.float32)
    wf2 = wf2.at[:, :NOUT].set(p["wfc2"].T).astype(jnp.bfloat16)   # (64, 128)
    bf2 = jnp.zeros((1, NOUTP), jnp.float32).at[0, :NOUT].set(p["bfc2"])

    kernel = functools.partial(_conv_bot_multi_kernel, bt, L)

    def resident(a):
        # Weights/shifts: full-array block, constant index_map -> fetched once,
        # stays VMEM-resident across the batch grid.
        return pl.BlockSpec(a.shape, lambda b, _nd=a.ndim: (0,) * _nd)

    out = pl.pallas_call(
        kernel,
        out_shape=jax.ShapeDtypeStruct((Bp, NOUTP), jnp.float32),
        grid=(Bp // bt,),
        in_specs=[
            pl.BlockSpec((L, bt, K1p), lambda b: (0, b, 0)),
            resident(w1), resident(sh1),
            resident(w2), resident(sh2),
            resident(w3), resident(sh3),
            resident(wf1), resident(bf1),
            resident(wf2), resident(bf2),
        ],
        out_specs=pl.BlockSpec((bt, NOUTP), lambda b: (b, 0)),
        scratch_shapes=[
            pltpu.VMEM((L + 4, bt, 128), jnp.bfloat16),   # conv2 padded acts (bf16)
            pltpu.VMEM((L + 7, bt, 256), jnp.bfloat16),   # conv3 padded acts (bf16)
        ],
        compiler_params=pltpu.CompilerParams(
            dimension_semantics=("parallel",),
        ),
    )(x1, w1, sh1, w2, sh2, w3, sh3, wf1, bf1, wf2, bf2)
    return out[:B, :NOUT]


# ------------------------- pure-JAX reference (for checking) -------------------------
def reference_forward(x, p):
    dn = ("NCH", "OIH", "NCH")

    def block(x, w, b, g, be, m, v, pad):
        y = lax.conv_general_dilated(x, w, (1,), [pad], dimension_numbers=dn)
        y = y + b[None, :, None]
        y = (y - m[None, :, None]) / jnp.sqrt(v + BN_EPS)[None, :, None]
        y = y * g[None, :, None] + be[None, :, None]
        return jnp.maximum(y, 0.0)

    y = block(x, p["w1"], p["b1"], p["g1"], p["be1"], p["m1"], p["v1"], (1, 1))
    y = block(y, p["w2"], p["b2"], p["g2"], p["be2"], p["m2"], p["v2"], (2, 2))
    y = block(y, p["w3"], p["b3"], p["g3"], p["be3"], p["m3"], p["v3"], (3, 4))
    pooled = jnp.mean(y, axis=2)                                   # (B, 128)
    z = jnp.maximum(pooled @ p["wfc1"].T + p["bfc1"], 0.0)
    return z @ p["wfc2"].T + p["bfc2"]


def init_params(key, n_features):
    ks = jax.random.split(key, 24)
    i = iter(range(24))

    def u(k, shape, fan_in):
        bound = 1.0 / np.sqrt(fan_in)
        return jax.random.uniform(k, shape, jnp.float32, -bound, bound)

    p = {}
    # conv1: (128, F, 3)
    p["w1"] = u(ks[next(i)], (128, n_features, 3), n_features * 3)
    p["b1"] = u(ks[next(i)], (128,), n_features * 3)
    # conv2: (256, 128, 5)
    p["w2"] = u(ks[next(i)], (256, 128, 5), 128 * 5)
    p["b2"] = u(ks[next(i)], (256,), 128 * 5)
    # conv3: (128, 256, 8)
    p["w3"] = u(ks[next(i)], (128, 256, 8), 256 * 8)
    p["b3"] = u(ks[next(i)], (128,), 256 * 8)
    # batchnorm (eval-mode running stats)
    for name, c in (("1", 128), ("2", 256), ("3", 128)):
        p["g" + name] = jax.random.uniform(ks[next(i)], (c,), jnp.float32, 0.5, 1.5)
        p["be" + name] = jax.random.uniform(ks[next(i)], (c,), jnp.float32, -0.1, 0.1)
        p["m" + name] = jax.random.uniform(ks[next(i)], (c,), jnp.float32, -0.1, 0.1)
        p["v" + name] = jax.random.uniform(ks[next(i)], (c,), jnp.float32, 0.5, 1.5)
    # fc1: (64, 128), fc2: (4, 64)
    p["wfc1"] = u(ks[next(i)], (64, 128), 128)
    p["bfc1"] = u(ks[next(i)], (64,), 128)
    p["wfc2"] = u(ks[next(i)], (4, 64), 64)
    p["bfc2"] = u(ks[next(i)], (4,), 64)
    return p


if __name__ == "__main__":
    key = jax.random.PRNGKey(0)
    k_x, k_p = jax.random.split(key)

    B, n_features, L = 2, 8, 16
    x = jax.random.normal(k_x, (B, n_features, L), jnp.float32)  # PyTorch NCW layout
    params = init_params(k_p, n_features)

    out = conv_bot_multi_forward(x, params)
    out = jax.block_until_ready(out)

    ref = jax.block_until_ready(reference_forward(x, params))
    assert out.shape == (B, 4), out.shape
    # bf16 weights/activations with f32 accumulation stay well inside 2e-2.
    np.testing.assert_allclose(np.asarray(out), np.asarray(ref), rtol=2e-2, atol=2e-2)

    print("KERNEL_OK")
</pallas_src>

<mosaic_0001>
module attributes {stable_mosaic.version = 11 : i64} {
  func.func @_conv_bot_multi_kernel(%arg0: i32, %arg1: memref<16x16x32xbf16, #tpu.memory_space<vmem>>, %arg2: memref<32x128xbf16, #tpu.memory_space<vmem>>, %arg3: memref<1x128xf32, #tpu.memory_space<vmem>>, %arg4: memref<640x256xbf16, #tpu.memory_space<vmem>>, %arg5: memref<1x256xf32, #tpu.memory_space<vmem>>, %arg6: memref<2048x128xbf16, #tpu.memory_space<vmem>>, %arg7: memref<1x128xf32, #tpu.memory_space<vmem>>, %arg8: memref<128x64xbf16, #tpu.memory_space<vmem>>, %arg9: memref<1x64xf32, #tpu.memory_space<vmem>>, %arg10: memref<64x128xbf16, #tpu.memory_space<vmem>>, %arg11: memref<1x128xf32, #tpu.memory_space<vmem>>, %arg12: memref<16x128xf32, #tpu.memory_space<vmem>>, %arg13: memref<20x16x128xbf16, #tpu.memory_space<vmem>>, %arg14: memref<23x16x256xbf16, #tpu.memory_space<vmem>>) attributes {dimension_semantics = [#tpu.dimension_semantics<parallel>], iteration_bounds = array<i64: 1>, scalar_prefetch = 0 : i64, scratch_operands = 2 : i64, tpu.core_type = #tpu.core_type<tc>, window_params = [{transform_indices = @transform_0, window_bounds = array<i64: 16, 16, 32>}, {pipeline_mode = #tpu.pipeline_mode<synchronous>, transform_indices = @transform_1, window_bounds = array<i64: 32, 128>}, {pipeline_mode = #tpu.pipeline_mode<synchronous>, transform_indices = @transform_2, window_bounds = array<i64: 1, 128>}, {pipeline_mode = #tpu.pipeline_mode<synchronous>, transform_indices = @transform_3, window_bounds = array<i64: 640, 256>}, {pipeline_mode = #tpu.pipeline_mode<synchronous>, transform_indices = @transform_4, window_bounds = array<i64: 1, 256>}, {pipeline_mode = #tpu.pipeline_mode<synchronous>, transform_indices = @transform_5, window_bounds = array<i64: 2048, 128>}, {pipeline_mode = #tpu.pipeline_mode<synchronous>, transform_indices = @transform_6, window_bounds = array<i64: 1, 128>}, {pipeline_mode = #tpu.pipeline_mode<synchronous>, transform_indices = @transform_7, window_bounds = array<i64: 128, 64>}, {pipeline_mode = #tpu.pipeline_mode<synchronous>, transform_indices = @transform_8, window_bounds = array<i64: 1, 64>}, {pipeline_mode = #tpu.pipeline_mode<synchronous>, transform_indices = @transform_9, window_bounds = array<i64: 64, 128>}, {pipeline_mode = #tpu.pipeline_mode<synchronous>, transform_indices = @transform_10, window_bounds = array<i64: 1, 128>}, {transform_indices = @transform_11, window_bounds = array<i64: 16, 128>}]} {
    %c0 = arith.constant 0 : index
    %c0_0 = arith.constant 0 : index
    %c0_1 = arith.constant 0 : index
    %0 = vector.load %arg1[%c0, %c0_0, %c0_1] : memref<16x16x32xbf16, #tpu.memory_space<vmem>>, vector<16x16x32xbf16>
    %1 = vector.shape_cast %0 : vector<16x16x32xbf16> to vector<256x32xbf16>
    %c0_2 = arith.constant 0 : index
    %c0_3 = arith.constant 0 : index
    %2 = vector.load %arg2[%c0_2, %c0_3] : memref<32x128xbf16, #tpu.memory_space<vmem>>, vector<32x128xbf16>
    %cst = arith.constant dense<0.000000e+00> : vector<256x128xf32>
    %3 = tpu.matmul %1, %2, %cst {dimension_numbers = #tpu.dot_dimension_numbers<[1], [0], [0], [1], [0, 0, 1, 1], [], []>} : vector<256x32xbf16>, vector<32x128xbf16>, vector<256x128xf32> -> vector<256x128xf32>
    %c0_4 = arith.constant 0 : index
    %c0_5 = arith.constant 0 : index
    %4 = vector.load %arg3[%c0_4, %c0_5] : memref<1x128xf32, #tpu.memory_space<vmem>>, vector<1x128xf32>
    %5 = vector.broadcast %4 : vector<1x128xf32> to vector<256x128xf32>
    %6 = arith.addf %3, %5 : vector<256x128xf32>
    %cst_6 = arith.constant 0.000000e+00 : f32
    %7 = vector.broadcast %cst_6 : f32 to vector<256x128xf32>
    %8 = arith.maximumf %6, %7 : vector<256x128xf32>
    %cst_7 = arith.constant 0.000000e+00 : bf16
    %9 = vector.broadcast %cst_7 : bf16 to vector<2x16x128xbf16>
    %c0_8 = arith.constant 0 : index
    %c0_9 = arith.constant 0 : index
    %c0_10 = arith.constant 0 : index
    %10 = vector.load %arg13[%c0_8, %c0_9, %c0_10] : memref<20x16x128xbf16, #tpu.memory_space<vmem>>, vector<2x16x128xbf16>
    tpu.vector_store %arg13[%c0_8, %c0_9, %c0_10], %9 {strides = array<i32>} : memref<20x16x128xbf16, #tpu.memory_space<vmem>>, vector<2x16x128xbf16>,
    %cst_11 = arith.constant 0.000000e+00 : bf16
    %11 = vector.broadcast %cst_11 : bf16 to vector<2x16x128xbf16>
    %c18 = arith.constant 18 : index
    %c0_12 = arith.constant 0 : index
    %c0_13 = arith.constant 0 : index
    %12 = vector.load %arg13[%c18, %c0_12, %c0_13] : memref<20x16x128xbf16, #tpu.memory_space<vmem>>, vector<2x16x128xbf16>
    tpu.vector_store %arg13[%c18, %c0_12, %c0_13], %11 {strides = array<i32>} : memref<20x16x128xbf16, #tpu.memory_space<vmem>>, vector<2x16x128xbf16>,
    %13 = arith.truncf %8 : vector<256x128xf32> to vector<256x128xbf16>
    %14 = vector.shape_cast %13 : vector<256x128xbf16> to vector<16x16x128xbf16>
    %c2 = arith.constant 2 : index
    %c0_14 = arith.constant 0 : index
    %c0_15 = arith.constant 0 : index
    %15 = vector.load %arg13[%c2, %c0_14, %c0_15] : memref<20x16x128xbf16, #tpu.memory_space<vmem>>, vector<16x16x128xbf16>
    tpu.vector_store %arg13[%c2, %c0_14, %c0_15], %14 {strides = array<i32>} : memref<20x16x128xbf16, #tpu.memory_space<vmem>>, vector<16x16x128xbf16>,
    %c0_16 = arith.constant 0 : index
    %c0_17 = arith.constant 0 : index
    %c0_18 = arith.constant 0 : index
    %16 = vector.load %arg13[%c0_16, %c0_17, %c0_18] : memref<20x16x128xbf16, #tpu.memory_space<vmem>>, vector<16x16x128xbf16>
    %17 = vector.shape_cast %16 : vector<16x16x128xbf16> to vector<256x128xbf16>
    %c0_19 = arith.constant 0 : index
    %c0_20 = arith.constant 0 : index
    %18 = vector.load %arg4[%c0_19, %c0_20] : memref<640x256xbf16, #tpu.memory_space<vmem>>, vector<128x256xbf16>
    %cst_21 = arith.constant dense<0.000000e+00> : vector<256x256xf32>
    %19 = tpu.matmul %17, %18, %cst_21 {dimension_numbers = #tpu.dot_dimension_numbers<[1], [0], [0], [1], [0, 0, 1, 1], [], []>} : vector<256x128xbf16>, vector<128x256xbf16>, vector<256x256xf32> -> vector<256x256xf32>
    %c1 = arith.constant 1 : index
    %c0_22 = arith.constant 0 : index
    %c0_23 = arith.constant 0 : index
    %20 = vector.load %arg13[%c1, %c0_22, %c0_23] : memref<20x16x128xbf16, #tpu.memory_space<vmem>>, vector<16x16x128xbf16>
    %21 = vector.shape_cast %20 : vector<16x16x128xbf16> to vector<256x128xbf16>
    %c128 = arith.constant 128 : index
    %c0_24 = arith.constant 0 : index
    %22 = vector.load %arg4[%c128, %c0_24] : memref<640x256xbf16, #tpu.memory_space<vmem>>, vector<128x256xbf16>
    %cst_25 = arith.constant dense<0.000000e+00> : vector<256x256xf32>
    %23 = tpu.matmul %21, %22, %cst_25 {dimension_numbers = #tpu.dot_dimension_numbers<[1], [0], [0], [1], [0, 0, 1, 1], [], []>} : vector<256x128xbf16>, vector<128x256xbf16>, vector<256x256xf32> -> vector<256x256xf32>
    %24 = arith.addf %19, %23 : vector<256x256xf32>
    %c2_26 = arith.constant 2 : index
    %c0_27 = arith.constant 0 : index
    %c0_28 = arith.constant 0 : index
    %25 = vector.load %arg13[%c2_26, %c0_27, %c0_28] : memref<20x16x128xbf16, #tpu.memory_space<vmem>>, vector<16x16x128xbf16>
    %26 = vector.shape_cast %25 : vector<16x16x128xbf16> to vector<256x128xbf16>
    %c256 = arith.constant 256 : index
    %c0_29 = arith.constant 0 : index
    %27 = vector.load %arg4[%c256, %c0_29] : memref<640x256xbf16, #tpu.memory_space<vmem>>, vector<128x256xbf16>
    %cst_30 = arith.constant dense<0.000000e+00> : vector<256x256xf32>
    %28 = tpu.matmul %26, %27, %cst_30 {dimension_numbers = #tpu.dot_dimension_numbers<[1], [0], [0], [1], [0, 0, 1, 1], [], []>} : vector<256x128xbf16>, vector<128x256xbf16>, vector<256x256xf32> -> vector<256x256xf32>
    %29 = arith.addf %24, %28 : vector<256x256xf32>
    %c3 = arith.constant 3 : index
    %c0_31 = arith.constant 0 : index
    %c0_32 = arith.constant 0 : index
    %30 = vector.load %arg13[%c3, %c0_31, %c0_32] : memref<20x16x128xbf16, #tpu.memory_space<vmem>>, vector<16x16x128xbf16>
    %31 = vector.shape_cast %30 : vector<16x16x128xbf16> to vector<256x128xbf16>
    %c384 = arith.constant 384 : index
    %c0_33 = arith.constant 0 : index
    %32 = vector.load %arg4[%c384, %c0_33] : memref<640x256xbf16, #tpu.memory_space<vmem>>, vector<128x256xbf16>
    %cst_34 = arith.constant dense<0.000000e+00> : vector<256x256xf32>
    %33 = tpu.matmul %31, %32, %cst_34 {dimension_numbers = #tpu.dot_dimension_numbers<[1], [0], [0], [1], [0, 0, 1, 1], [], []>} : vector<256x128xbf16>, vector<128x256xbf16>, vector<256x256xf32> -> vector<256x256xf32>
    %34 = arith.addf %29, %33 : vector<256x256xf32>
    %c4 = arith.constant 4 : index
    %c0_35 = arith.constant 0 : index
    %c0_36 = arith.constant 0 : index
    %35 = vector.load %arg13[%c4, %c0_35, %c0_36] : memref<20x16x128xbf16, #tpu.memory_space<vmem>>, vector<16x16x128xbf16>
    %36 = vector.shape_cast %35 : vector<16x16x128xbf16> to vector<256x128xbf16>
    %c512 = arith.constant 512 : index
    %c0_37 = arith.constant 0 : index
    %37 = vector.load %arg4[%c512, %c0_37] : memref<640x256xbf16, #tpu.memory_space<vmem>>, vector<128x256xbf16>
    %cst_38 = arith.constant dense<0.000000e+00> : vector<256x256xf32>
    %38 = tpu.matmul %36, %37, %cst_38 {dimension_numbers = #tpu.dot_dimension_numbers<[1], [0], [0], [1], [0, 0, 1, 1], [], []>} : vector<256x128xbf16>, vector<128x256xbf16>, vector<256x256xf32> -> vector<256x256xf32>
    %39 = arith.addf %34, %38 : vector<256x256xf32>
    %c0_39 = arith.constant 0 : index
    %c0_40 = arith.constant 0 : index
    %40 = vector.load %arg5[%c0_39, %c0_40] : memref<1x256xf32, #tpu.memory_space<vmem>>, vector<1x256xf32>
    %41 = vector.broadcast %40 : vector<1x256xf32> to vector<256x256xf32>
    %42 = arith.addf %39, %41 : vector<256x256xf32>
    %cst_41 = arith.constant 0.000000e+00 : f32
    %43 = vector.broadcast %cst_41 : f32 to vector<256x256xf32>
    %44 = arith.maximumf %42, %43 : vector<256x256xf32>
    %cst_42 = arith.constant 0.000000e+00 : bf16
    %45 = vector.broadcast %cst_42 : bf16 to vector<3x16x256xbf16>
    %c0_43 = arith.constant 0 : index
    %c0_44 = arith.constant 0 : index
    %c0_45 = arith.constant 0 : index
    %46 = vector.load %arg14[%c0_43, %c0_44, %c0_45] : memref<23x16x256xbf16, #tpu.memory_space<vmem>>, vector<3x16x256xbf16>
    tpu.vector_store %arg14[%c0_43, %c0_44, %c0_45], %45 {strides = array<i32>} : memref<23x16x256xbf16, #tpu.memory_space<vmem>>, vector<3x16x256xbf16>,
    %cst_46 = arith.constant 0.000000e+00 : bf16
    %47 = vector.broadcast %cst_46 : bf16 to vector<4x16x256xbf16>
    %c19 = arith.constant 19 : index
    %c0_47 = arith.constant 0 : index
    %c0_48 = arith.constant 0 : index
    %48 = vector.load %arg14[%c19, %c0_47, %c0_48] : memref<23x16x256xbf16, #tpu.memory_space<vmem>>, vector<4x16x256xbf16>
    tpu.vector_store %arg14[%c19, %c0_47, %c0_48], %47 {strides = array<i32>} : memref<23x16x256xbf16, #tpu.memory_space<vmem>>, vector<4x16x256xbf16>,
    %49 = arith.truncf %44 : vector<256x256xf32> to vector<256x256xbf16>
    %50 = vector.shape_cast %49 : vector<256x256xbf16> to vector<16x16x256xbf16>
    %c3_49 = arith.constant 3 : index
    %c0_50 = arith.constant 0 : index
    %c0_51 = arith.constant 0 : index
    %51 = vector.load %arg14[%c3_49, %c0_50, %c0_51] : memref<23x16x256xbf16, #tpu.memory_space<vmem>>, vector<16x16x256xbf16>
    tpu.vector_store %arg14[%c3_49, %c0_50, %c0_51], %50 {strides = array<i32>} : memref<23x16x256xbf16, #tpu.memory_space<vmem>>, vector<16x16x256xbf16>,
    %c0_52 = arith.constant 0 : index
    %c0_53 = arith.constant 0 : index
    %c0_54 = arith.constant 0 : index
    %52 = vector.load %arg14[%c0_52, %c0_53, %c0_54] : memref<23x16x256xbf16, #tpu.memory_space<vmem>>, vector<16x16x256xbf16>
    %53 = vector.shape_cast %52 : vector<16x16x256xbf16> to vector<256x256xbf16>
    %c0_55 = arith.constant 0 : index
    %c0_56 = arith.constant 0 : index
    %54 = vector.load %arg6[%c0_55, %c0_56] : memref<2048x128xbf16, #tpu.memory_space<vmem>>, vector<256x128xbf16>
    %cst_57 = arith.constant dense<0.000000e+00> : vector<256x128xf32>
    %55 = tpu.matmul %53, %54, %cst_57 {dimension_numbers = #tpu.dot_dimension_numbers<[1], [0], [0], [1], [0, 0, 1, 1], [], []>} : vector<256x256xbf16>, vector<256x128xbf16>, vector<256x128xf32> -> vector<256x128xf32>
    %c1_58 = arith.constant 1 : index
    %c0_59 = arith.constant 0 : index
    %c0_60 = arith.constant 0 : index
    %56 = vector.load %arg14[%c1_58, %c0_59, %c0_60] : memref<23x16x256xbf16, #tpu.memory_space<vmem>>, vector<16x16x256xbf16>
    %57 = vector.shape_cast %56 : vector<16x16x256xbf16> to vector<256x256xbf16>
    %c256_61 = arith.constant 256 : index
    %c0_62 = arith.constant 0 : index
    %58 = vector.load %arg6[%c256_61, %c0_62] : memref<2048x128xbf16, #tpu.memory_space<vmem>>, vector<256x128xbf16>
    %cst_63 = arith.constant dense<0.000000e+00> : vector<256x128xf32>
    %59 = tpu.matmul %57, %58, %cst_63 {dimension_numbers = #tpu.dot_dimension_numbers<[1], [0], [0], [1], [0, 0, 1, 1], [], []>} : vector<256x256xbf16>, vector<256x128xbf16>, vector<256x128xf32> -> vector<256x128xf32>
    %60 = arith.addf %55, %59 : vector<256x128xf32>
    %c2_64 = arith.constant 2 : index
    %c0_65 = arith.constant 0 : index
    %c0_66 = arith.constant 0 : index
    %61 = vector.load %arg14[%c2_64, %c0_65, %c0_66] : memref<23x16x256xbf16, #tpu.memory_space<vmem>>, vector<16x16x256xbf16>
    %62 = vector.shape_cast %61 : vector<16x16x256xbf16> to vector<256x256xbf16>
    %c512_67 = arith.constant 512 : index
    %c0_68 = arith.constant 0 : index
    %63 = vector.load %arg6[%c512_67, %c0_68] : memref<2048x128xbf16, #tpu.memory_space<vmem>>, vector<256x128xbf16>
    %cst_69 = arith.constant dense<0.000000e+00> : vector<256x128xf32>
    %64 = tpu.matmul %62, %63, %cst_69 {dimension_numbers = #tpu.dot_dimension_numbers<[1], [0], [0], [1], [0, 0, 1, 1], [], []>} : vector<256x256xbf16>, vector<256x128xbf16>, vector<256x128xf32> -> vector<256x128xf32>
    %65 = arith.addf %60, %64 : vector<256x128xf32>
    %c3_70 = arith.constant 3 : index
    %c0_71 = arith.constant 0 : index
    %c0_72 = arith.constant 0 : index
    %66 = vector.load %arg14[%c3_70, %c0_71, %c0_72] : memref<23x16x256xbf16, #tpu.memory_space<vmem>>, vector<16x16x256xbf16>
    %67 = vector.shape_cast %66 : vector<16x16x256xbf16> to vector<256x256xbf16>
    %c768 = arith.constant 768 : index
    %c0_73 = arith.constant 0 : index
    %68 = vector.load %arg6[%c768, %c0_73] : memref<2048x128xbf16, #tpu.memory_space<vmem>>, vector<256x128xbf16>
    %cst_74 = arith.constant dense<0.000000e+00> : vector<256x128xf32>
    %69 = tpu.matmul %67, %68, %cst_74 {dimension_numbers = #tpu.dot_dimension_numbers<[1], [0], [0], [1], [0, 0, 1, 1], [], []>} : vector<256x256xbf16>, vector<256x128xbf16>, vector<256x128xf32> -> vector<256x128xf32>
    %70 = arith.addf %65, %69 : vector<256x128xf32>
    %c4_75 = arith.constant 4 : index
    %c0_76 = arith.constant 0 : index
    %c0_77 = arith.constant 0 : index
    %71 = vector.load %arg14[%c4_75, %c0_76, %c0_77] : memref<23x16x256xbf16, #tpu.memory_space<vmem>>, vector<16x16x256xbf16>
    %72 = vector.shape_cast %71 : vector<16x16x256xbf16> to vector<256x256xbf16>
    %c1024 = arith.constant 1024 : index
    %c0_78 = arith.constant 0 : index
    %73 = vector.load %arg6[%c1024, %c0_78] : memref<2048x128xbf16, #tpu.memory_space<vmem>>, vector<256x128xbf16>
    %cst_79 = arith.constant dense<0.000000e+00> : vector<256x128xf32>
    %74 = tpu.matmul %72, %73, %cst_79 {dimension_numbers = #tpu.dot_dimension_numbers<[1], [0], [0], [1], [0, 0, 1, 1], [], []>} : vector<256x256xbf16>, vector<256x128xbf16>, vector<256x128xf32> -> vector<256x128xf32>
    %75 = arith.addf %70, %74 : vector<256x128xf32>
    %c5 = arith.constant 5 : index
    %c0_80 = arith.constant 0 : index
    %c0_81 = arith.constant 0 : index
    %76 = vector.load %arg14[%c5, %c0_80, %c0_81] : memref<23x16x256xbf16, #tpu.memory_space<vmem>>, vector<16x16x256xbf16>
    %77 = vector.shape_cast %76 : vector<16x16x256xbf16> to vector<256x256xbf16>
    %c1280 = arith.constant 1280 : index
    %c0_82 = arith.constant 0 : index
    %78 = vector.load %arg6[%c1280, %c0_82] : memref<2048x128xbf16, #tpu.memory_space<vmem>>, vector<256x128xbf16>
    %cst_83 = arith.constant dense<0.000000e+00> : vector<256x128xf32>
    %79 = tpu.matmul %77, %78, %cst_83 {dimension_numbers = #tpu.dot_dimension_numbers<[1], [0], [0], [1], [0, 0, 1, 1], [], []>} : vector<256x256xbf16>, vector<256x128xbf16>, vector<256x128xf32> -> vector<256x128xf32>
    %80 = arith.addf %75, %79 : vector<256x128xf32>
    %c6 = arith.constant 6 : index
    %c0_84 = arith.constant 0 : index
    %c0_85 = arith.constant 0 : index
    %81 = vector.load %arg14[%c6, %c0_84, %c0_85] : memref<23x16x256xbf16, #tpu.memory_space<vmem>>, vector<16x16x256xbf16>
    %82 = vector.shape_cast %81 : vector<16x16x256xbf16> to vector<256x256xbf16>
    %c1536 = arith.constant 1536 : index
    %c0_86 = arith.constant 0 : index
    %83 = vector.load %arg6[%c1536, %c0_86] : memref<2048x128xbf16, #tpu.memory_space<vmem>>, vector<256x128xbf16>
    %cst_87 = arith.constant dense<0.000000e+00> : vector<256x128xf32>
    %84 = tpu.matmul %82, %83, %cst_87 {dimension_numbers = #tpu.dot_dimension_numbers<[1], [0], [0], [1], [0, 0, 1, 1], [], []>} : vector<256x256xbf16>, vector<256x128xbf16>, vector<256x128xf32> -> vector<256x128xf32>
    %85 = arith.addf %80, %84 : vector<256x128xf32>
    %c7 = arith.constant 7 : index
    %c0_88 = arith.constant 0 : index
    %c0_89 = arith.constant 0 : index
    %86 = vector.load %arg14[%c7, %c0_88, %c0_89] : memref<23x16x256xbf16, #tpu.memory_space<vmem>>, vector<16x16x256xbf16>
    %87 = vector.shape_cast %86 : vector<16x16x256xbf16> to vector<256x256xbf16>
    %c1792 = arith.constant 1792 : index
    %c0_90 = arith.constant 0 : index
    %88 = vector.load %arg6[%c1792, %c0_90] : memref<2048x128xbf16, #tpu.memory_space<vmem>>, vector<256x128xbf16>
    %cst_91 = arith.constant dense<0.000000e+00> : vector<256x128xf32>
    %89 = tpu.matmul %87, %88, %cst_91 {dimension_numbers = #tpu.dot_dimension_numbers<[1], [0], [0], [1], [0, 0, 1, 1], [], []>} : vector<256x256xbf16>, vector<256x128xbf16>, vector<256x128xf32> -> vector<256x128xf32>
    %90 = arith.addf %85, %89 : vector<256x128xf32>
    %c0_92 = arith.constant 0 : index
    %c0_93 = arith.constant 0 : index
    %91 = vector.load %arg7[%c0_92, %c0_93] : memref<1x128xf32, #tpu.memory_space<vmem>>, vector<1x128xf32>
    %92 = vector.broadcast %91 : vector<1x128xf32> to vector<256x128xf32>
    %93 = arith.addf %90, %92 : vector<256x128xf32>
    %cst_94 = arith.constant 0.000000e+00 : f32
    %94 = vector.broadcast %cst_94 : f32 to vector<256x128xf32>
    %95 = arith.maximumf %93, %94 : vector<256x128xf32>
    %96 = vector.shape_cast %95 : vector<256x128xf32> to vector<16x16x128xf32>
    %cst_95 = arith.constant dense<0.000000e+00> : vector<16x128xf32>
    %97 = vector.multi_reduction <add>, %96, %cst_95 [0] : vector<16x16x128xf32> to vector<16x128xf32>
    %98 = arith.truncf %97 : vector<16x128xf32> to vector<16x128xbf16>
    %c0_96 = arith.constant 0 : index
    %c0_97 = arith.constant 0 : index
    %99 = vector.load %arg8[%c0_96, %c0_97] : memref<128x64xbf16, #tpu.memory_space<vmem>>, vector<128x64xbf16>
    %cst_98 = arith.constant dense<0.000000e+00> : vector<16x64xf32>
    %100 = tpu.matmul %98, %99, %cst_98 {dimension_numbers = #tpu.dot_dimension_numbers<[1], [0], [0], [1], [0, 0, 1, 1], [], []>} : vector<16x128xbf16>, vector<128x64xbf16>, vector<16x64xf32> -> vector<16x64xf32>
    %c0_99 = arith.constant 0 : index
    %c0_100 = arith.constant 0 : index
    %101 = vector.load %arg9[%c0_99, %c0_100] : memref<1x64xf32, #tpu.memory_space<vmem>>, vector<1x64xf32>
    %102 = vector.broadcast %101 : vector<1x64xf32> to vector<16x64xf32>
    %103 = arith.addf %100, %102 : vector<16x64xf32>
    %cst_101 = arith.constant 0.000000e+00 : f32
    %104 = vector.broadcast %cst_101 : f32 to vector<16x64xf32>
    %105 = arith.maximumf %103, %104 : vector<16x64xf32>
    %106 = arith.truncf %105 : vector<16x64xf32> to vector<16x64xbf16>
    %c0_102 = arith.constant 0 : index
    %c0_103 = arith.constant 0 : index
    %107 = vector.load %arg10[%c0_102, %c0_103] : memref<64x128xbf16, #tpu.memory_space<vmem>>, vector<64x128xbf16>
    %cst_104 = arith.constant dense<0.000000e+00> : vector<16x128xf32>
    %108 = tpu.matmul %106, %107, %cst_104 {dimension_numbers = #tpu.dot_dimension_numbers<[1], [0], [0], [1], [0, 0, 1, 1], [], []>} : vector<16x64xbf16>, vector<64x128xbf16>, vector<16x128xf32> -> vector<16x128xf32>
    %c0_105 = arith.constant 0 : index
    %c0_106 = arith.constant 0 : index
    %109 = vector.load %arg11[%c0_105, %c0_106] : memref<1x128xf32, #tpu.memory_space<vmem>>, vector<1x128xf32>
    %110 = vector.broadcast %109 : vector<1x128xf32> to vector<16x128xf32>
    %111 = arith.addf %108, %110 : vector<16x128xf32>
    %c0_107 = arith.constant 0 : index
    %c0_108 = arith.constant 0 : index
    %112 = vector.load %arg12[%c0_107, %c0_108] : memref<16x128xf32, #tpu.memory_space<vmem>>, vector<16x128xf32>
    tpu.vector_store %arg12[%c0_107, %c0_108], %111 {strides = array<i32>} : memref<16x128xf32, #tpu.memory_space<vmem>>, vector<16x128xf32>,
    return
  }
  func.func @transform_0(%arg0: i32) -> (i32, i32, i32) {
    %c0_i32 = arith.constant 0 : i32
    %c0_i32_0 = arith.constant 0 : i32
    %c0_i32_1 = arith.constant 0 : i32
    return %c0_i32, %arg0, %c0_i32_0 : i32, i32, i32
  }
  func.func @transform_1(%arg0: i32) -> (i32, i32) {
    %c0_i32 = arith.constant 0 : i32
    %c0_i32_0 = arith.constant 0 : i32
    %c0_i32_1 = arith.constant 0 : i32
    return %c0_i32, %c0_i32_0 : i32, i32
  }
  func.func @transform_2(%arg0: i32) -> (i32, i32) {
    %c0_i32 = arith.constant 0 : i32
    %c0_i32_0 = arith.constant 0 : i32
    %c0_i32_1 = arith.constant 0 : i32
    return %c0_i32, %c0_i32_0 : i32, i32
  }
  func.func @transform_3(%arg0: i32) -> (i32, i32) {
    %c0_i32 = arith.constant 0 : i32
    %c0_i32_0 = arith.constant 0 : i32
    %c0_i32_1 = arith.constant 0 : i32
    return %c0_i32, %c0_i32_0 : i32, i32
  }
  func.func @transform_4(%arg0: i32) -> (i32, i32) {
    %c0_i32 = arith.constant 0 : i32
    %c0_i32_0 = arith.constant 0 : i32
    %c0_i32_1 = arith.constant 0 : i32
    return %c0_i32, %c0_i32_0 : i32, i32
  }
  func.func @transform_5(%arg0: i32) -> (i32, i32) {
    %c0_i32 = arith.constant 0 : i32
    %c0_i32_0 = arith.constant 0 : i32
    %c0_i32_1 = arith.constant 0 : i32
    return %c0_i32, %c0_i32_0 : i32, i32
  }
  func.func @transform_6(%arg0: i32) -> (i32, i32) {
    %c0_i32 = arith.constant 0 : i32
    %c0_i32_0 = arith.constant 0 : i32
    %c0_i32_1 = arith.constant 0 : i32
    return %c0_i32, %c0_i32_0 : i32, i32
  }
  func.func @transform_7(%arg0: i32) -> (i32, i32) {
    %c0_i32 = arith.constant 0 : i32
    %c0_i32_0 = arith.constant 0 : i32
    %c0_i32_1 = arith.constant 0 : i32
    return %c0_i32, %c0_i32_0 : i32, i32
  }
  func.func @transform_8(%arg0: i32) -> (i32, i32) {
    %c0_i32 = arith.constant 0 : i32
    %c0_i32_0 = arith.constant 0 : i32
    %c0_i32_1 = arith.constant 0 : i32
    return %c0_i32, %c0_i32_0 : i32, i32
  }
  func.func @transform_9(%arg0: i32) -> (i32, i32) {
    %c0_i32 = arith.constant 0 : i32
    %c0_i32_0 = arith.constant 0 : i32
    %c0_i32_1 = arith.constant 0 : i32
    return %c0_i32, %c0_i32_0 : i32, i32
  }
  func.func @transform_10(%arg0: i32) -> (i32, i32) {
    %c0_i32 = arith.constant 0 : i32
    %c0_i32_0 = arith.constant 0 : i32
    %c0_i32_1 = arith.constant 0 : i32
    return %c0_i32, %c0_i32_0 : i32, i32
  }
  func.func @transform_11(%arg0: i32) -> (i32, i32) {
    %c0_i32 = arith.constant 0 : i32
    %c0_i32_0 = arith.constant 0 : i32
    return %arg0, %c0_i32 : i32, i32
  }
}

</mosaic_0001>

<llo_original>
// kernel: tpu_custom_call.1
$region0: #{tpu_custom_call.1}
  #allocation0 [shape = 'u32[]', space=smem, size = 0x4, offset = 0x4, fixed_abs, tag = 'smem constant byte address 0x4 - core index']
  #allocation1 [shape = 'u32[144,128]{1,0:T(1,128)}', space=vmem, size = 0x12000, scoped, tag = 'internal scratch']
  #allocation2 [shape = 'bf16[20,16,128]{2,1,0:T(16,128)(2,1)}', space=vmem, size = 0x14000, scoped, tag = 'scratch operand']
  #allocation3 [shape = 'bf16[23,16,256]{2,1,0:T(16,128)(2,1)}', space=vmem, size = 0x2e000, scoped, tag = 'scratch operand']
  %s0 = inlined_call_operand.hbm [shape: bf16[16,16,32], index: 0, kind: input, shape index: {}]
  %s1 = inlined_call_operand.vmem [shape: bf16[32,128], index: 1, kind: input, shape index: {}]
  %s2 = inlined_call_operand.vmem [shape: f32[1,128], index: 2, kind: input, shape index: {}]
  %s3 = inlined_call_operand.hbm [shape: bf16[640,256], index: 3, kind: input, shape index: {}]
  %s4 = inlined_call_operand.vmem [shape: f32[1,256], index: 4, kind: input, shape index: {}]
  %s5 = inlined_call_operand.hbm [shape: bf16[2048,128], index: 5, kind: input, shape index: {}]
  %s6 = inlined_call_operand.vmem [shape: f32[1,128], index: 6, kind: input, shape index: {}]
  %s7 = inlined_call_operand.vmem [shape: bf16[128,64], index: 7, kind: input, shape index: {}]
  %s8 = inlined_call_operand.vmem [shape: f32[1,64], index: 8, kind: input, shape index: {}]
  %s9 = inlined_call_operand.vmem [shape: bf16[64,128], index: 9, kind: input, shape index: {}]
  %s10 = inlined_call_operand.vmem [shape: f32[1,128], index: 10, kind: input, shape index: {}]
  %s11 = inlined_call_operand.hbm [shape: f32[16,128], index: 11, kind: output, shape index: {}]
  %s12 = sld [smem:[#allocation0]]
  $region66: #{tpu_custom_call.1} parent=0
    _
  %s14 = ssub.s32 1, %s12
  %s15 = scalar_select 0, %s14, %s12
  $region1: #{tpu_custom_call.1} parent=0
    #allocation4 [shape = 'u8[65536]{0}', space=vmem, size = 0x10000, scoped, tag = 'input window, operand 0, single buffered']
    #allocation5 [shape = 's32[1]{0}', space=sflag, size = 0x4, scoped, tag = 'scoped memory for tpu_custom_call.1']
    #allocation6 [shape = 's32[1]{0}', space=sflag, size = 0x4, scoped, tag = 'scoped memory for tpu_custom_call.1']
    #allocation7 [shape = 'u8[327680]{0}', space=vmem, size = 0x50000, scoped, tag = 'input window, operand 3, single buffered']
    #allocation8 [shape = 's32[1]{0}', space=sflag, size = 0x4, scoped, tag = 'scoped memory for tpu_custom_call.1']
    #allocation9 [shape = 'u8[524288]{0}', space=vmem, size = 0x80000, scoped, tag = 'input window, operand 5, single buffered']
    #allocation10 [shape = 'u8[8192]{0}', space=vmem, size = 0x2000, scoped, tag = 'output window, operand 0, single buffered']
    %16 = vsyncpa [#allocation5], 0
    %17 = vsyncpa [#allocation8], 0
    %18 = vsyncpa [#allocation6], 0
    // Predicated region
    $region2: #{tpu_custom_call.1} parent=1 // pred_check
      _
    $region3: #{tpu_custom_call.1} parent=1 // pred_check_branch
      %20 = sbr.rel (0) target = $region5
    $region4: #{tpu_custom_call.1} parent=1 // pred_region
      %s22 = ssub.s32 2048, 2048
      %23 = vsyncadd [#allocation5], %s22
      %s24 = sshll.u32 [#allocation4], 4
      %s25 = int_to_ptr.vmem [resolvable:$true] %s24
      %30 = dma.hbm_to_vmem [thread:$0]  %s0, 2048, %s25, [#allocation5], 64, 64, 4
    $region5: #{tpu_custom_call.1} parent=1 // pred_fallthru
      _
    // Predicated region
    $region6: #{tpu_custom_call.1} parent=1 // pred_check
      _
    $region7: #{tpu_custom_call.1} parent=1 // pred_check_branch
      %32 = sbr.rel (0) target = $region9
    $region8: #{tpu_custom_call.1} parent=1 // pred_region
      _
    $region9: #{tpu_custom_call.1} parent=1 // pred_fallthru
      _
    // Predicated region
    $region10: #{tpu_custom_call.1} parent=1 // pred_check
      _
    $region11: #{tpu_custom_call.1} parent=1 // pred_check_branch
      %34 = sbr.rel (0) target = $region13
    $region12: #{tpu_custom_call.1} parent=1 // pred_region
      _
    $region13: #{tpu_custom_call.1} parent=1 // pred_fallthru
      _
    // Predicated region
    $region14: #{tpu_custom_call.1} parent=1 // pred_check
      _
    $region15: #{tpu_custom_call.1} parent=1 // pred_check_branch
      %36 = sbr.rel (0) target = $region17
    $region16: #{tpu_custom_call.1} parent=1 // pred_region
      %s38 = ssub.s32 10240, 10240
      %39 = vsyncadd [#allocation8], %s38
      %s40 = sshll.u32 [#allocation7], 4
      %s41 = int_to_ptr.vmem [resolvable:$true] %s40
      %46 = dma.hbm_to_vmem [thread:$0]  %s3, 10240, %s41, [#allocation8], 128, 128, 8
    $region17: #{tpu_custom_call.1} parent=1 // pred_fallthru
      _
    // Predicated region
    $region18: #{tpu_custom_call.1} parent=1 // pred_check
      _
    $region19: #{tpu_custom_call.1} parent=1 // pred_check_branch
      %48 = sbr.rel (0) target = $region21
    $region20: #{tpu_custom_call.1} parent=1 // pred_region
      _
    $region21: #{tpu_custom_call.1} parent=1 // pred_fallthru
      _
    // Predicated region
    $region22: #{tpu_custom_call.1} parent=1 // pred_check
      _
    $region23: #{tpu_custom_call.1} parent=1 // pred_check_branch
      %50 = sbr.rel (0) target = $region25
    $region24: #{tpu_custom_call.1} parent=1 // pred_region
      %s52 = ssub.s32 16384, 16384
      %53 = vsyncadd [#allocation8], %s52
      %s54 = sshll.u32 [#allocation9], 4
      %s55 = int_to_ptr.vmem [resolvable:$true] %s54
      %60 = dma.hbm_to_vmem [thread:$0]  %s5, 16384, %s55, [#allocation8], 64, 64, 4
    $region25: #{tpu_custom_call.1} parent=1 // pred_fallthru
      _
    // Predicated region
    $region26: #{tpu_custom_call.1} parent=1 // pred_check
      _
    $region27: #{tpu_custom_call.1} parent=1 // pred_check_branch
      %62 = sbr.rel (0) target = $region29
    $region28: #{tpu_custom_call.1} parent=1 // pred_region
      _
    $region29: #{tpu_custom_call.1} parent=1 // pred_fallthru
      _
    // Predicated region
    $region30: #{tpu_custom_call.1} parent=1 // pred_check
      _
    $region31: #{tpu_custom_call.1} parent=1 // pred_check_branch
      %64 = sbr.rel (0) target = $region33
    $region32: #{tpu_custom_call.1} parent=1 // pred_region
      _
    $region33: #{tpu_custom_call.1} parent=1 // pred_fallthru
      _
    // Predicated region
    $region34: #{tpu_custom_call.1} parent=1 // pred_check
      _
    $region35: #{tpu_custom_call.1} parent=1 // pred_check_branch
      %66 = sbr.rel (0) target = $region37
    $region36: #{tpu_custom_call.1} parent=1 // pred_region
      _
    $region37: #{tpu_custom_call.1} parent=1 // pred_fallthru
      _
    // Predicated region
    $region38: #{tpu_custom_call.1} parent=1 // pred_check
      _
    $region39: #{tpu_custom_call.1} parent=1 // pred_check_branch
      %68 = sbr.rel (0) target = $region41
    $region40: #{tpu_custom_call.1} parent=1 // pred_region
      _
    $region41: #{tpu_custom_call.1} parent=1 // pred_fallthru
      _
    // Predicated region
    $region42: #{tpu_custom_call.1} parent=1 // pred_check
      _
    $region43: #{tpu_custom_call.1} parent=1 // pred_check_branch
      %70 = sbr.rel (0) target = $region45
    $region44: #{tpu_custom_call.1} parent=1 // pred_region
      _
    $region45: #{tpu_custom_call.1} parent=1 // pred_fallthru
      _
    // Predicated region
    $region46: #{tpu_custom_call.1} parent=1 // pred_check
      _
    $region47: #{tpu_custom_call.1} parent=1 // pred_check_branch
      %72 = sbr.rel (0) target = $region49
    $region48: #{tpu_custom_call.1} parent=1 // pred_region
      %73 = dma.done [#allocation5], 2048
    $region49: #{tpu_custom_call.1} parent=1 // pred_fallthru
      _
    // Predicated region
    $region50: #{tpu_custom_call.1} parent=1 // pred_check
      _
    $region51: #{tpu_custom_call.1} parent=1 // pred_check_branch
      %75 = sbr.rel (0) target = $region53
    $region52: #{tpu_custom_call.1} parent=1 // pred_region
      %76 = dma.done [#allocation8], 10240
    $region53: #{tpu_custom_call.1} parent=1 // pred_fallthru
      _
    // Predicated region
    $region54: #{tpu_custom_call.1} parent=1 // pred_check
      _
    $region55: #{tpu_custom_call.1} parent=1 // pred_check_branch
      %78 = sbr.rel (0) target = $region57
    $region56: #{tpu_custom_call.1} parent=1 // pred_region
      %79 = dma.done [#allocation8], 16384
    $region57: #{tpu_custom_call.1} parent=1 // pred_fallthru
      _
    %v81 = vld [vmem:[#allocation4] sm:$0xf]
    %v82 = vld [vmem:[#allocation4 + $0x4] sm:$0xf]
    %v83 = vld [vmem:[#allocation4 + $0x8] sm:$0xf]
    %v84 = vld [vmem:[#allocation4 + $0xc] sm:$0xf]
    %v85 = vld [vmem:[#allocation4 + $0x10] sm:$0xf]
    %v86 = vld [vmem:[#allocation4 + $0x14] sm:$0xf]
    %v87 = vld [vmem:[#allocation4 + $0x18] sm:$0xf]
    %v88 = vld [vmem:[#allocation4 + $0x1c] sm:$0xf]
    %v89 = vld [vmem:[#allocation4 + $0x20] sm:$0xf]
    %v90 = vld [vmem:[#allocation4 + $0x24] sm:$0xf]
    %v91 = vld [vmem:[#allocation4 + $0x28] sm:$0xf]
    %v92 = vld [vmem:[#allocation4 + $0x2c] sm:$0xf]
    %v93 = vld [vmem:[#allocation4 + $0x30] sm:$0xf]
    %v94 = vld [vmem:[#allocation4 + $0x34] sm:$0xf]
    %v95 = vld [vmem:[#allocation4 + $0x38] sm:$0xf]
    %v96 = vld [vmem:[#allocation4 + $0x3c] sm:$0xf]
    %v97 = vld [vmem:[#allocation4 + $0x40] sm:$0xf]
    %v98 = vld [vmem:[#allocation4 + $0x44] sm:$0xf]
    %v99 = vld [vmem:[#allocation4 + $0x48] sm:$0xf]
    %v100 = vld [vmem:[#allocation4 + $0x4c] sm:$0xf]
    %v101 = vld [vmem:[#allocation4 + $0x50] sm:$0xf]
    %v102 = vld [vmem:[#allocation4 + $0x54] sm:$0xf]
    %v103 = vld [vmem:[#allocation4 + $0x58] sm:$0xf]
    %v104 = vld [vmem:[#allocation4 + $0x5c] sm:$0xf]
    %v105 = vld [vmem:[#allocation4 + $0x60] sm:$0xf]
    %v106 = vld [vmem:[#allocation4 + $0x64] sm:$0xf]
    %v107 = vld [vmem:[#allocation4 + $0x68] sm:$0xf]
    %v108 = vld [vmem:[#allocation4 + $0x6c] sm:$0xf]
    %v109 = vld [vmem:[#allocation4 + $0x70] sm:$0xf]
    %v110 = vld [vmem:[#allocation4 + $0x74] sm:$0xf]
    %v111 = vld [vmem:[#allocation4 + $0x78] sm:$0xf]
    %v112 = vld [vmem:[#allocation4 + $0x7c] sm:$0xf]
    %v113 = vld [vmem:[%s1] sm:$0xf]
    %v114 = vld [vmem:[%s1 + $0x4] sm:$0xf]
    %v115 = vld [vmem:[%s1 + $0x8] sm:$0xf]
    %v116 = vld [vmem:[%s1 + $0xc] sm:$0xf]
    %v117 = vld [vmem:[%s2] sm:$0x1]
    %v119 = vlaneseq
    %v120 = vshrl.u32 %v119, 7
    %v121 = vsub.s32 0, %v120
    %v122 = vrot.slane %v117, %v121
    %v156 = vunpack.c.l.b16 %v81
    %v157 = vunpack.c.l.b16 %v82
    %v158 = vunpack.c.l.b16 %v83
    %v159 = vunpack.c.l.b16 %v84
    %v160 = vunpack.c.l.b16 %v85
    %v161 = vunpack.c.l.b16 %v86
    %v162 = vunpack.c.l.b16 %v87
    %v163 = vunpack.c.l.b16 %v88
    %v164 = vunpack.c.l.b16 %v89
    %v165 = vunpack.c.l.b16 %v90
    %v166 = vunpack.c.l.b16 %v91
    %v167 = vunpack.c.l.b16 %v92
    %v168 = vunpack.c.l.b16 %v93
    %v169 = vunpack.c.l.b16 %v94
    %v170 = vunpack.c.l.b16 %v95
    %v171 = vunpack.c.l.b16 %v96
    %v172 = vunpack.c.l.b16 %v97
    %v173 = vunpack.c.l.b16 %v98
    %v174 = vunpack.c.l.b16 %v99
    %v175 = vunpack.c.l.b16 %v100
    %v176 = vunpack.c.l.b16 %v101
    %v177 = vunpack.c.l.b16 %v102
    %v178 = vunpack.c.l.b16 %v103
    %v179 = vunpack.c.l.b16 %v104
    %v180 = vunpack.c.l.b16 %v105
    %v181 = vunpack.c.l.b16 %v106
    %v182 = vunpack.c.l.b16 %v107
    %v183 = vunpack.c.l.b16 %v108
    %v184 = vunpack.c.l.b16 %v109
    %v185 = vunpack.c.l.b16 %v110
    %v186 = vunpack.c.l.b16 %v111
    %v187 = vunpack.c.l.b16 %v112
    %v188 = vpack.c.b16 %v157, %v156
    %v189 = vpack.c.b16 %v159, %v158
    %v190 = vpack.c.b16 %v161, %v160
    %v191 = vpack.c.b16 %v163, %v162
    %v192 = vpack.c.b16 %v165, %v164
    %v193 = vpack.c.b16 %v167, %v166
    %v194 = vpack.c.b16 %v169, %v168
    %v195 = vpack.c.b16 %v171, %v170
    %v196 = vpack.c.b16 %v173, %v172
    %v197 = vpack.c.b16 %v175, %v174
    %v198 = vpack.c.b16 %v177, %v176
    %v199 = vpack.c.b16 %v179, %v178
    %v200 = vpack.c.b16 %v181, %v180
    %v201 = vpack.c.b16 %v183, %v182
    %v202 = vpack.c.b16 %v185, %v184
    %v203 = vpack.c.b16 %v187, %v186
    %v208 = vunpack.c.l.b16 %v113
    %v209 = vunpack.c.l.b16 %v114
    %v210 = vunpack.c.l.b16 %v115
    %v211 = vunpack.c.l.b16 %v116
    %v212 = vpack.c.b16 %v209, %v208
    %v213 = vpack.c.b16 %v211, %v210
    %vm216 = vcmask 261120
    %v218 = vsel %vm216, %v188, 0
    %v221 = vsel %vm216, %v189, 0
    %v224 = vsel %vm216, %v190, 0
    %v227 = vsel %vm216, %v191, 0
    %v230 = vsel %vm216, %v192, 0
    %v233 = vsel %vm216, %v193, 0
    %v236 = vsel %vm216, %v194, 0
    %v239 = vsel %vm216, %v195, 0
    %v242 = vsel %vm216, %v196, 0
    %v245 = vsel %vm216, %v197, 0
    %v248 = vsel %vm216, %v198, 0
    %v251 = vsel %vm216, %v199, 0
    %v254 = vsel %vm216, %v200, 0
    %v257 = vsel %vm216, %v201, 0
    %v260 = vsel %vm216, %v202, 0
    %v263 = vsel %vm216, %v203, 0
    %265 = vmatprep.subr.bf16.mxu0 0
    %266 = vmatpush1.bf16.msra.mxu0 %v212
    %267 = vmatprep.subr.bf16.mxu0 0
    %268 = vmatpush1.bf16.msra.mxu0 %v213
    %269 = vmatprep.subr.bf16.mxu0 0
    %270 = vmatpush1.bf16.msra.mxu0 0
    %271 = vmatprep.subr.bf16.mxu0 0
    %272 = vmatpush1.bf16.msra.mxu0 0
    %273 = vmatprep.subr.bf16.mxu0 0
    %274 = vmatpush1.bf16.msra.mxu0 0
    %275 = vmatprep.subr.bf16.mxu0 0
    %276 = vmatpush1.bf16.msra.mxu0 0
    %277 = vmatprep.subr.bf16.mxu0 0
    %278 = vmatpush1.bf16.msra.mxu0 0
    %279 = vmatprep.subr.bf16.mxu0 0
    %280 = vmatpush1.bf16.msra.mxu0 0
    %281 = vmatprep.subr.bf16.mxu0 0
    %282 = vmatpush1.bf16.msra.mxu0 0
    %283 = vmatprep.subr.bf16.mxu0 0
    %284 = vmatpush1.bf16.msra.mxu0 0
    %285 = vmatprep.subr.bf16.mxu0 0
    %286 = vmatpush1.bf16.msra.mxu0 0
    %287 = vmatprep.subr.bf16.mxu0 0
    %288 = vmatpush1.bf16.msra.mxu0 0
    %289 = vmatprep.subr.bf16.mxu0 0
    %290 = vmatpush1.bf16.msra.mxu0 0
    %291 = vmatprep.subr.bf16.mxu0 0
    %292 = vmatpush1.bf16.msra.mxu0 0
    %293 = vmatprep.subr.bf16.mxu0 0
    %294 = vmatpush1.bf16.msra.mxu0 0
    %295 = vmatprep.subr.bf16.mxu0 0
    %296 = vmatpush1.bf16.msra.mxu0 0
    %297 = vmatprep.mubr.bf16.mxu0 0
    %298 = vmatmul.mubr.bf16.gmra.mrb[0].mxu0 %v218
    %v299 = vpop.f32.mrb[0].mxu0
    %v300 = vadd.f32 %v122, %v299
    %v301 = vpop.f32.mrb[0].mxu0
    %v302 = vpop.f32.mrb[0].mxu0
    %v303 = vadd.f32 %v122, %v302
    %v304 = vpop.f32.mrb[0].mxu0
    %305 = vmatprep.mubr.bf16.mxu0 0
    %306 = vmatmul.mubr.bf16.gmra.mrb[0].mxu0 %v221
    %v307 = vpop.f32.mrb[0].mxu0
    %v308 = vadd.f32 %v122, %v307
    %v309 = vpop.f32.mrb[0].mxu0
    %v310 = vpop.f32.mrb[0].mxu0
    %v311 = vadd.f32 %v122, %v310
    %v312 = vpop.f32.mrb[0].mxu0
    %313 = vmatprep.mubr.bf16.mxu0 0
    %314 = vmatmul.mubr.bf16.gmra.mrb[0].mxu0 %v224
    %v315 = vpop.f32.mrb[0].mxu0
    %v316 = vadd.f32 %v122, %v315
    %v317 = vpop.f32.mrb[0].mxu0
    %v318 = vpop.f32.mrb[0].mxu0
    %v319 = vadd.f32 %v122, %v318
    %v320 = vpop.f32.mrb[0].mxu0
    %321 = vmatprep.mubr.bf16.mxu0 0
    %322 = vmatmul.mubr.bf16.gmra.mrb[0].mxu0 %v227
    %v323 = vpop.f32.mrb[0].mxu0
    %v324 = vadd.f32 %v122, %v323
    %v325 = vpop.f32.mrb[0].mxu0
    %v326 = vpop.f32.mrb[0].mxu0
    %v327 = vadd.f32 %v122, %v326
    %v328 = vpop.f32.mrb[0].mxu0
    %329 = vmatprep.mubr.bf16.mxu0 0
    %330 = vmatmul.mubr.bf16.gmra.mrb[0].mxu0 %v230
    %v331 = vpop.f32.mrb[0].mxu0
    %v332 = vadd.f32 %v122, %v331
    %v333 = vpop.f32.mrb[0].mxu0
    %v334 = vpop.f32.mrb[0].mxu0
    %v335 = vadd.f32 %v122, %v334
    %v336 = vpop.f32.mrb[0].mxu0
    %337 = vmatprep.mubr.bf16.mxu0 0
    %338 = vmatmul.mubr.bf16.gmra.mrb[0].mxu0 %v233
    %v339 = vpop.f32.mrb[0].mxu0
    %v340 = vadd.f32 %v122, %v339
    %v341 = vpop.f32.mrb[0].mxu0
    %v342 = vpop.f32.mrb[0].mxu0
    %v343 = vadd.f32 %v122, %v342
    %v344 = vpop.f32.mrb[0].mxu0
    %345 = vmatprep.mubr.bf16.mxu0 0
    %346 = vmatmul.mubr.bf16.gmra.mrb[0].mxu0 %v236
    %v347 = vpop.f32.mrb[0].mxu0
    %v348 = vadd.f32 %v122, %v347
    %v349 = vpop.f32.mrb[0].mxu0
    %v350 = vpop.f32.mrb[0].mxu0
    %v351 = vadd.f32 %v122, %v350
    %v352 = vpop.f32.mrb[0].mxu0
    %353 = vmatprep.mubr.bf16.mxu0 0
    %354 = vmatmul.mubr.bf16.gmra.mrb[0].mxu0 %v239
    %v355 = vpop.f32.mrb[0].mxu0
    %v356 = vadd.f32 %v122, %v355
    %v357 = vpop.f32.mrb[0].mxu0
    %v358 = vpop.f32.mrb[0].mxu0
    %v359 = vadd.f32 %v122, %v358
    %v360 = vpop.f32.mrb[0].mxu0
    %361 = vmatprep.mubr.bf16.mxu0 0
    %362 = vmatmul.mubr.bf16.gmra.mrb[0].mxu0 %v242
    %v363 = vpop.f32.mrb[0].mxu0
    %v364 = vadd.f32 %v122, %v363
    %v365 = vpop.f32.mrb[0].mxu0
    %v366 = vpop.f32.mrb[0].mxu0
    %v367 = vadd.f32 %v122, %v366
    %v368 = vpop.f32.mrb[0].mxu0
    %369 = vmatprep.mubr.bf16.mxu0 0
    %370 = vmatmul.mubr.bf16.gmra.mrb[0].mxu0 %v245
    %v371 = vpop.f32.mrb[0].mxu0
    %v372 = vadd.f32 %v122, %v371
    %v373 = vpop.f32.mrb[0].mxu0
    %v374 = vpop.f32.mrb[0].mxu0
    %v375 = vadd.f32 %v122, %v374
    %v376 = vpop.f32.mrb[0].mxu0
    %377 = vmatprep.mubr.bf16.mxu0 0
    %378 = vmatmul.mubr.bf16.gmra.mrb[0].mxu0 %v248
    %v379 = vpop.f32.mrb[0].mxu0
    %v380 = vadd.f32 %v122, %v379
    %v381 = vpop.f32.mrb[0].mxu0
    %v382 = vpop.f32.mrb[0].mxu0
    %v383 = vadd.f32 %v122, %v382
    %v384 = vpop.f32.mrb[0].mxu0
    %385 = vmatprep.mubr.bf16.mxu0 0
    %386 = vmatmul.mubr.bf16.gmra.mrb[0].mxu0 %v251
    %v387 = vpop.f32.mrb[0].mxu0
    %v388 = vadd.f32 %v122, %v387
    %v389 = vpop.f32.mrb[0].mxu0
    %v390 = vpop.f32.mrb[0].mxu0
    %v391 = vadd.f32 %v122, %v390
    %v392 = vpop.f32.mrb[0].mxu0
    %393 = vmatprep.mubr.bf16.mxu0 0
    %394 = vmatmul.mubr.bf16.gmra.mrb[0].mxu0 %v254
    %v395 = vpop.f32.mrb[0].mxu0
    %v396 = vadd.f32 %v122, %v395
    %v397 = vpop.f32.mrb[0].mxu0
    %v398 = vpop.f32.mrb[0].mxu0
    %v399 = vadd.f32 %v122, %v398
    %v400 = vpop.f32.mrb[0].mxu0
    %401 = vmatprep.mubr.bf16.mxu0 0
    %402 = vmatmul.mubr.bf16.gmra.mrb[0].mxu0 %v257
    %v403 = vpop.f32.mrb[0].mxu0
    %v404 = vadd.f32 %v122, %v403
    %v405 = vpop.f32.mrb[0].mxu0
    %v406 = vpop.f32.mrb[0].mxu0
    %v407 = vadd.f32 %v122, %v406
    %v408 = vpop.f32.mrb[0].mxu0
    %409 = vmatprep.mubr.bf16.mxu0 0
    %410 = vmatmul.mubr.bf16.gmra.mrb[0].mxu0 %v260
    %v411 = vpop.f32.mrb[0].mxu0
    %v412 = vadd.f32 %v122, %v411
    %v413 = vpop.f32.mrb[0].mxu0
    %v414 = vpop.f32.mrb[0].mxu0
    %v415 = vadd.f32 %v122, %v414
    %v416 = vpop.f32.mrb[0].mxu0
    %417 = vmatprep.mubr.bf16.mxu0 0
    %418 = vmatmul.mubr.bf16.gmra.mrb[0].mxu0 %v263
    %v419 = vpop.f32.mrb[0].mxu0
    %v420 = vadd.f32 %v122, %v419
    %v421 = vpop.f32.mrb[0].mxu0
    %v422 = vpop.f32.mrb[0].mxu0
    %v423 = vadd.f32 %v122, %v422
    %v424 = vpop.f32.mrb[0].mxu0
    %425 = vdwg.mxu0
    %v426 = vmax.f32 %v300, 0.0
    %v427 = vmax.f32 %v303, 0.0
    %v428 = vmax.f32 %v308, 0.0
    %v429 = vmax.f32 %v311, 0.0
    %v430 = vmax.f32 %v316, 0.0
    %v431 = vmax.f32 %v319, 0.0
    %v432 = vmax.f32 %v324, 0.0
    %v433 = vmax.f32 %v327, 0.0
    %v434 = vmax.f32 %v332, 0.0
    %v435 = vmax.f32 %v335, 0.0
    %v436 = vmax.f32 %v340, 0.0
    %v437 = vmax.f32 %v343, 0.0
    %v438 = vmax.f32 %v348, 0.0
    %v439 = vmax.f32 %v351, 0.0
    %v440 = vmax.f32 %v356, 0.0
    %v441 = vmax.f32 %v359, 0.0
    %v442 = vmax.f32 %v364, 0.0
    %v443 = vmax.f32 %v367, 0.0
    %v444 = vmax.f32 %v372, 0.0
    %v445 = vmax.f32 %v375, 0.0
    %v446 = vmax.f32 %v380, 0.0
    %v447 = vmax.f32 %v383, 0.0
    %v448 = vmax.f32 %v388, 0.0
    %v449 = vmax.f32 %v391, 0.0
    %v450 = vmax.f32 %v396, 0.0
    %v451 = vmax.f32 %v399, 0.0
    %v452 = vmax.f32 %v404, 0.0
    %v453 = vmax.f32 %v407, 0.0
    %v454 = vmax.f32 %v412, 0.0
    %v455 = vmax.f32 %v415, 0.0
    %v456 = vmax.f32 %v420, 0.0
    %v457 = vmax.f32 %v423, 0.0
    %458 = vst [vmem:[#allocation2] sm:$0xff] 0
    %459 = vst [vmem:[#allocation2 + $0x8] sm:$0xff] 0
    %s460 = scalar_lea.vmem [#allocation2], 144
    %461 = vst [vmem:[%s460] sm:$0xff] 0
    %462 = vst [vmem:[%s460 + $0x8] sm:$0xff] 0
    %v463 = vpack.c.bf16 %v427, %v426
    %v464 = vpack.c.bf16 %v429, %v428
    %v465 = vpack.c.bf16 %v431, %v430
    %v466 = vpack.c.bf16 %v433, %v432
    %v467 = vpack.c.bf16 %v435, %v434
    %v468 = vpack.c.bf16 %v437, %v436
    %v469 = vpack.c.bf16 %v439, %v438
    %v470 = vpack.c.bf16 %v441, %v440
    %v471 = vpack.c.bf16 %v443, %v442
    %v472 = vpack.c.bf16 %v445, %v444
    %v473 = vpack.c.bf16 %v447, %v446
    %v474 = vpack.c.bf16 %v449, %v448
    %v475 = vpack.c.bf16 %v451, %v450
    %v476 = vpack.c.bf16 %v453, %v452
    %v477 = vpack.c.bf16 %v455, %v454
    %v478 = vpack.c.bf16 %v457, %v456
    %s479 = scalar_lea.vmem [#allocation2], 16
    %480 = vst [vmem:[%s479] sm:$0xff] %v463
    %481 = vst [vmem:[%s479 + $0x8] sm:$0xff] %v464
    %482 = vst [vmem:[%s479 + $0x10] sm:$0xff] %v465
    %483 = vst [vmem:[%s479 + $0x18] sm:$0xff] %v466
    %484 = vst [vmem:[%s479 + $0x20] sm:$0xff] %v467
    %485 = vst [vmem:[%s479 + $0x28] sm:$0xff] %v468
    %486 = vst [vmem:[%s479 + $0x30] sm:$0xff] %v469
    %487 = vst [vmem:[%s479 + $0x38] sm:$0xff] %v470
    %488 = vst [vmem:[%s479 + $0x40] sm:$0xff] %v471
    %489 = vst [vmem:[%s479 + $0x48] sm:$0xff] %v472
    %490 = vst [vmem:[%s479 + $0x50] sm:$0xff] %v473
    %491 = vst [vmem:[%s479 + $0x58] sm:$0xff] %v474
    %492 = vst [vmem:[%s479 + $0x60] sm:$0xff] %v475
    %493 = vst [vmem:[%s479 + $0x68] sm:$0xff] %v476
    %494 = vst [vmem:[%s479 + $0x70] sm:$0xff] %v477
    %495 = vst [vmem:[%s479 + $0x78] sm:$0xff] %v478
    %v496 = vld [vmem:[#allocation2] sm:$0xff]
    %v497 = vld [vmem:[#allocation2 + $0x8] sm:$0xff]
    %v498 = vld [vmem:[#allocation2 + $0x10] sm:$0xff]
    %v499 = vld [vmem:[#allocation2 + $0x18] sm:$0xff]
    %v500 = vld [vmem:[#allocation2 + $0x20] sm:$0xff]
    %v501 = vld [vmem:[#allocation2 + $0x28] sm:$0xff]
    %v502 = vld [vmem:[#allocation2 + $0x30] sm:$0xff]
    %v503 = vld [vmem:[#allocation2 + $0x38] sm:$0xff]
    %v504 = vld [vmem:[#allocation2 + $0x40] sm:$0xff]
    %v505 = vld [vmem:[#allocation2 + $0x48] sm:$0xff]
    %v506 = vld [vmem:[#allocation2 + $0x50] sm:$0xff]
    %v507 = vld [vmem:[#allocation2 + $0x58] sm:$0xff]
    %v508 = vld [vmem:[#allocation2 + $0x60] sm:$0xff]
    %v509 = vld [vmem:[#allocation2 + $0x68] sm:$0xff]
    %v510 = vld [vmem:[#allocation2 + $0x70] sm:$0xff]
    %v511 = vld [vmem:[#allocation2 + $0x78] sm:$0xff]
    %v512 = vld [vmem:[#allocation7] sm:$0xff]
    %v513 = vld [vmem:[#allocation7 + $0x8] sm:$0xff]
    %v514 = vld [vmem:[#allocation7 + $0x10] sm:$0xff]
    %v515 = vld [vmem:[#allocation7 + $0x18] sm:$0xff]
    %v516 = vld [vmem:[#allocation7 + $0x20] sm:$0xff]
    %v517 = vld [vmem:[#allocation7 + $0x28] sm:$0xff]
    %v518 = vld [vmem:[#allocation7 + $0x30] sm:$0xff]
    %v519 = vld [vmem:[#allocation7 + $0x38] sm:$0xff]
    %v520 = vld [vmem:[#allocation7 + $0x40] sm:$0xff]
    %v521 = vld [vmem:[#allocation7 + $0x48] sm:$0xff]
    %v522 = vld [vmem:[#allocation7 + $0x50] sm:$0xff]
    %v523 = vld [vmem:[#allocation7 + $0x58] sm:$0xff]
    %v524 = vld [vmem:[#allocation7 + $0x60] sm:$0xff]
    %v525 = vld [vmem:[#allocation7 + $0x68] sm:$0xff]
    %v526 = vld [vmem:[#allocation7 + $0x70] sm:$0xff]
    %v527 = vld [vmem:[#allocation7 + $0x78] sm:$0xff]
    %s528 = scalar_lea.vmem [#allocation2], 8
    %v529 = vld [vmem:[%s528] sm:$0xff]
    %v530 = vld [vmem:[%s528 + $0x8] sm:$0xff]
    %v531 = vld [vmem:[%s528 + $0x10] sm:$0xff]
    %v532 = vld [vmem:[%s528 + $0x18] sm:$0xff]
    %v533 = vld [vmem:[%s528 + $0x20] sm:$0xff]
    %v534 = vld [vmem:[%s528 + $0x28] sm:$0xff]
    %v535 = vld [vmem:[%s528 + $0x30] sm:$0xff]
    %v536 = vld [vmem:[%s528 + $0x38] sm:$0xff]
    %v537 = vld [vmem:[%s528 + $0x40] sm:$0xff]
    %v538 = vld [vmem:[%s528 + $0x48] sm:$0xff]
    %v539 = vld [vmem:[%s528 + $0x50] sm:$0xff]
    %v540 = vld [vmem:[%s528 + $0x58] sm:$0xff]
    %v541 = vld [vmem:[%s528 + $0x60] sm:$0xff]
    %v542 = vld [vmem:[%s528 + $0x68] sm:$0xff]
    %v543 = vld [vmem:[%s528 + $0x70] sm:$0xff]
    %v544 = vld [vmem:[%s528 + $0x78] sm:$0xff]
    %v545 = vld [vmem:[#allocation7 + $0x80] sm:$0xff]
    %v546 = vld [vmem:[#allocation7 + $0x88] sm:$0xff]
    %v547 = vld [vmem:[#allocation7 + $0x90] sm:$0xff]
    %v548 = vld [vmem:[#allocation7 + $0x98] sm:$0xff]
    %v549 = vld [vmem:[#allocation7 + $0xa0] sm:$0xff]
    %v550 = vld [vmem:[#allocation7 + $0xa8] sm:$0xff]
    %v551 = vld [vmem:[#allocation7 + $0xb0] sm:$0xff]
    %v552 = vld [vmem:[#allocation7 + $0xb8] sm:$0xff]
    %v553 = vld [vmem:[#allocation7 + $0xc0] sm:$0xff]
    %v554 = vld [vmem:[#allocation7 + $0xc8] sm:$0xff]
    %v555 = vld [vmem:[#allocation7 + $0xd0] sm:$0xff]
    %v556 = vld [vmem:[#allocation7 + $0xd8] sm:$0xff]
    %v557 = vld [vmem:[#allocation7 + $0xe0] sm:$0xff]
    %v558 = vld [vmem:[#allocation7 + $0xe8] sm:$0xff]
    %v559 = vld [vmem:[#allocation7 + $0xf0] sm:$0xff]
    %v560 = vld [vmem:[#allocation7 + $0xf8] sm:$0xff]
    %v577 = vunpack.c.l.b16 %v545
    %v578 = vunpack.c.h.b16 %v545
    %v579 = vunpack.c.l.b16 %v546
    %v580 = vunpack.c.h.b16 %v546
    %v581 = vunpack.c.l.b16 %v547
    %v582 = vunpack.c.h.b16 %v547
    %v583 = vunpack.c.l.b16 %v548
    %v584 = vunpack.c.h.b16 %v548
    %v585 = vunpack.c.l.b16 %v549
    %v586 = vunpack.c.h.b16 %v549
    %v587 = vunpack.c.l.b16 %v550
    %v588 = vunpack.c.h.b16 %v550
    %v589 = vunpack.c.l.b16 %v551
    %v590 = vunpack.c.h.b16 %v551
    %v591 = vunpack.c.l.b16 %v552
    %v592 = vunpack.c.h.b16 %v552
    %v593 = vunpack.c.l.b16 %v553
    %v594 = vunpack.c.h.b16 %v553
    %v595 = vunpack.c.l.b16 %v554
    %v596 = vunpack.c.h.b16 %v554
    %v597 = vunpack.c.l.b16 %v555
    %v598 = vunpack.c.h.b16 %v555
    %v599 = vunpack.c.l.b16 %v556
    %v600 = vunpack.c.h.b16 %v556
    %v601 = vunpack.c.l.b16 %v557
    %v602 = vunpack.c.h.b16 %v557
    %v603 = vunpack.c.l.b16 %v558
    %v604 = vunpack.c.h.b16 %v558
    %v605 = vunpack.c.l.b16 %v559
    %v606 = vunpack.c.h.b16 %v559
    %v607 = vunpack.c.l.b16 %v560
    %v608 = vunpack.c.h.b16 %v560
    %v609 = vpack.c.b16 %v579, %v577
    %v610 = vpack.c.b16 %v580, %v578
    %v611 = vpack.c.b16 %v583, %v581
    %v612 = vpack.c.b16 %v584, %v582
    %v613 = vpack.c.b16 %v587, %v585
    %v614 = vpack.c.b16 %v588, %v586
    %v615 = vpack.c.b16 %v591, %v589
    %v616 = vpack.c.b16 %v592, %v590
    %v617 = vpack.c.b16 %v595, %v593
    %v618 = vpack.c.b16 %v596, %v594
    %v619 = vpack.c.b16 %v599, %v597
    %v620 = vpack.c.b16 %v600, %v598
    %v621 = vpack.c.b16 %v603, %v601
    %v622 = vpack.c.b16 %v604, %v602
    %v623 = vpack.c.b16 %v607, %v605
    %v624 = vpack.c.b16 %v608, %v606
    %641 = vmatprep.subr.bf16.mxu0 %v610
    %642 = vmatpush1.bf16.msra.mxu0 %v609
    %643 = vmatprep.subr.bf16.mxu0 %v612
    %644 = vmatpush1.bf16.msra.mxu0 %v611
    %645 = vmatprep.subr.bf16.mxu0 %v614
    %646 = vmatpush1.bf16.msra.mxu0 %v613
    %647 = vmatprep.subr.bf16.mxu0 %v616
    %648 = vmatpush1.bf16.msra.mxu0 %v615
    %649 = vmatprep.subr.bf16.mxu0 %v618
    %650 = vmatpush1.bf16.msra.mxu0 %v617
    %651 = vmatprep.subr.bf16.mxu0 %v620
    %652 = vmatpush1.bf16.msra.mxu0 %v619
    %653 = vmatprep.subr.bf16.mxu0 %v622
    %654 = vmatpush1.bf16.msra.mxu0 %v621
    %655 = vmatprep.subr.bf16.mxu0 %v624
    %656 = vmatpush1.bf16.msra.mxu0 %v623
    %657 = vmatprep.subr.bf16.mxu0 0
    %658 = vmatpush1.bf16.msra.mxu0 0
    %659 = vmatprep.subr.bf16.mxu0 0
    %660 = vmatpush1.bf16.msra.mxu0 0
    %661 = vmatprep.subr.bf16.mxu0 0
    %662 = vmatpush1.bf16.msra.mxu0 0
    %663 = vmatprep.subr.bf16.mxu0 0
    %664 = vmatpush1.bf16.msra.mxu0 0
    %665 = vmatprep.subr.bf16.mxu0 0
    %666 = vmatpush1.bf16.msra.mxu0 0
    %667 = vmatprep.subr.bf16.mxu0 0
    %668 = vmatpush1.bf16.msra.mxu0 0
    %669 = vmatprep.subr.bf16.mxu0 0
    %670 = vmatpush1.bf16.msra.mxu0 0
    %671 = vmatprep.subr.bf16.mxu0 0
    %672 = vmatpush1.bf16.msra.mxu0 0
    %673 = vmatprep.mubr.bf16.mxu0 0
    %674 = vmatmul.mubr.bf16.gmra.mrb[0].mxu0 %v529
    %v675 = vpop.f32.mrb[0].mxu0
    %v676 = vadd.f32 0.0, %v675
    %v677 = vpop.f32.mrb[0].mxu0
    %v678 = vadd.f32 0.0, %v677
    %v679 = vpop.f32.mrb[0].mxu0
    %v680 = vadd.f32 0.0, %v679
    %v681 = vpop.f32.mrb[0].mxu0
    %v682 = vadd.f32 0.0, %v681
    %683 = vmatprep.mubr.bf16.mxu0 0
    %684 = vmatmul.mubr.bf16.gmra.mrb[0].mxu0 %v530
    %v685 = vpop.f32.mrb[0].mxu0
    %v686 = vadd.f32 0.0, %v685
    %v687 = vpop.f32.mrb[0].mxu0
    %v688 = vadd.f32 0.0, %v687
    %v689 = vpop.f32.mrb[0].mxu0
    %v690 = vadd.f32 0.0, %v689
    %v691 = vpop.f32.mrb[0].mxu0
    %v692 = vadd.f32 0.0, %v691
    %693 = vmatprep.mubr.bf16.mxu0 0
    %694 = vmatmul.mubr.bf16.gmra.mrb[0].mxu0 %v531
    %v695 = vpop.f32.mrb[0].mxu0
    %v696 = vadd.f32 0.0, %v695
    %v697 = vpop.f32.mrb[0].mxu0
    %v698 = vadd.f32 0.0, %v697
    %v699 = vpop.f32.mrb[0].mxu0
    %v700 = vadd.f32 0.0, %v699
    %v701 = vpop.f32.mrb[0].mxu0
    %v702 = vadd.f32 0.0, %v701
    %703 = vmatprep.mubr.bf16.mxu0 0
    %704 = vmatmul.mubr.bf16.gmra.mrb[0].mxu0 %v532
    %v705 = vpop.f32.mrb[0].mxu0
    %v706 = vadd.f32 0.0, %v705
    %v707 = vpop.f32.mrb[0].mxu0
    %v708 = vadd.f32 0.0, %v707
    %v709 = vpop.f32.mrb[0].mxu0
    %v710 = vadd.f32 0.0, %v709
    %v711 = vpop.f32.mrb[0].mxu0
    %v712 = vadd.f32 0.0, %v711
    %713 = vmatprep.mubr.bf16.mxu0 0
    %714 = vmatmul.mubr.bf16.gmra.mrb[0].mxu0 %v533
    %v715 = vpop.f32.mrb[0].mxu0
    %v716 = vadd.f32 0.0, %v715
    %v717 = vpop.f32.mrb[0].mxu0
    %v718 = vadd.f32 0.0, %v717
    %v719 = vpop.f32.mrb[0].mxu0
    %v720 = vadd.f32 0.0, %v719
    %v721 = vpop.f32.mrb[0].mxu0
    %v722 = vadd.f32 0.0, %v721
    %723 = vmatprep.mubr.bf16.mxu0 0
    %724 = vmatmul.mubr.bf16.gmra.mrb[0].mxu0 %v534
    %v725 = vpop.f32.mrb[0].mxu0
    %v726 = vadd.f32 0.0, %v725
    %v727 = vpop.f32.mrb[0].mxu0
    %v728 = vadd.f32 0.0, %v727
    %v729 = vpop.f32.mrb[0].mxu0
    %v730 = vadd.f32 0.0, %v729
    %v731 = vpop.f32.mrb[0].mxu0
    %v732 = vadd.f32 0.0, %v731
    %733 = vmatprep.mubr.bf16.mxu0 0
    %734 = vmatmul.mubr.bf16.gmra.mrb[0].mxu0 %v535
    %v735 = vpop.f32.mrb[0].mxu0
    %v736 = vadd.f32 0.0, %v735
    %v737 = vpop.f32.mrb[0].mxu0
    %v738 = vadd.f32 0.0, %v737
    %v739 = vpop.f32.mrb[0].mxu0
    %v740 = vadd.f32 0.0, %v739
    %v741 = vpop.f32.mrb[0].mxu0
    %v742 = vadd.f32 0.0, %v741
    %743 = vmatprep.mubr.bf16.mxu0 0
    %744 = vmatmul.mubr.bf16.gmra.mrb[0].mxu0 %v536
    %v745 = vpop.f32.mrb[0].mxu0
    %v746 = vadd.f32 0.0, %v745
    %v747 = vpop.f32.mrb[0].mxu0
    %v748 = vadd.f32 0.0, %v747
    %v749 = vpop.f32.mrb[0].mxu0
    %v750 = vadd.f32 0.0, %v749
    %v751 = vpop.f32.mrb[0].mxu0
    %v752 = vadd.f32 0.0, %v751
    %753 = vmatprep.mubr.bf16.mxu0 0
    %754 = vmatmul.mubr.bf16.gmra.mrb[0].mxu0 %v537
    %v755 = vpop.f32.mrb[0].mxu0
    %v756 = vadd.f32 0.0, %v755
    %v757 = vpop.f32.mrb[0].mxu0
    %v758 = vadd.f32 0.0, %v757
    %v759 = vpop.f32.mrb[0].mxu0
    %v760 = vadd.f32 0.0, %v759
    %v761 = vpop.f32.mrb[0].mxu0
    %v762 = vadd.f32 0.0, %v761
    %763 = vmatprep.mubr.bf16.mxu0 0
    %764 = vmatmul.mubr.bf16.gmra.mrb[0].mxu0 %v538
    %v765 = vpop.f32.mrb[0].mxu0
    %v766 = vadd.f32 0.0, %v765
    %v767 = vpop.f32.mrb[0].mxu0
    %v768 = vadd.f32 0.0, %v767
    %v769 = vpop.f32.mrb[0].mxu0
    %v770 = vadd.f32 0.0, %v769
    %v771 = vpop.f32.mrb[0].mxu0
    %v772 = vadd.f32 0.0, %v771
    %773 = vmatprep.mubr.bf16.mxu0 0
    %774 = vmatmul.mubr.bf16.gmra.mrb[0].mxu0 %v539
    %v775 = vpop.f32.mrb[0].mxu0
    %v776 = vadd.f32 0.0, %v775
    %v777 = vpop.f32.mrb[0].mxu0
    %v778 = vadd.f32 0.0, %v777
    %v779 = vpop.f32.mrb[0].mxu0
    %v780 = vadd.f32 0.0, %v779
    %v781 = vpop.f32.mrb[0].mxu0
    %v782 = vadd.f32 0.0, %v781
    %783 = vmatprep.mubr.bf16.mxu0 0
    %784 = vmatmul.mubr.bf16.gmra.mrb[0].mxu0 %v540
    %v785 = vpop.f32.mrb[0].mxu0
    %v786 = vadd.f32 0.0, %v785
    %v787 = vpop.f32.mrb[0].mxu0
    %v788 = vadd.f32 0.0, %v787
    %v789 = vpop.f32.mrb[0].mxu0
    %v790 = vadd.f32 0.0, %v789
    %v791 = vpop.f32.mrb[0].mxu0
    %v792 = vadd.f32 0.0, %v791
    %793 = vmatprep.mubr.bf16.mxu0 0
    %794 = vmatmul.mubr.bf16.gmra.mrb[0].mxu0 %v541
    %v795 = vpop.f32.mrb[0].mxu0
    %v796 = vadd.f32 0.0, %v795
    %v797 = vpop.f32.mrb[0].mxu0
    %v798 = vadd.f32 0.0, %v797
    %v799 = vpop.f32.mrb[0].mxu0
    %v800 = vadd.f32 0.0, %v799
    %v801 = vpop.f32.mrb[0].mxu0
    %v802 = vadd.f32 0.0, %v801
    %803 = vmatprep.mubr.bf16.mxu0 0
    %804 = vmatmul.mubr.bf16.gmra.mrb[0].mxu0 %v542
    %v805 = vpop.f32.mrb[0].mxu0
    %v806 = vadd.f32 0.0, %v805
    %v807 = vpop.f32.mrb[0].mxu0
    %v808 = vadd.f32 0.0, %v807
    %v809 = vpop.f32.mrb[0].mxu0
    %v810 = vadd.f32 0.0, %v809
    %v811 = vpop.f32.mrb[0].mxu0
    %v812 = vadd.f32 0.0, %v811
    %813 = vmatprep.mubr.bf16.mxu0 0
    %814 = vmatmul.mubr.bf16.gmra.mrb[0].mxu0 %v543
    %v815 = vpop.f32.mrb[0].mxu0
    %v816 = vadd.f32 0.0, %v815
    %v817 = vpop.f32.mrb[0].mxu0
    %v818 = vadd.f32 0.0, %v817
    %v819 = vpop.f32.mrb[0].mxu0
    %v820 = vadd.f32 0.0, %v819
    %v821 = vpop.f32.mrb[0].mxu0
    %v822 = vadd.f32 0.0, %v821
    %823 = vmatprep.mubr.bf16.mxu0 0
    %824 = vmatmul.mubr.bf16.gmra.mrb[0].mxu0 %v544
    %v825 = vpop.f32.mrb[0].mxu0
    %v826 = vadd.f32 0.0, %v825
    %v827 = vpop.f32.mrb[0].mxu0
    %v828 = vadd.f32 0.0, %v827
    %v829 = vpop.f32.mrb[0].mxu0
    %v830 = vadd.f32 0.0, %v829
    %v831 = vpop.f32.mrb[0].mxu0
    %v832 = vadd.f32 0.0, %v831
    %833 = vdwg.mxu0
    %v850 = vunpack.c.l.b16 %v512
    %v851 = vunpack.c.h.b16 %v512
    %v852 = vunpack.c.l.b16 %v513
    %v853 = vunpack.c.h.b16 %v513
    %v854 = vunpack.c.l.b16 %v514
    %v855 = vunpack.c.h.b16 %v514
    %v856 = vunpack.c.l.b16 %v515
    %v857 = vunpack.c.h.b16 %v515
    %v858 = vunpack.c.l.b16 %v516
    %v859 = vunpack.c.h.b16 %v516
    %v860 = vunpack.c.l.b16 %v517
    %v861 = vunpack.c.h.b16 %v517
    %v862 = vunpack.c.l.b16 %v518
    %v863 = vunpack.c.h.b16 %v518
    %v864 = vunpack.c.l.b16 %v519
    %v865 = vunpack.c.h.b16 %v519
    %v866 = vunpack.c.l.b16 %v520
    %v867 = vunpack.c.h.b16 %v520
    %v868 = vunpack.c.l.b16 %v521
    %v869 = vunpack.c.h.b16 %v521
    %v870 = vunpack.c.l.b16 %v522
    %v871 = vunpack.c.h.b16 %v522
    %v872 = vunpack.c.l.b16 %v523
    %v873 = vunpack.c.h.b16 %v523
    %v874 = vunpack.c.l.b16 %v524
    %v875 = vunpack.c.h.b16 %v524
    %v876 = vunpack.c.l.b16 %v525
    %v877 = vunpack.c.h.b16 %v525
    %v878 = vunpack.c.l.b16 %v526
    %v879 = vunpack.c.h.b16 %v526
    %v880 = vunpack.c.l.b16 %v527
    %v881 = vunpack.c.h.b16 %v527
    %v882 = vpack.c.b16 %v852, %v850
    %v883 = vpack.c.b16 %v853, %v851
    %v884 = vpack.c.b16 %v856, %v854
    %v885 = vpack.c.b16 %v857, %v855
    %v886 = vpack.c.b16 %v860, %v858
    %v887 = vpack.c.b16 %v861, %v859
    %v888 = vpack.c.b16 %v864, %v862
    %v889 = vpack.c.b16 %v865, %v863
    %v890 = vpack.c.b16 %v868, %v866
    %v891 = vpack.c.b16 %v869, %v867
    %v892 = vpack.c.b16 %v872, %v870
    %v893 = vpack.c.b16 %v873, %v871
    %v894 = vpack.c.b16 %v876, %v874
    %v895 = vpack.c.b16 %v877, %v875
    %v896 = vpack.c.b16 %v880, %v878
    %v897 = vpack.c.b16 %v881, %v879
    %914 = vmatprep.subr.bf16.mxu0 %v883
    %915 = vmatpush1.bf16.msra.mxu0 %v882
    %916 = vmatprep.subr.bf16.mxu0 %v885
    %917 = vmatpush1.bf16.msra.mxu0 %v884
    %918 = vmatprep.subr.bf16.mxu0 %v887
    %919 = vmatpush1.bf16.msra.mxu0 %v886
    %920 = vmatprep.subr.bf16.mxu0 %v889
    %921 = vmatpush1.bf16.msra.mxu0 %v888
    %922 = vmatprep.subr.bf16.mxu0 %v891
    %923 = vmatpush1.bf16.msra.mxu0 %v890
    %924 = vmatprep.subr.bf16.mxu0 %v893
    %925 = vmatpush1.bf16.msra.mxu0 %v892
    %926 = vmatprep.subr.bf16.mxu0 %v895
    %927 = vmatpush1.bf16.msra.mxu0 %v894
    %928 = vmatprep.subr.bf16.mxu0 %v897
    %929 = vmatpush1.bf16.msra.mxu0 %v896
    %930 = vmatprep.subr.bf16.mxu0 0
    %931 = vmatpush1.bf16.msra.mxu0 0
    %932 = vmatprep.subr.bf16.mxu0 0
    %933 = vmatpush1.bf16.msra.mxu0 0
    %934 = vmatprep.subr.bf16.mxu0 0
    %935 = vmatpush1.bf16.msra.mxu0 0
    %936 = vmatprep.subr.bf16.mxu0 0
    %937 = vmatpush1.bf16.msra.mxu0 0
    %938 = vmatprep.subr.bf16.mxu0 0
    %939 = vmatpush1.bf16.msra.mxu0 0
    %940 = vmatprep.subr.bf16.mxu0 0
    %941 = vmatpush1.bf16.msra.mxu0 0
    %942 = vmatprep.subr.bf16.mxu0 0
    %943 = vmatpush1.bf16.msra.mxu0 0
    %944 = vmatprep.subr.bf16.mxu0 0
    %945 = vmatpush1.bf16.msra.mxu0 0
    %946 = vmatprep.mubr.bf16.mxu0 0
    %947 = vmatmul.mubr.bf16.gmra.mrb[0].mxu0 %v496
    %v948 = vpop.f32.mrb[0].mxu0
    %v949 = vadd.f32 %v676, %v948
    %v950 = vpop.f32.mrb[0].mxu0
    %v951 = vadd.f32 %v678, %v950
    %v952 = vpop.f32.mrb[0].mxu0
    %v953 = vadd.f32 %v680, %v952
    %v954 = vpop.f32.mrb[0].mxu0
    %v955 = vadd.f32 %v682, %v954
    %956 = vmatprep.mubr.bf16.mxu0 0
    %957 = vmatmul.mubr.bf16.gmra.mrb[0].mxu0 %v497
    %v958 = vpop.f32.mrb[0].mxu0
    %v959 = vadd.f32 %v686, %v958
    %v960 = vpop.f32.mrb[0].mxu0
    %v961 = vadd.f32 %v688, %v960
    %v962 = vpop.f32.mrb[0].mxu0
    %v963 = vadd.f32 %v690, %v962
    %v964 = vpop.f32.mrb[0].mxu0
    %v965 = vadd.f32 %v692, %v964
    %966 = vmatprep.mubr.bf16.mxu0 0
    %967 = vmatmul.mubr.bf16.gmra.mrb[0].mxu0 %v498
    %v968 = vpop.f32.mrb[0].mxu0
    %v969 = vadd.f32 %v696, %v968
    %v970 = vpop.f32.mrb[0].mxu0
    %v971 = vadd.f32 %v698, %v970
    %v972 = vpop.f32.mrb[0].mxu0
    %v973 = vadd.f32 %v700, %v972
    %v974 = vpop.f32.mrb[0].mxu0
    %v975 = vadd.f32 %v702, %v974
    %976 = vmatprep.mubr.bf16.mxu0 0
    %977 = vmatmul.mubr.bf16.gmra.mrb[0].mxu0 %v499
    %v978 = vpop.f32.mrb[0].mxu0
    %v979 = vadd.f32 %v706, %v978
    %v980 = vpop.f32.mrb[0].mxu0
    %v981 = vadd.f32 %v708, %v980
    %v982 = vpop.f32.mrb[0].mxu0
    %v983 = vadd.f32 %v710, %v982
    %v984 = vpop.f32.mrb[0].mxu0
    %v985 = vadd.f32 %v712, %v984
    %986 = vmatprep.mubr.bf16.mxu0 0
    %987 = vmatmul.mubr.bf16.gmra.mrb[0].mxu0 %v500
    %v988 = vpop.f32.mrb[0].mxu0
    %v989 = vadd.f32 %v716, %v988
    %v990 = vpop.f32.mrb[0].mxu0
    %v991 = vadd.f32 %v718, %v990
    %v992 = vpop.f32.mrb[0].mxu0
    %v993 = vadd.f32 %v720, %v992
    %v994 = vpop.f32.mrb[0].mxu0
    %v995 = vadd.f32 %v722, %v994
    %996 = vmatprep.mubr.bf16.mxu0 0
    %997 = vmatmul.mubr.bf16.gmra.mrb[0].mxu0 %v501
    %v998 = vpop.f32.mrb[0].mxu0
    %v999 = vadd.f32 %v726, %v998
    %v1000 = vpop.f32.mrb[0].mxu0
    %v1001 = vadd.f32 %v728, %v1000
    %v1002 = vpop.f32.mrb[0].mxu0
    %v1003 = vadd.f32 %v730, %v1002
    %v1004 = vpop.f32.mrb[0].mxu0
    %v1005 = vadd.f32 %v732, %v1004
    %1006 = vmatprep.mubr.bf16.mxu0 0
    %1007 = vmatmul.mubr.bf16.gmra.mrb[0].mxu0 %v502
    %v1008 = vpop.f32.mrb[0].mxu0
    %v1009 = vadd.f32 %v736, %v1008
    %v1010 = vpop.f32.mrb[0].mxu0
    %v1011 = vadd.f32 %v738, %v1010
    %v1012 = vpop.f32.mrb[0].mxu0
    %v1013 = vadd.f32 %v740, %v1012
    %v1014 = vpop.f32.mrb[0].mxu0
    %v1015 = vadd.f32 %v742, %v1014
    %1016 = vmatprep.mubr.bf16.mxu0 0
    %1017 = vmatmul.mubr.bf16.gmra.mrb[0].mxu0 %v503
    %v1018 = vpop.f32.mrb[0].mxu0
    %v1019 = vadd.f32 %v746, %v1018
    %v1020 = vpop.f32.mrb[0].mxu0
    %v1021 = vadd.f32 %v748, %v1020
    %v1022 = vpop.f32.mrb[0].mxu0
    %v1023 = vadd.f32 %v750, %v1022
    %v1024 = vpop.f32.mrb[0].mxu0
    %v1025 = vadd.f32 %v752, %v1024
    %1026 = vmatprep.mubr.bf16.mxu0 0
    %1027 = vmatmul.mubr.bf16.gmra.mrb[0].mxu0 %v504
    %v1028 = vpop.f32.mrb[0].mxu0
    %v1029 = vadd.f32 %v756, %v1028
    %v1030 = vpop.f32.mrb[0].mxu0
    %v1031 = vadd.f32 %v758, %v1030
    %v1032 = vpop.f32.mrb[0].mxu0
    %v1033 = vadd.f32 %v760, %v1032
    %v1034 = vpop.f32.mrb[0].mxu0
    %v1035 = vadd.f32 %v762, %v1034
    %1036 = vmatprep.mubr.bf16.mxu0 0
    %1037 = vmatmul.mubr.bf16.gmra.mrb[0].mxu0 %v505
    %v1038 = vpop.f32.mrb[0].mxu0
    %v1039 = vadd.f32 %v766, %v1038
    %v1040 = vpop.f32.mrb[0].mxu0
    %v1041 = vadd.f32 %v768, %v1040
    %v1042 = vpop.f32.mrb[0].mxu0
    %v1043 = vadd.f32 %v770, %v1042
    %v1044 = vpop.f32.mrb[0].mxu0
    %v1045 = vadd.f32 %v772, %v1044
    %1046 = vmatprep.mubr.bf16.mxu0 0
    %1047 = vmatmul.mubr.bf16.gmra.mrb[0].mxu0 %v506
    %v1048 = vpop.f32.mrb[0].mxu0
    %v1049 = vadd.f32 %v776, %v1048
    %v1050 = vpop.f32.mrb[0].mxu0
    %v1051 = vadd.f32 %v778, %v1050
    %v1052 = vpop.f32.mrb[0].mxu0
    %v1053 = vadd.f32 %v780, %v1052
    %v1054 = vpop.f32.mrb[0].mxu0
    %v1055 = vadd.f32 %v782, %v1054
    %1056 = vmatprep.mubr.bf16.mxu0 0
    %1057 = vmatmul.mubr.bf16.gmra.mrb[0].mxu0 %v507
    %v1058 = vpop.f32.mrb[0].mxu0
    %v1059 = vadd.f32 %v786, %v1058
    %v1060 = vpop.f32.mrb[0].mxu0
    %v1061 = vadd.f32 %v788, %v1060
    %v1062 = vpop.f32.mrb[0].mxu0
    %v1063 = vadd.f32 %v790, %v1062
    %v1064 = vpop.f32.mrb[0].mxu0
    %v1065 = vadd.f32 %v792, %v1064
    %1066 = vmatprep.mubr.bf16.mxu0 0
    %1067 = vmatmul.mubr.bf16.gmra.mrb[0].mxu0 %v508
    %v1068 = vpop.f32.mrb[0].mxu0
    %v1069 = vadd.f32 %v796, %v1068
    %v1070 = vpop.f32.mrb[0].mxu0
    %v1071 = vadd.f32 %v798, %v1070
    %v1072 = vpop.f32.mrb[0].mxu0
    %v1073 = vadd.f32 %v800, %v1072
    %v1074 = vpop.f32.mrb[0].mxu0
    %v1075 = vadd.f32 %v802, %v1074
    %1076 = vmatprep.mubr.bf16.mxu0 0
    %1077 = vmatmul.mubr.bf16.gmra.mrb[0].mxu0 %v509
    %v1078 = vpop.f32.mrb[0].mxu0
    %v1079 = vadd.f32 %v806, %v1078
    %v1080 = vpop.f32.mrb[0].mxu0
    %v1081 = vadd.f32 %v808, %v1080
    %v1082 = vpop.f32.mrb[0].mxu0
    %v1083 = vadd.f32 %v810, %v1082
    %v1084 = vpop.f32.mrb[0].mxu0
    %v1085 = vadd.f32 %v812, %v1084
    %1086 = vmatprep.mubr.bf16.mxu0 0
    %1087 = vmatmul.mubr.bf16.gmra.mrb[0].mxu0 %v510
    %v1088 = vpop.f32.mrb[0].mxu0
    %v1089 = vadd.f32 %v816, %v1088
    %v1090 = vpop.f32.mrb[0].mxu0
    %v1091 = vadd.f32 %v818, %v1090
    %v1092 = vpop.f32.mrb[0].mxu0
    %v1093 = vadd.f32 %v820, %v1092
    %v1094 = vpop.f32.mrb[0].mxu0
    %v1095 = vadd.f32 %v822, %v1094
    %1096 = vmatprep.mubr.bf16.mxu0 0
    %1097 = vmatmul.mubr.bf16.gmra.mrb[0].mxu0 %v511
    %v1098 = vpop.f32.mrb[0].mxu0
    %v1099 = vadd.f32 %v826, %v1098
    %v1100 = vpop.f32.mrb[0].mxu0
    %v1101 = vadd.f32 %v828, %v1100
    %v1102 = vpop.f32.mrb[0].mxu0
    %v1103 = vadd.f32 %v830, %v1102
    %v1104 = vpop.f32.mrb[0].mxu0
    %v1105 = vadd.f32 %v832, %v1104
    %1106 = vdwg.mxu0
    %v1107 = vld [vmem:[%s479] sm:$0xff]
    %v1108 = vld [vmem:[%s479 + $0x8] sm:$0xff]
    %v1109 = vld [vmem:[%s479 + $0x10] sm:$0xff]
    %v1110 = vld [vmem:[%s479 + $0x18] sm:$0xff]
    %v1111 = vld [vmem:[%s479 + $0x20] sm:$0xff]
    %v1112 = vld [vmem:[%s479 + $0x28] sm:$0xff]
    %v1113 = vld [vmem:[%s479 + $0x30] sm:$0xff]
    %v1114 = vld [vmem:[%s479 + $0x38] sm:$0xff]
    %v1115 = vld [vmem:[%s479 + $0x40] sm:$0xff]
    %v1116 = vld [vmem:[%s479 + $0x48] sm:$0xff]
    %v1117 = vld [vmem:[%s479 + $0x50] sm:$0xff]
    %v1118 = vld [vmem:[%s479 + $0x58] sm:$0xff]
    %v1119 = vld [vmem:[%s479 + $0x60] sm:$0xff]
    %v1120 = vld [vmem:[%s479 + $0x68] sm:$0xff]
    %v1121 = vld [vmem:[%s479 + $0x70] sm:$0xff]
    %v1122 = vld [vmem:[%s479 + $0x78] sm:$0xff]
    %v1123 = vld [vmem:[#allocation7 + $0x100] sm:$0xff]
    %v1124 = vld [vmem:[#allocation7 + $0x108] sm:$0xff]
    %v1125 = vld [vmem:[#allocation7 + $0x110] sm:$0xff]
    %v1126 = vld [vmem:[#allocation7 + $0x118] sm:$0xff]
    %v1127 = vld [vmem:[#allocation7 + $0x120] sm:$0xff]
    %v1128 = vld [vmem:[#allocation7 + $0x128] sm:$0xff]
    %v1129 = vld [vmem:[#allocation7 + $0x130] sm:$0xff]
    %v1130 = vld [vmem:[#allocation7 + $0x138] sm:$0xff]
    %v1131 = vld [vmem:[#allocation7 + $0x140] sm:$0xff]
    %v1132 = vld [vmem:[#allocation7 + $0x148] sm:$0xff]
    %v1133 = vld [vmem:[#allocation7 + $0x150] sm:$0xff]
    %v1134 = vld [vmem:[#allocation7 + $0x158] sm:$0xff]
    %v1135 = vld [vmem:[#allocation7 + $0x160] sm:$0xff]
    %v1136 = vld [vmem:[#allocation7 + $0x168] sm:$0xff]
    %v1137 = vld [vmem:[#allocation7 + $0x170] sm:$0xff]
    %v1138 = vld [vmem:[#allocation7 + $0x178] sm:$0xff]
    %v1155 = vunpack.c.l.b16 %v1123
    %v1156 = vunpack.c.h.b16 %v1123
    %v1157 = vunpack.c.l.b16 %v1124
    %v1158 = vunpack.c.h.b16 %v1124
    %v1159 = vunpack.c.l.b16 %v1125
    %v1160 = vunpack.c.h.b16 %v1125
    %v1161 = vunpack.c.l.b16 %v1126
    %v1162 = vunpack.c.h.b16 %v1126
    %v1163 = vunpack.c.l.b16 %v1127
    %v1164 = vunpack.c.h.b16 %v1127
    %v1165 = vunpack.c.l.b16 %v1128
    %v1166 = vunpack.c.h.b16 %v1128
    %v1167 = vunpack.c.l.b16 %v1129
    %v1168 = vunpack.c.h.b16 %v1129
    %v1169 = vunpack.c.l.b16 %v1130
    %v1170 = vunpack.c.h.b16 %v1130
    %v1171 = vunpack.c.l.b16 %v1131
    %v1172 = vunpack.c.h.b16 %v1131
    %v1173 = vunpack.c.l.b16 %v1132
    %v1174 = vunpack.c.h.b16 %v1132
    %v1175 = vunpack.c.l.b16 %v1133
    %v1176 = vunpack.c.h.b16 %v1133
    %v1177 = vunpack.c.l.b16 %v1134
    %v1178 = vunpack.c.h.b16 %v1134
    %v1179 = vunpack.c.l.b16 %v1135
    %v1180 = vunpack.c.h.b16 %v1135
    %v1181 = vunpack.c.l.b16 %v1136
    %v1182 = vunpack.c.h.b16 %v1136
    %v1183 = vunpack.c.l.b16 %v1137
    %v1184 = vunpack.c.h.b16 %v1137
    %v1185 = vunpack.c.l.b16 %v1138
    %v1186 = vunpack.c.h.b16 %v1138
    %v1187 = vpack.c.b16 %v1157, %v1155
    %v1188 = vpack.c.b16 %v1158, %v1156
    %v1189 = vpack.c.b16 %v1161, %v1159
    %v1190 = vpack.c.b16 %v1162, %v1160
    %v1191 = vpack.c.b16 %v1165, %v1163
    %v1192 = vpack.c.b16 %v1166, %v1164
    %v1193 = vpack.c.b16 %v1169, %v1167
    %v1194 = vpack.c.b16 %v1170, %v1168
    %v1195 = vpack.c.b16 %v1173, %v1171
    %v1196 = vpack.c.b16 %v1174, %v1172
    %v1197 = vpack.c.b16 %v1177, %v1175
    %v1198 = vpack.c.b16 %v1178, %v1176
    %v1199 = vpack.c.b16 %v1181, %v1179
    %v1200 = vpack.c.b16 %v1182, %v1180
    %v1201 = vpack.c.b16 %v1185, %v1183
    %v1202 = vpack.c.b16 %v1186, %v1184
    %1219 = vmatprep.subr.bf16.mxu0 %v1188
    %1220 = vmatpush1.bf16.msra.mxu0 %v1187
    %1221 = vmatprep.subr.bf16.mxu0 %v1190
    %1222 = vmatpush1.bf16.msra.mxu0 %v1189
    %1223 = vmatprep.subr.bf16.mxu0 %v1192
    %1224 = vmatpush1.bf16.msra.mxu0 %v1191
    %1225 = vmatprep.subr.bf16.mxu0 %v1194
    %1226 = vmatpush1.bf16.msra.mxu0 %v1193
    %1227 = vmatprep.subr.bf16.mxu0 %v1196
    %1228 = vmatpush1.bf16.msra.mxu0 %v1195
    %1229 = vmatprep.subr.bf16.mxu0 %v1198
    %1230 = vmatpush1.bf16.msra.mxu0 %v1197
    %1231 = vmatprep.subr.bf16.mxu0 %v1200
    %1232 = vmatpush1.bf16.msra.mxu0 %v1199
    %1233 = vmatprep.subr.bf16.mxu0 %v1202
    %1234 = vmatpush1.bf16.msra.mxu0 %v1201
    %1235 = vmatprep.subr.bf16.mxu0 0
    %1236 = vmatpush1.bf16.msra.mxu0 0
    %1237 = vmatprep.subr.bf16.mxu0 0
    %1238 = vmatpush1.bf16.msra.mxu0 0
    %1239 = vmatprep.subr.bf16.mxu0 0
    %1240 = vmatpush1.bf16.msra.mxu0 0
    %1241 = vmatprep.subr.bf16.mxu0 0
    %1242 = vmatpush1.bf16.msra.mxu0 0
    %1243 = vmatprep.subr.bf16.mxu0 0
    %1244 = vmatpush1.bf16.msra.mxu0 0
    %1245 = vmatprep.subr.bf16.mxu0 0
    %1246 = vmatpush1.bf16.msra.mxu0 0
    %1247 = vmatprep.subr.bf16.mxu0 0
    %1248 = vmatpush1.bf16.msra.mxu0 0
    %1249 = vmatprep.subr.bf16.mxu0 0
    %1250 = vmatpush1.bf16.msra.mxu0 0
    %1251 = vmatprep.mubr.bf16.mxu0 0
    %1252 = vmatmul.mubr.bf16.gmra.mrb[0].mxu0 %v1107
    %v1253 = vpop.f32.mrb[0].mxu0
    %v1254 = vadd.f32 0.0, %v1253
    %v1255 = vpop.f32.mrb[0].mxu0
    %v1256 = vadd.f32 0.0, %v1255
    %v1257 = vpop.f32.mrb[0].mxu0
    %v1258 = vadd.f32 0.0, %v1257
    %v1259 = vpop.f32.mrb[0].mxu0
    %v1260 = vadd.f32 0.0, %v1259
    %1261 = vmatprep.mubr.bf16.mxu0 0
    %1262 = vmatmul.mubr.bf16.gmra.mrb[0].mxu0 %v1108
    %v1263 = vpop.f32.mrb[0].mxu0
    %v1264 = vadd.f32 0.0, %v1263
    %v1265 = vpop.f32.mrb[0].mxu0
    %v1266 = vadd.f32 0.0, %v1265
    %v1267 = vpop.f32.mrb[0].mxu0
    %v1268 = vadd.f32 0.0, %v1267
    %v1269 = vpop.f32.mrb[0].mxu0
    %v1270 = vadd.f32 0.0, %v1269
    %1271 = vmatprep.mubr.bf16.mxu0 0
    %1272 = vmatmul.mubr.bf16.gmra.mrb[0].mxu0 %v1109
    %v1273 = vpop.f32.mrb[0].mxu0
    %v1274 = vadd.f32 0.0, %v1273
    %v1275 = vpop.f32.mrb[0].mxu0
    %v1276 = vadd.f32 0.0, %v1275
    %v1277 = vpop.f32.mrb[0].mxu0
    %v1278 = vadd.f32 0.0, %v1277
    %v1279 = vpop.f32.mrb[0].mxu0
    %v1280 = vadd.f32 0.0, %v1279
    %1281 = vmatprep.mubr.bf16.mxu0 0
    %1282 = vmatmul.mubr.bf16.gmra.mrb[0].mxu0 %v1110
    %v1283 = vpop.f32.mrb[0].mxu0
    %v1284 = vadd.f32 0.0, %v1283
    %v1285 = vpop.f32.mrb[0].mxu0
    %v1286 = vadd.f32 0.0, %v1285
    %v1287 = vpop.f32.mrb[0].mxu0
    %v1288 = vadd.f32 0.0, %v1287
    %v1289 = vpop.f32.mrb[0].mxu0
    %v1290 = vadd.f32 0.0, %v1289
    %1291 = vmatprep.mubr.bf16.mxu0 0
    %1292 = vmatmul.mubr.bf16.gmra.mrb[0].mxu0 %v1111
    %v1293 = vpop.f32.mrb[0].mxu0
    %v1294 = vadd.f32 0.0, %v1293
    %v1295 = vpop.f32.mrb[0].mxu0
    %v1296 = vadd.f32 0.0, %v1295
    %v1297 = vpop.f32.mrb[0].mxu0
    %v1298 = vadd.f32 0.0, %v1297
    %v1299 = vpop.f32.mrb[0].mxu0
    %v1300 = vadd.f32 0.0, %v1299
    %1301 = vmatprep.mubr.bf16.mxu0 0
    %1302 = vmatmul.mubr.bf16.gmra.mrb[0].mxu0 %v1112
    %v1303 = vpop.f32.mrb[0].mxu0
    %v1304 = vadd.f32 0.0, %v1303
    %v1305 = vpop.f32.mrb[0].mxu0
    %v1306 = vadd.f32 0.0, %v1305
    %v1307 = vpop.f32.mrb[0].mxu0
    %v1308 = vadd.f32 0.0, %v1307
    %v1309 = vpop.f32.mrb[0].mxu0
    %v1310 = vadd.f32 0.0, %v1309
    %1311 = vmatprep.mubr.bf16.mxu0 0
    %1312 = vmatmul.mubr.bf16.gmra.mrb[0].mxu0 %v1113
    %v1313 = vpop.f32.mrb[0].mxu0
    %v1314 = vadd.f32 0.0, %v1313
    %v1315 = vpop.f32.mrb[0].mxu0
    %v1316 = vadd.f32 0.0, %v1315
    %v1317 = vpop.f32.mrb[0].mxu0
    %v1318 = vadd.f32 0.0, %v1317
    %v1319 = vpop.f32.mrb[0].mxu0
    %v1320 = vadd.f32 0.0, %v1319
    %1321 = vmatprep.mubr.bf16.mxu0 0
    %1322 = vmatmul.mubr.bf16.gmra.mrb[0].mxu0 %v1114
    %v1323 = vpop.f32.mrb[0].mxu0
    %v1324 = vadd.f32 0.0, %v1323
    %v1325 = vpop.f32.mrb[0].mxu0
    %v1326 = vadd.f32 0.0, %v1325
    %v1327 = vpop.f32.mrb[0].mxu0
    %v1328 = vadd.f32 0.0, %v1327
    %v1329 = vpop.f32.mrb[0].mxu0
    %v1330 = vadd.f32 0.0, %v1329
    %1331 = vmatprep.mubr.bf16.mxu0 0
    %1332 = vmatmul.mubr.bf16.gmra.mrb[0].mxu0 %v1115
    %v1333 = vpop.f32.mrb[0].mxu0
    %v1334 = vadd.f32 0.0, %v1333
    %v1335 = vpop.f32.mrb[0].mxu0
    %v1336 = vadd.f32 0.0, %v1335
    %v1337 = vpop.f32.mrb[0].mxu0
    %v1338 = vadd.f32 0.0, %v1337
    %v1339 = vpop.f32.mrb[0].mxu0
    %v1340 = vadd.f32 0.0, %v1339
    %1341 = vmatprep.mubr.bf16.mxu0 0
    %1342 = vmatmul.mubr.bf16.gmra.mrb[0].mxu0 %v1116
    %v1343 = vpop.f32.mrb[0].mxu0
    %v1344 = vadd.f32 0.0, %v1343
    %v1345 = vpop.f32.mrb[0].mxu0
    %v1346 = vadd.f32 0.0, %v1345
    %v1347 = vpop.f32.mrb[0].mxu0
    %v1348 = vadd.f32 0.0, %v1347
    %v1349 = vpop.f32.mrb[0].mxu0
    %v1350 = vadd.f32 0.0, %v1349
    %1351 = vmatprep.mubr.bf16.mxu0 0
    %1352 = vmatmul.mubr.bf16.gmra.mrb[0].mxu0 %v1117
    %v1353 = vpop.f32.mrb[0].mxu0
    %v1354 = vadd.f32 0.0, %v1353
    %v1355 = vpop.f32.mrb[0].mxu0
    %v1356 = vadd.f32 0.0, %v1355
    %v1357 = vpop.f32.mrb[0].mxu0
    %v1358 = vadd.f32 0.0, %v1357
    %v1359 = vpop.f32.mrb[0].mxu0
    %v1360 = vadd.f32 0.0, %v1359
    %1361 = vmatprep.mubr.bf16.mxu0 0
    %1362 = vmatmul.mubr.bf16.gmra.mrb[0].mxu0 %v1118
    %v1363 = vpop.f32.mrb[0].mxu0
    %v1364 = vadd.f32 0.0, %v1363
    %v1365 = vpop.f32.mrb[0].mxu0
    %v1366 = vadd.f32 0.0, %v1365
    %v1367 = vpop.f32.mrb[0].mxu0
    %v1368 = vadd.f32 0.0, %v1367
    %v1369 = vpop.f32.mrb[0].mxu0
    %v1370 = vadd.f32 0.0, %v1369
    %1371 = vmatprep.mubr.bf16.mxu0 0
    %1372 = vmatmul.mubr.bf16.gmra.mrb[0].mxu0 %v1119
    %v1373 = vpop.f32.mrb[0].mxu0
    %v1374 = vadd.f32 0.0, %v1373
    %v1375 = vpop.f32.mrb[0].mxu0
    %v1376 = vadd.f32 0.0, %v1375
    %v1377 = vpop.f32.mrb[0].mxu0
    %v1378 = vadd.f32 0.0, %v1377
    %v1379 = vpop.f32.mrb[0].mxu0
    %v1380 = vadd.f32 0.0, %v1379
    %1381 = vmatprep.mubr.bf16.mxu0 0
    %1382 = vmatmul.mubr.bf16.gmra.mrb[0].mxu0 %v1120
    %v1383 = vpop.f32.mrb[0].mxu0
    %v1384 = vadd.f32 0.0, %v1383
    %v1385 = vpop.f32.mrb[0].mxu0
    %v1386 = vadd.f32 0.0, %v1385
    %v1387 = vpop.f32.mrb[0].mxu0
    %v1388 = vadd.f32 0.0, %v1387
    %v1389 = vpop.f32.mrb[0].mxu0
    %v1390 = vadd.f32 0.0, %v1389
    %1391 = vmatprep.mubr.bf16.mxu0 0
    %1392 = vmatmul.mubr.bf16.gmra.mrb[0].mxu0 %v1121
    %v1393 = vpop.f32.mrb[0].mxu0
    %v1394 = vadd.f32 0.0, %v1393
    %v1395 = vpop.f32.mrb[0].mxu0
    %v1396 = vadd.f32 0.0, %v1395
    %v1397 = vpop.f32.mrb[0].mxu0
    %v1398 = vadd.f32 0.0, %v1397
    %v1399 = vpop.f32.mrb[0].mxu0
    %v1400 = vadd.f32 0.0, %v1399
    %1401 = vmatprep.mubr.bf16.mxu0 0
    %1402 = vmatmul.mubr.bf16.gmra.mrb[0].mxu0 %v1122
    %v1403 = vpop.f32.mrb[0].mxu0
    %v1404 = vadd.f32 0.0, %v1403
    %v1405 = vpop.f32.mrb[0].mxu0
    %v1406 = vadd.f32 0.0, %v1405
    %v1407 = vpop.f32.mrb[0].mxu0
    %v1408 = vadd.f32 0.0, %v1407
    %v1409 = vpop.f32.mrb[0].mxu0
    %v1410 = vadd.f32 0.0, %v1409
    %1411 = vdwg.mxu0
    %v1412 = vadd.f32 %v949, %v1254
    %v1413 = vadd.f32 %v951, %v1256
    %v1414 = vadd.f32 %v953, %v1258
    %v1415 = vadd.f32 %v955, %v1260
    %v1416 = vadd.f32 %v959, %v1264
    %v1417 = vadd.f32 %v961, %v1266
    %v1418 = vadd.f32 %v963, %v1268
    %v1419 = vadd.f32 %v965, %v1270
    %v1420 = vadd.f32 %v969, %v1274
    %v1421 = vadd.f32 %v971, %v1276
    %v1422 = vadd.f32 %v973, %v1278
    %v1423 = vadd.f32 %v975, %v1280
    %v1424 = vadd.f32 %v979, %v1284
    %v1425 = vadd.f32 %v981, %v1286
    %v1426 = vadd.f32 %v983, %v1288
    %v1427 = vadd.f32 %v985, %v1290
    %v1428 = vadd.f32 %v989, %v1294
    %v1429 = vadd.f32 %v991, %v1296
    %v1430 = vadd.f32 %v993, %v1298
    %v1431 = vadd.f32 %v995, %v1300
    %v1432 = vadd.f32 %v999, %v1304
    %v1433 = vadd.f32 %v1001, %v1306
    %v1434 = vadd.f32 %v1003, %v1308
    %v1435 = vadd.f32 %v1005, %v1310
    %v1436 = vadd.f32 %v1009, %v1314
    %v1437 = vadd.f32 %v1011, %v1316
    %v1438 = vadd.f32 %v1013, %v1318
    %v1439 = vadd.f32 %v1015, %v1320
    %v1440 = vadd.f32 %v1019, %v1324
    %v1441 = vadd.f32 %v1021, %v1326
    %v1442 = vadd.f32 %v1023, %v1328
    %v1443 = vadd.f32 %v1025, %v1330
    %v1444 = vadd.f32 %v1029, %v1334
    %v1445 = vadd.f32 %v1031, %v1336
    %v1446 = vadd.f32 %v1033, %v1338
    %v1447 = vadd.f32 %v1035, %v1340
    %v1448 = vadd.f32 %v1039, %v1344
    %v1449 = vadd.f32 %v1041, %v1346
    %v1450 = vadd.f32 %v1043, %v1348
    %v1451 = vadd.f32 %v1045, %v1350
    %v1452 = vadd.f32 %v1049, %v1354
    %v1453 = vadd.f32 %v1051, %v1356
    %v1454 = vadd.f32 %v1053, %v1358
    %v1455 = vadd.f32 %v1055, %v1360
    %v1456 = vadd.f32 %v1059, %v1364
    %v1457 = vadd.f32 %v1061, %v1366
    %v1458 = vadd.f32 %v1063, %v1368
    %v1459 = vadd.f32 %v1065, %v1370
    %v1460 = vadd.f32 %v1069, %v1374
    %v1461 = vadd.f32 %v1071, %v1376
    %v1462 = vadd.f32 %v1073, %v1378
    %v1463 = vadd.f32 %v1075, %v1380
    %v1464 = vadd.f32 %v1079, %v1384
    %v1465 = vadd.f32 %v1081, %v1386
    %v1466 = vadd.f32 %v1083, %v1388
    %v1467 = vadd.f32 %v1085, %v1390
    %v1468 = vadd.f32 %v1089, %v1394
    %v1469 = vadd.f32 %v1091, %v1396
    %v1470 = vadd.f32 %v1093, %v1398
    %v1471 = vadd.f32 %v1095, %v1400
    %v1472 = vadd.f32 %v1099, %v1404
    %v1473 = vadd.f32 %v1101, %v1406
    %v1474 = vadd.f32 %v1103, %v1408
    %v1475 = vadd.f32 %v1105, %v1410
    %s1476 = scalar_lea.vmem [#allocation2], 24
    %v1477 = vld [vmem:[%s1476] sm:$0xff]
    %v1478 = vld [vmem:[%s1476 + $0x8] sm:$0xff]
    %v1479 = vld [vmem:[%s1476 + $0x10] sm:$0xff]
    %v1480 = vld [vmem:[%s1476 + $0x18] sm:$0xff]
    %v1481 = vld [vmem:[%s1476 + $0x20] sm:$0xff]
    %v1482 = vld [vmem:[%s1476 + $0x28] sm:$0xff]
    %v1483 = vld [vmem:[%s1476 + $0x30] sm:$0xff]
    %v1484 = vld [vmem:[%s1476 + $0x38] sm:$0xff]
    %v1485 = vld [vmem:[%s1476 + $0x40] sm:$0xff]
    %v1486 = vld [vmem:[%s1476 + $0x48] sm:$0xff]
    %v1487 = vld [vmem:[%s1476 + $0x50] sm:$0xff]
    %v1488 = vld [vmem:[%s1476 + $0x58] sm:$0xff]
    %v1489 = vld [vmem:[%s1476 + $0x60] sm:$0xff]
    %v1490 = vld [vmem:[%s1476 + $0x68] sm:$0xff]
    %v1491 = vld [vmem:[%s1476 + $0x70] sm:$0xff]
    %v1492 = vld [vmem:[%s1476 + $0x78] sm:$0xff]
    %v1493 = vld [vmem:[#allocation7 + $0x180] sm:$0xff]
    %v1494 = vld [vmem:[#allocation7 + $0x188] sm:$0xff]
    %v1495 = vld [vmem:[#allocation7 + $0x190] sm:$0xff]
    %v1496 = vld [vmem:[#allocation7 + $0x198] sm:$0xff]
    %v1497 = vld [vmem:[#allocation7 + $0x1a0] sm:$0xff]
    %v1498 = vld [vmem:[#allocation7 + $0x1a8] sm:$0xff]
    %v1499 = vld [vmem:[#allocation7 + $0x1b0] sm:$0xff]
    %v1500 = vld [vmem:[#allocation7 + $0x1b8] sm:$0xff]
    %v1501 = vld [vmem:[#allocation7 + $0x1c0] sm:$0xff]
    %v1502 = vld [vmem:[#allocation7 + $0x1c8] sm:$0xff]
    %v1503 = vld [vmem:[#allocation7 + $0x1d0] sm:$0xff]
    %v1504 = vld [vmem:[#allocation7 + $0x1d8] sm:$0xff]
    %v1505 = vld [vmem:[#allocation7 + $0x1e0] sm:$0xff]
    %v1506 = vld [vmem:[#allocation7 + $0x1e8] sm:$0xff]
    %v1507 = vld [vmem:[#allocation7 + $0x1f0] sm:$0xff]
    %v1508 = vld [vmem:[#allocation7 + $0x1f8] sm:$0xff]
    %v1525 = vunpack.c.l.b16 %v1493
    %v1526 = vunpack.c.h.b16 %v1493
    %v1527 = vunpack.c.l.b16 %v1494
    %v1528 = vunpack.c.h.b16 %v1494
    %v1529 = vunpack.c.l.b16 %v1495
    %v1530 = vunpack.c.h.b16 %v1495
    %v1531 = vunpack.c.l.b16 %v1496
    %v1532 = vunpack.c.h.b16 %v1496
    %v1533 = vunpack.c.l.b16 %v1497
    %v1534 = vunpack.c.h.b16 %v1497
    %v1535 = vunpack.c.l.b16 %v1498
    %v1536 = vunpack.c.h.b16 %v1498
    %v1537 = vunpack.c.l.b16 %v1499
    %v1538 = vunpack.c.h.b16 %v1499
    %v1539 = vunpack.c.l.b16 %v1500
    %v1540 = vunpack.c.h.b16 %v1500
    %v1541 = vunpack.c.l.b16 %v1501
    %v1542 = vunpack.c.h.b16 %v1501
    %v1543 = vunpack.c.l.b16 %v1502
    %v1544 = vunpack.c.h.b16 %v1502
    %v1545 = vunpack.c.l.b16 %v1503
    %v1546 = vunpack.c.h.b16 %v1503
    %v1547 = vunpack.c.l.b16 %v1504
    %v1548 = vunpack.c.h.b16 %v1504
    %v1549 = vunpack.c.l.b16 %v1505
    %v1550 = vunpack.c.h.b16 %v1505
    %v1551 = vunpack.c.l.b16 %v1506
    %v1552 = vunpack.c.h.b16 %v1506
    %v1553 = vunpack.c.l.b16 %v1507
    %v1554 = vunpack.c.h.b16 %v1507
    %v1555 = vunpack.c.l.b16 %v1508
    %v1556 = vunpack.c.h.b16 %v1508
    %v1557 = vpack.c.b16 %v1527, %v1525
    %v1558 = vpack.c.b16 %v1528, %v1526
    %v1559 = vpack.c.b16 %v1531, %v1529
    %v1560 = vpack.c.b16 %v1532, %v1530
    %v1561 = vpack.c.b16 %v1535, %v1533
    %v1562 = vpack.c.b16 %v1536, %v1534
    %v1563 = vpack.c.b16 %v1539, %v1537
    %v1564 = vpack.c.b16 %v1540, %v1538
    %v1565 = vpack.c.b16 %v1543, %v1541
    %v1566 = vpack.c.b16 %v1544, %v1542
    %v1567 = vpack.c.b16 %v1547, %v1545
    %v1568 = vpack.c.b16 %v1548, %v1546
    %v1569 = vpack.c.b16 %v1551, %v1549
    %v1570 = vpack.c.b16 %v1552, %v1550
    %v1571 = vpack.c.b16 %v1555, %v1553
    %v1572 = vpack.c.b16 %v1556, %v1554
    %1589 = vmatprep.subr.bf16.mxu0 %v1558
    %1590 = vmatpush1.bf16.msra.mxu0 %v1557
    %1591 = vmatprep.subr.bf16.mxu0 %v1560
    %1592 = vmatpush1.bf16.msra.mxu0 %v1559
    %1593 = vmatprep.subr.bf16.mxu0 %v1562
    %1594 = vmatpush1.bf16.msra.mxu0 %v1561
    %1595 = vmatprep.subr.bf16.mxu0 %v1564
    %1596 = vmatpush1.bf16.msra.mxu0 %v1563
    %1597 = vmatprep.subr.bf16.mxu0 %v1566
    %1598 = vmatpush1.bf16.msra.mxu0 %v1565
    %1599 = vmatprep.subr.bf16.mxu0 %v1568
    %1600 = vmatpush1.bf16.msra.mxu0 %v1567
    %1601 = vmatprep.subr.bf16.mxu0 %v1570
    %1602 = vmatpush1.bf16.msra.mxu0 %v1569
    %1603 = vmatprep.subr.bf16.mxu0 %v1572
    %1604 = vmatpush1.bf16.msra.mxu0 %v1571
    %1605 = vmatprep.subr.bf16.mxu0 0
    %1606 = vmatpush1.bf16.msra.mxu0 0
    %1607 = vmatprep.subr.bf16.mxu0 0
    %1608 = vmatpush1.bf16.msra.mxu0 0
    %1609 = vmatprep.subr.bf16.mxu0 0
    %1610 = vmatpush1.bf16.msra.mxu0 0
    %1611 = vmatprep.subr.bf16.mxu0 0
    %1612 = vmatpush1.bf16.msra.mxu0 0
    %1613 = vmatprep.subr.bf16.mxu0 0
    %1614 = vmatpush1.bf16.msra.mxu0 0
    %1615 = vmatprep.subr.bf16.mxu0 0
    %1616 = vmatpush1.bf16.msra.mxu0 0
    %1617 = vmatprep.subr.bf16.mxu0 0
    %1618 = vmatpush1.bf16.msra.mxu0 0
    %1619 = vmatprep.subr.bf16.mxu0 0
    %1620 = vmatpush1.bf16.msra.mxu0 0
    %1621 = vmatprep.mubr.bf16.mxu0 0
    %1622 = vmatmul.mubr.bf16.gmra.mrb[0].mxu0 %v1477
    %v1623 = vpop.f32.mrb[0].mxu0
    %v1624 = vadd.f32 0.0, %v1623
    %v1625 = vpop.f32.mrb[0].mxu0
    %v1626 = vadd.f32 0.0, %v1625
    %v1627 = vpop.f32.mrb[0].mxu0
    %v1628 = vadd.f32 0.0, %v1627
    %v1629 = vpop.f32.mrb[0].mxu0
    %v1630 = vadd.f32 0.0, %v1629
    %1631 = vmatprep.mubr.bf16.mxu0 0
    %1632 = vmatmul.mubr.bf16.gmra.mrb[0].mxu0 %v1478
    %v1633 = vpop.f32.mrb[0].mxu0
    %v1634 = vadd.f32 0.0, %v1633
    %v1635 = vpop.f32.mrb[0].mxu0
    %v1636 = vadd.f32 0.0, %v1635
    %v1637 = vpop.f32.mrb[0].mxu0
    %v1638 = vadd.f32 0.0, %v1637
    %v1639 = vpop.f32.mrb[0].mxu0
    %v1640 = vadd.f32 0.0, %v1639
    %1641 = vmatprep.mubr.bf16.mxu0 0
    %1642 = vmatmul.mubr.bf16.gmra.mrb[0].mxu0 %v1479
    %v1643 = vpop.f32.mrb[0].mxu0
    %v1644 = vadd.f32 0.0, %v1643
    %v1645 = vpop.f32.mrb[0].mxu0
    %v1646 = vadd.f32 0.0, %v1645
    %v1647 = vpop.f32.mrb[0].mxu0
    %v1648 = vadd.f32 0.0, %v1647
    %v1649 = vpop.f32.mrb[0].mxu0
    %v1650 = vadd.f32 0.0, %v1649
    %1651 = vmatprep.mubr.bf16.mxu0 0
    %1652 = vmatmul.mubr.bf16.gmra.mrb[0].mxu0 %v1480
    %v1653 = vpop.f32.mrb[0].mxu0
    %v1654 = vadd.f32 0.0, %v1653
    %v1655 = vpop.f32.mrb[0].mxu0
    %v1656 = vadd.f32 0.0, %v1655
    %v1657 = vpop.f32.mrb[0].mxu0
    %v1658 = vadd.f32 0.0, %v1657
    %v1659 = vpop.f32.mrb[0].mxu0
    %v1660 = vadd.f32 0.0, %v1659
    %1661 = vmatprep.mubr.bf16.mxu0 0
    %1662 = vmatmul.mubr.bf16.gmra.mrb[0].mxu0 %v1481
    %v1663 = vpop.f32.mrb[0].mxu0
    %v1664 = vadd.f32 0.0, %v1663
    %v1665 = vpop.f32.mrb[0].mxu0
    %v1666 = vadd.f32 0.0, %v1665
    %v1667 = vpop.f32.mrb[0].mxu0
    %v1668 = vadd.f32 0.0, %v1667
    %v1669 = vpop.f32.mrb[0].mxu0
    %v1670 = vadd.f32 0.0, %v1669
    %1671 = vmatprep.mubr.bf16.mxu0 0
    %1672 = vmatmul.mubr.bf16.gmra.mrb[0].mxu0 %v1482
    %v1673 = vpop.f32.mrb[0].mxu0
    %v1674 = vadd.f32 0.0, %v1673
    %v1675 = vpop.f32.mrb[0].mxu0
    %v1676 = vadd.f32 0.0, %v1675
    %v1677 = vpop.f32.mrb[0].mxu0
    %v1678 = vadd.f32 0.0, %v1677
    %v1679 = vpop.f32.mrb[0].mxu0
    %v1680 = vadd.f32 0.0, %v1679
    %1681 = vmatprep.mubr.bf16.mxu0 0
    %1682 = vmatmul.mubr.bf16.gmra.mrb[0].mxu0 %v1483
    %v1683 = vpop.f32.mrb[0].mxu0
    %v1684 = vadd.f32 0.0, %v1683
    %v1685 = vpop.f32.mrb[0].mxu0
    %v1686 = vadd.f32 0.0, %v1685
    %v1687 = vpop.f32.mrb[0].mxu0
    %v1688 = vadd.f32 0.0, %v1687
    %v1689 = vpop.f32.mrb[0].mxu0
    %v1690 = vadd.f32 0.0, %v1689
    %1691 = vmatprep.mubr.bf16.mxu0 0
    %1692 = vmatmul.mubr.bf16.gmra.mrb[0].mxu0 %v1484
    %v1693 = vpop.f32.mrb[0].mxu0
    %v1694 = vadd.f32 0.0, %v1693
    %v1695 = vpop.f32.mrb[0].mxu0
    %v1696 = vadd.f32 0.0, %v1695
    %v1697 = vpop.f32.mrb[0].mxu0
    %v1698 = vadd.f32 0.0, %v1697
    %v1699 = vpop.f32.mrb[0].mxu0
    %v1700 = vadd.f32 0.0, %v1699
    %1701 = vmatprep.mubr.bf16.mxu0 0
    %1702 = vmatmul.mubr.bf16.gmra.mrb[0].mxu0 %v1485
    %v1703 = vpop.f32.mrb[0].mxu0
    %v1704 = vadd.f32 0.0, %v1703
    %v1705 = vpop.f32.mrb[0].mxu0
    %v1706 = vadd.f32 0.0, %v1705
    %v1707 = vpop.f32.mrb[0].mxu0
    %v1708 = vadd.f32 0.0, %v1707
    %v1709 = vpop.f32.mrb[0].mxu0
    %v1710 = vadd.f32 0.0, %v1709
    %1711 = vmatprep.mubr.bf16.mxu0 0
    %1712 = vmatmul.mubr.bf16.gmra.mrb[0].mxu0 %v1486
    %v1713 = vpop.f32.mrb[0].mxu0
    %v1714 = vadd.f32 0.0, %v1713
    %v1715 = vpop.f32.mrb[0].mxu0
    %v1716 = vadd.f32 0.0, %v1715
    %v1717 = vpop.f32.mrb[0].mxu0
    %v1718 = vadd.f32 0.0, %v1717
    %v1719 = vpop.f32.mrb[0].mxu0
    %v1720 = vadd.f32 0.0, %v1719
    %1721 = vmatprep.mubr.bf16.mxu0 0
    %1722 = vmatmul.mubr.bf16.gmra.mrb[0].mxu0 %v1487
    %v1723 = vpop.f32.mrb[0].mxu0
    %v1724 = vadd.f32 0.0, %v1723
    %v1725 = vpop.f32.mrb[0].mxu0
    %v1726 = vadd.f32 0.0, %v1725
    %v1727 = vpop.f32.mrb[0].mxu0
    %v1728 = vadd.f32 0.0, %v1727
    %v1729 = vpop.f32.mrb[0].mxu0
    %v1730 = vadd.f32 0.0, %v1729
    %1731 = vmatprep.mubr.bf16.mxu0 0
    %1732 = vmatmul.mubr.bf16.gmra.mrb[0].mxu0 %v1488
    %v1733 = vpop.f32.mrb[0].mxu0
    %v1734 = vadd.f32 0.0, %v1733
    %v1735 = vpop.f32.mrb[0].mxu0
    %v1736 = vadd.f32 0.0, %v1735
    %v1737 = vpop.f32.mrb[0].mxu0
    %v1738 = vadd.f32 0.0, %v1737
    %v1739 = vpop.f32.mrb[0].mxu0
    %v1740 = vadd.f32 0.0, %v1739
    %1741 = vmatprep.mubr.bf16.mxu0 0
    %1742 = vmatmul.mubr.bf16.gmra.mrb[0].mxu0 %v1489
    %v1743 = vpop.f32.mrb[0].mxu0
    %v1744 = vadd.f32 0.0, %v1743
    %v1745 = vpop.f32.mrb[0].mxu0
    %v1746 = vadd.f32 0.0, %v1745
    %v1747 = vpop.f32.mrb[0].mxu0
    %v1748 = vadd.f32 0.0, %v1747
    %v1749 = vpop.f32.mrb[0].mxu0
    %v1750 = vadd.f32 0.0, %v1749
    %1751 = vmatprep.mubr.bf16.mxu0 0
    %1752 = vmatmul.mubr.bf16.gmra.mrb[0].mxu0 %v1490
    %v1753 = vpop.f32.mrb[0].mxu0
    %v1754 = vadd.f32 0.0, %v1753
    %v1755 = vpop.f32.mrb[0].mxu0
    %v1756 = vadd.f32 0.0, %v1755
    %v1757 = vpop.f32.mrb[0].mxu0
    %v1758 = vadd.f32 0.0, %v1757
    %v1759 = vpop.f32.mrb[0].mxu0
    %v1760 = vadd.f32 0.0, %v1759
    %1761 = vmatprep.mubr.bf16.mxu0 0
    %1762 = vmatmul.mubr.bf16.gmra.mrb[0].mxu0 %v1491
    %v1763 = vpop.f32.mrb[0].mxu0
    %v1764 = vadd.f32 0.0, %v1763
    %v1765 = vpop.f32.mrb[0].mxu0
    %v1766 = vadd.f32 0.0, %v1765
    %v1767 = vpop.f32.mrb[0].mxu0
    %v1768 = vadd.f32 0.0, %v1767
    %v1769 = vpop.f32.mrb[0].mxu0
    %v1770 = vadd.f32 0.0, %v1769
    %1771 = vmatprep.mubr.bf16.mxu0 0
    %1772 = vmatmul.mubr.bf16.gmra.mrb[0].mxu0 %v1492
    %v1773 = vpop.f32.mrb[0].mxu0
    %v1774 = vadd.f32 0.0, %v1773
    %v1775 = vpop.f32.mrb[0].mxu0
    %v1776 = vadd.f32 0.0, %v1775
    %v1777 = vpop.f32.mrb[0].mxu0
    %v1778 = vadd.f32 0.0, %v1777
    %v1779 = vpop.f32.mrb[0].mxu0
    %v1780 = vadd.f32 0.0, %v1779
    %1781 = vdwg.mxu0
    %v1782 = vadd.f32 %v1412, %v1624
    %v1783 = vadd.f32 %v1413, %v1626
    %v1784 = vadd.f32 %v1414, %v1628
    %v1785 = vadd.f32 %v1415, %v1630
    %v1786 = vadd.f32 %v1416, %v1634
    %v1787 = vadd.f32 %v1417, %v1636
    %v1788 = vadd.f32 %v1418, %v1638
    %v1789 = vadd.f32 %v1419, %v1640
    %v1790 = vadd.f32 %v1420, %v1644
    %v1791 = vadd.f32 %v1421, %v1646
    %v1792 = vadd.f32 %v1422, %v1648
    %v1793 = vadd.f32 %v1423, %v1650
    %v1794 = vadd.f32 %v1424, %v1654
    %v1795 = vadd.f32 %v1425, %v1656
    %v1796 = vadd.f32 %v1426, %v1658
    %v1797 = vadd.f32 %v1427, %v1660
    %v1798 = vadd.f32 %v1428, %v1664
    %v1799 = vadd.f32 %v1429, %v1666
    %v1800 = vadd.f32 %v1430, %v1668
    %v1801 = vadd.f32 %v1431, %v1670
    %v1802 = vadd.f32 %v1432, %v1674
    %v1803 = vadd.f32 %v1433, %v1676
    %v1804 = vadd.f32 %v1434, %v1678
    %v1805 = vadd.f32 %v1435, %v1680
    %v1806 = vadd.f32 %v1436, %v1684
    %v1807 = vadd.f32 %v1437, %v1686
    %v1808 = vadd.f32 %v1438, %v1688
    %v1809 = vadd.f32 %v1439, %v1690
    %v1810 = vadd.f32 %v1440, %v1694
    %v1811 = vadd.f32 %v1441, %v1696
    %v1812 = vadd.f32 %v1442, %v1698
    %v1813 = vadd.f32 %v1443, %v1700
    %v1814 = vadd.f32 %v1444, %v1704
    %v1815 = vadd.f32 %v1445, %v1706
    %v1816 = vadd.f32 %v1446, %v1708
    %v1817 = vadd.f32 %v1447, %v1710
    %v1818 = vadd.f32 %v1448, %v1714
    %v1819 = vadd.f32 %v1449, %v1716
    %v1820 = vadd.f32 %v1450, %v1718
    %v1821 = vadd.f32 %v1451, %v1720
    %v1822 = vadd.f32 %v1452, %v1724
    %v1823 = vadd.f32 %v1453, %v1726
    %v1824 = vadd.f32 %v1454, %v1728
    %v1825 = vadd.f32 %v1455, %v1730
    %v1826 = vadd.f32 %v1456, %v1734
    %v1827 = vadd.f32 %v1457, %v1736
    %v1828 = vadd.f32 %v1458, %v1738
    %v1829 = vadd.f32 %v1459, %v1740
    %v1830 = vadd.f32 %v1460, %v1744
    %v1831 = vadd.f32 %v1461, %v1746
    %v1832 = vadd.f32 %v1462, %v1748
    %v1833 = vadd.f32 %v1463, %v1750
    %v1834 = vadd.f32 %v1464, %v1754
    %v1835 = vadd.f32 %v1465, %v1756
    %v1836 = vadd.f32 %v1466, %v1758
    %v1837 = vadd.f32 %v1467, %v1760
    %v1838 = vadd.f32 %v1468, %v1764
    %v1839 = vadd.f32 %v1469, %v1766
    %v1840 = vadd.f32 %v1470, %v1768
    %v1841 = vadd.f32 %v1471, %v1770
    %v1842 = vadd.f32 %v1472, %v1774
    %v1843 = vadd.f32 %v1473, %v1776
    %v1844 = vadd.f32 %v1474, %v1778
    %v1845 = vadd.f32 %v1475, %v1780
    %s1846 = scalar_lea.vmem [#allocation2], 32
    %v1847 = vld [vmem:[%s1846] sm:$0xff]
    %v1848 = vld [vmem:[%s1846 + $0x8] sm:$0xff]
    %v1849 = vld [vmem:[%s1846 + $0x10] sm:$0xff]
    %v1850 = vld [vmem:[%s1846 + $0x18] sm:$0xff]
    %v1851 = vld [vmem:[%s1846 + $0x20] sm:$0xff]
    %v1852 = vld [vmem:[%s1846 + $0x28] sm:$0xff]
    %v1853 = vld [vmem:[%s1846 + $0x30] sm:$0xff]
    %v1854 = vld [vmem:[%s1846 + $0x38] sm:$0xff]
    %v1855 = vld [vmem:[%s1846 + $0x40] sm:$0xff]
    %v1856 = vld [vmem:[%s1846 + $0x48] sm:$0xff]
    %v1857 = vld [vmem:[%s1846 + $0x50] sm:$0xff]
    %v1858 = vld [vmem:[%s1846 + $0x58] sm:$0xff]
    %v1859 = vld [vmem:[%s1846 + $0x60] sm:$0xff]
    %v1860 = vld [vmem:[%s1846 + $0x68] sm:$0xff]
    %v1861 = vld [vmem:[%s1846 + $0x70] sm:$0xff]
    %v1862 = vld [vmem:[%s1846 + $0x78] sm:$0xff]
    %v1863 = vld [vmem:[#allocation7 + $0x200] sm:$0xff]
    %v1864 = vld [vmem:[#allocation7 + $0x208] sm:$0xff]
    %v1865 = vld [vmem:[#allocation7 + $0x210] sm:$0xff]
    %v1866 = vld [vmem:[#allocation7 + $0x218] sm:$0xff]
    %v1867 = vld [vmem:[#allocation7 + $0x220] sm:$0xff]
    %v1868 = vld [vmem:[#allocation7 + $0x228] sm:$0xff]
    %v1869 = vld [vmem:[#allocation7 + $0x230] sm:$0xff]
    %v1870 = vld [vmem:[#allocation7 + $0x238] sm:$0xff]
    %v1871 = vld [vmem:[#allocation7 + $0x240] sm:$0xff]
    %v1872 = vld [vmem:[#allocation7 + $0x248] sm:$0xff]
    %v1873 = vld [vmem:[#allocation7 + $0x250] sm:$0xff]
    %v1874 = vld [vmem:[#allocation7 + $0x258] sm:$0xff]
    %v1875 = vld [vmem:[#allocation7 + $0x260] sm:$0xff]
    %v1876 = vld [vmem:[#allocation7 + $0x268] sm:$0xff]
    %v1877 = vld [vmem:[#allocation7 + $0x270] sm:$0xff]
    %v1878 = vld [vmem:[#allocation7 + $0x278] sm:$0xff]
    %v1895 = vunpack.c.l.b16 %v1863
    %v1896 = vunpack.c.h.b16 %v1863
    %v1897 = vunpack.c.l.b16 %v1864
    %v1898 = vunpack.c.h.b16 %v1864
    %v1899 = vunpack.c.l.b16 %v1865
    %v1900 = vunpack.c.h.b16 %v1865
    %v1901 = vunpack.c.l.b16 %v1866
    %v1902 = vunpack.c.h.b16 %v1866
    %v1903 = vunpack.c.l.b16 %v1867
    %v1904 = vunpack.c.h.b16 %v1867
    %v1905 = vunpack.c.l.b16 %v1868
    %v1906 = vunpack.c.h.b16 %v1868
    %v1907 = vunpack.c.l.b16 %v1869
    %v1908 = vunpack.c.h.b16 %v1869
    %v1909 = vunpack.c.l.b16 %v1870
    %v1910 = vunpack.c.h.b16 %v1870
    %v1911 = vunpack.c.l.b16 %v1871
    %v1912 = vunpack.c.h.b16 %v1871
    %v1913 = vunpack.c.l.b16 %v1872
    %v1914 = vunpack.c.h.b16 %v1872
    %v1915 = vunpack.c.l.b16 %v1873
    %v1916 = vunpack.c.h.b16 %v1873
    %v1917 = vunpack.c.l.b16 %v1874
    %v1918 = vunpack.c.h.b16 %v1874
    %v1919 = vunpack.c.l.b16 %v1875
    %v1920 = vunpack.c.h.b16 %v1875
    %v1921 = vunpack.c.l.b16 %v1876
    %v1922 = vunpack.c.h.b16 %v1876
    %v1923 = vunpack.c.l.b16 %v1877
    %v1924 = vunpack.c.h.b16 %v1877
    %v1925 = vunpack.c.l.b16 %v1878
    %v1926 = vunpack.c.h.b16 %v1878
    %v1927 = vpack.c.b16 %v1897, %v1895
    %v1928 = vpack.c.b16 %v1898, %v1896
    %v1929 = vpack.c.b16 %v1901, %v1899
    %v1930 = vpack.c.b16 %v1902, %v1900
    %v1931 = vpack.c.b16 %v1905, %v1903
    %v1932 = vpack.c.b16 %v1906, %v1904
    %v1933 = vpack.c.b16 %v1909, %v1907
    %v1934 = vpack.c.b16 %v1910, %v1908
    %v1935 = vpack.c.b16 %v1913, %v1911
    %v1936 = vpack.c.b16 %v1914, %v1912
    %v1937 = vpack.c.b16 %v1917, %v1915
    %v1938 = vpack.c.b16 %v1918, %v1916
    %v1939 = vpack.c.b16 %v1921, %v1919
    %v1940 = vpack.c.b16 %v1922, %v1920
    %v1941 = vpack.c.b16 %v1925, %v1923
    %v1942 = vpack.c.b16 %v1926, %v1924
    %1959 = vmatprep.subr.bf16.mxu0 %v1928
    %1960 = vmatpush1.bf16.msra.mxu0 %v1927
    %1961 = vmatprep.subr.bf16.mxu0 %v1930
    %1962 = vmatpush1.bf16.msra.mxu0 %v1929
    %1963 = vmatprep.subr.bf16.mxu0 %v1932
    %1964 = vmatpush1.bf16.msra.mxu0 %v1931
    %1965 = vmatprep.subr.bf16.mxu0 %v1934
    %1966 = vmatpush1.bf16.msra.mxu0 %v1933
    %1967 = vmatprep.subr.bf16.mxu0 %v1936
    %1968 = vmatpush1.bf16.msra.mxu0 %v1935
    %1969 = vmatprep.subr.bf16.mxu0 %v1938
    %1970 = vmatpush1.bf16.msra.mxu0 %v1937
    %1971 = vmatprep.subr.bf16.mxu0 %v1940
    %1972 = vmatpush1.bf16.msra.mxu0 %v1939
    %1973 = vmatprep.subr.bf16.mxu0 %v1942
    %1974 = vmatpush1.bf16.msra.mxu0 %v1941
    %1975 = vmatprep.subr.bf16.mxu0 0
    %1976 = vmatpush1.bf16.msra.mxu0 0
    %1977 = vmatprep.subr.bf16.mxu0 0
    %1978 = vmatpush1.bf16.msra.mxu0 0
    %1979 = vmatprep.subr.bf16.mxu0 0
    %1980 = vmatpush1.bf16.msra.mxu0 0
    %1981 = vmatprep.subr.bf16.mxu0 0
    %1982 = vmatpush1.bf16.msra.mxu0 0
    %1983 = vmatprep.subr.bf16.mxu0 0
    %1984 = vmatpush1.bf16.msra.mxu0 0
    %1985 = vmatprep.subr.bf16.mxu0 0
    %1986 = vmatpush1.bf16.msra.mxu0 0
    %1987 = vmatprep.subr.bf16.mxu0 0
    %1988 = vmatpush1.bf16.msra.mxu0 0
    %1989 = vmatprep.subr.bf16.mxu0 0
    %1990 = vmatpush1.bf16.msra.mxu0 0
    %1991 = vmatprep.mubr.bf16.mxu0 0
    %1992 = vmatmul.mubr.bf16.gmra.mrb[0].mxu0 %v1847
    %v1993 = vpop.f32.mrb[0].mxu0
    %v1994 = vadd.f32 0.0, %v1993
    %v1995 = vpop.f32.mrb[0].mxu0
    %v1996 = vadd.f32 0.0, %v1995
    %v1997 = vpop.f32.mrb[0].mxu0
    %v1998 = vadd.f32 0.0, %v1997
    %v1999 = vpop.f32.mrb[0].mxu0
    %v2000 = vadd.f32 0.0, %v1999
    %2001 = vmatprep.mubr.bf16.mxu0 0
    %2002 = vmatmul.mubr.bf16.gmra.mrb[0].mxu0 %v1848
    %v2003 = vpop.f32.mrb[0].mxu0
    %v2004 = vadd.f32 0.0, %v2003
    %v2005 = vpop.f32.mrb[0].mxu0
    %v2006 = vadd.f32 0.0, %v2005
    %v2007 = vpop.f32.mrb[0].mxu0
    %v2008 = vadd.f32 0.0, %v2007
    %v2009 = vpop.f32.mrb[0].mxu0
    %v2010 = vadd.f32 0.0, %v2009
    %2011 = vmatprep.mubr.bf16.mxu0 0
    %2012 = vmatmul.mubr.bf16.gmra.mrb[0].mxu0 %v1849
    %v2013 = vpop.f32.mrb[0].mxu0
    %v2014 = vadd.f32 0.0, %v2013
    %v2015 = vpop.f32.mrb[0].mxu0
    %v2016 = vadd.f32 0.0, %v2015
    %v2017 = vpop.f32.mrb[0].mxu0
    %v2018 = vadd.f32 0.0, %v2017
    %v2019 = vpop.f32.mrb[0].mxu0
    %v2020 = vadd.f32 0.0, %v2019
    %2021 = vmatprep.mubr.bf16.mxu0 0
    %2022 = vmatmul.mubr.bf16.gmra.mrb[0].mxu0 %v1850
    %v2023 = vpop.f32.mrb[0].mxu0
    %v2024 = vadd.f32 0.0, %v2023
    %v2025 = vpop.f32.mrb[0].mxu0
    %v2026 = vadd.f32 0.0, %v2025
    %v2027 = vpop.f32.mrb[0].mxu0
    %v2028 = vadd.f32 0.0, %v2027
    %v2029 = vpop.f32.mrb[0].mxu0
    %v2030 = vadd.f32 0.0, %v2029
    %2031 = vmatprep.mubr.bf16.mxu0 0
    %2032 = vmatmul.mubr.bf16.gmra.mrb[0].mxu0 %v1851
    %v2033 = vpop.f32.mrb[0].mxu0
    %v2034 = vadd.f32 0.0, %v2033
    %v2035 = vpop.f32.mrb[0].mxu0
    %v2036 = vadd.f32 0.0, %v2035
    %v2037 = vpop.f32.mrb[0].mxu0
    %v2038 = vadd.f32 0.0, %v2037
    %v2039 = vpop.f32.mrb[0].mxu0
    %v2040 = vadd.f32 0.0, %v2039
    %2041 = vmatprep.mubr.bf16.mxu0 0
    %2042 = vmatmul.mubr.bf16.gmra.mrb[0].mxu0 %v1852
    %v2043 = vpop.f32.mrb[0].mxu0
    %v2044 = vadd.f32 0.0, %v2043
    %v2045 = vpop.f32.mrb[0].mxu0
    %v2046 = vadd.f32 0.0, %v2045
    %v2047 = vpop.f32.mrb[0].mxu0
    %v2048 = vadd.f32 0.0, %v2047
    %v2049 = vpop.f32.mrb[0].mxu0
    %v2050 = vadd.f32 0.0, %v2049
    %2051 = vmatprep.mubr.bf16.mxu0 0
    %2052 = vmatmul.mubr.bf16.gmra.mrb[0].mxu0 %v1853
    %v2053 = vpop.f32.mrb[0].mxu0
    %v2054 = vadd.f32 0.0, %v2053
    %v2055 = vpop.f32.mrb[0].mxu0
    %v2056 = vadd.f32 0.0, %v2055
    %v2057 = vpop.f32.mrb[0].mxu0
    %v2058 = vadd.f32 0.0, %v2057
    %v2059 = vpop.f32.mrb[0].mxu0
    %v2060 = vadd.f32 0.0, %v2059
    %2061 = vmatprep.mubr.bf16.mxu0 0
    %2062 = vmatmul.mubr.bf16.gmra.mrb[0].mxu0 %v1854
    %v2063 = vpop.f32.mrb[0].mxu0
    %v2064 = vadd.f32 0.0, %v2063
    %v2065 = vpop.f32.mrb[0].mxu0
    %v2066 = vadd.f32 0.0, %v2065
    %v2067 = vpop.f32.mrb[0].mxu0
    %v2068 = vadd.f32 0.0, %v2067
    %v2069 = vpop.f32.mrb[0].mxu0
    %v2070 = vadd.f32 0.0, %v2069
    %2071 = vmatprep.mubr.bf16.mxu0 0
    %2072 = vmatmul.mubr.bf16.gmra.mrb[0].mxu0 %v1855
    %v2073 = vpop.f32.mrb[0].mxu0
    %v2074 = vadd.f32 0.0, %v2073
    %v2075 = vpop.f32.mrb[0].mxu0
    %v2076 = vadd.f32 0.0, %v2075
    %v2077 = vpop.f32.mrb[0].mxu0
    %v2078 = vadd.f32 0.0, %v2077
    %v2079 = vpop.f32.mrb[0].mxu0
    %v2080 = vadd.f32 0.0, %v2079
    %2081 = vmatprep.mubr.bf16.mxu0 0
    %2082 = vmatmul.mubr.bf16.gmra.mrb[0].mxu0 %v1856
    %v2083 = vpop.f32.mrb[0].mxu0
    %v2084 = vadd.f32 0.0, %v2083
    %v2085 = vpop.f32.mrb[0].mxu0
    %v2086 = vadd.f32 0.0, %v2085
    %v2087 = vpop.f32.mrb[0].mxu0
    %v2088 = vadd.f32 0.0, %v2087
    %v2089 = vpop.f32.mrb[0].mxu0
    %v2090 = vadd.f32 0.0, %v2089
    %2091 = vmatprep.mubr.bf16.mxu0 0
    %2092 = vmatmul.mubr.bf16.gmra.mrb[0].mxu0 %v1857
    %v2093 = vpop.f32.mrb[0].mxu0
    %v2094 = vadd.f32 0.0, %v2093
    %v2095 = vpop.f32.mrb[0].mxu0
    %v2096 = vadd.f32 0.0, %v2095
    %v2097 = vpop.f32.mrb[0].mxu0
    %v2098 = vadd.f32 0.0, %v2097
    %v2099 = vpop.f32.mrb[0].mxu0
    %v2100 = vadd.f32 0.0, %v2099
    %2101 = vmatprep.mubr.bf16.mxu0 0
    %2102 = vmatmul.mubr.bf16.gmra.mrb[0].mxu0 %v1858
    %v2103 = vpop.f32.mrb[0].mxu0
    %v2104 = vadd.f32 0.0, %v2103
    %v2105 = vpop.f32.mrb[0].mxu0
    %v2106 = vadd.f32 0.0, %v2105
    %v2107 = vpop.f32.mrb[0].mxu0
    %v2108 = vadd.f32 0.0, %v2107
    %v2109 = vpop.f32.mrb[0].mxu0
    %v2110 = vadd.f32 0.0, %v2109
    %2111 = vmatprep.mubr.bf16.mxu0 0
    %2112 = vmatmul.mubr.bf16.gmra.mrb[0].mxu0 %v1859
    %v2113 = vpop.f32.mrb[0].mxu0
    %v2114 = vadd.f32 0.0, %v2113
    %v2115 = vpop.f32.mrb[0].mxu0
    %v2116 = vadd.f32 0.0, %v2115
    %v2117 = vpop.f32.mrb[0].mxu0
    %v2118 = vadd.f32 0.0, %v2117
    %v2119 = vpop.f32.mrb[0].mxu0
    %v2120 = vadd.f32 0.0, %v2119
    %2121 = vmatprep.mubr.bf16.mxu0 0
    %2122 = vmatmul.mubr.bf16.gmra.mrb[0].mxu0 %v1860
    %v2123 = vpop.f32.mrb[0].mxu0
    %v2124 = vadd.f32 0.0, %v2123
    %v2125 = vpop.f32.mrb[0].mxu0
    %v2126 = vadd.f32 0.0, %v2125
    %v2127 = vpop.f32.mrb[0].mxu0
    %v2128 = vadd.f32 0.0, %v2127
    %v2129 = vpop.f32.mrb[0].mxu0
    %v2130 = vadd.f32 0.0, %v2129
    %2131 = vmatprep.mubr.bf16.mxu0 0
    %2132 = vmatmul.mubr.bf16.gmra.mrb[0].mxu0 %v1861
    %v2133 = vpop.f32.mrb[0].mxu0
    %v2134 = vadd.f32 0.0, %v2133
    %v2135 = vpop.f32.mrb[0].mxu0
    %v2136 = vadd.f32 0.0, %v2135
    %v2137 = vpop.f32.mrb[0].mxu0
    %v2138 = vadd.f32 0.0, %v2137
    %v2139 = vpop.f32.mrb[0].mxu0
    %v2140 = vadd.f32 0.0, %v2139
    %2141 = vmatprep.mubr.bf16.mxu0 0
    %2142 = vmatmul.mubr.bf16.gmra.mrb[0].mxu0 %v1862
    %v2143 = vpop.f32.mrb[0].mxu0
    %v2144 = vadd.f32 0.0, %v2143
    %v2145 = vpop.f32.mrb[0].mxu0
    %v2146 = vadd.f32 0.0, %v2145
    %v2147 = vpop.f32.mrb[0].mxu0
    %v2148 = vadd.f32 0.0, %v2147
    %v2149 = vpop.f32.mrb[0].mxu0
    %v2150 = vadd.f32 0.0, %v2149
    %2151 = vdwg.mxu0
    %v2152 = vadd.f32 %v1782, %v1994
    %v2153 = vadd.f32 %v1783, %v1996
    %v2154 = vadd.f32 %v1784, %v1998
    %v2155 = vadd.f32 %v1785, %v2000
    %v2156 = vadd.f32 %v1786, %v2004
    %v2157 = vadd.f32 %v1787, %v2006
    %v2158 = vadd.f32 %v1788, %v2008
    %v2159 = vadd.f32 %v1789, %v2010
    %v2160 = vadd.f32 %v1790, %v2014
    %v2161 = vadd.f32 %v1791, %v2016
    %v2162 = vadd.f32 %v1792, %v2018
    %v2163 = vadd.f32 %v1793, %v2020
    %v2164 = vadd.f32 %v1794, %v2024
    %v2165 = vadd.f32 %v1795, %v2026
    %v2166 = vadd.f32 %v1796, %v2028
    %v2167 = vadd.f32 %v1797, %v2030
    %v2168 = vadd.f32 %v1798, %v2034
    %v2169 = vadd.f32 %v1799, %v2036
    %v2170 = vadd.f32 %v1800, %v2038
    %v2171 = vadd.f32 %v1801, %v2040
    %v2172 = vadd.f32 %v1802, %v2044
    %v2173 = vadd.f32 %v1803, %v2046
    %v2174 = vadd.f32 %v1804, %v2048
    %v2175 = vadd.f32 %v1805, %v2050
    %v2176 = vadd.f32 %v1806, %v2054
    %v2177 = vadd.f32 %v1807, %v2056
    %v2178 = vadd.f32 %v1808, %v2058
    %v2179 = vadd.f32 %v1809, %v2060
    %v2180 = vadd.f32 %v1810, %v2064
    %v2181 = vadd.f32 %v1811, %v2066
    %v2182 = vadd.f32 %v1812, %v2068
    %v2183 = vadd.f32 %v1813, %v2070
    %v2184 = vadd.f32 %v1814, %v2074
    %v2185 = vadd.f32 %v1815, %v2076
    %v2186 = vadd.f32 %v1816, %v2078
    %v2187 = vadd.f32 %v1817, %v2080
    %v2188 = vadd.f32 %v1818, %v2084
    %v2189 = vadd.f32 %v1819, %v2086
    %v2190 = vadd.f32 %v1820, %v2088
    %v2191 = vadd.f32 %v1821, %v2090
    %v2192 = vadd.f32 %v1822, %v2094
    %v2193 = vadd.f32 %v1823, %v2096
    %v2194 = vadd.f32 %v1824, %v2098
    %v2195 = vadd.f32 %v1825, %v2100
    %v2196 = vadd.f32 %v1826, %v2104
    %v2197 = vadd.f32 %v1827, %v2106
    %v2198 = vadd.f32 %v1828, %v2108
    %v2199 = vadd.f32 %v1829, %v2110
    %v2200 = vadd.f32 %v1830, %v2114
    %v2201 = vadd.f32 %v1831, %v2116
    %v2202 = vadd.f32 %v1832, %v2118
    %v2203 = vadd.f32 %v1833, %v2120
    %v2204 = vadd.f32 %v1834, %v2124
    %v2205 = vadd.f32 %v1835, %v2126
    %v2206 = vadd.f32 %v1836, %v2128
    %v2207 = vadd.f32 %v1837, %v2130
    %v2208 = vadd.f32 %v1838, %v2134
    %v2209 = vadd.f32 %v1839, %v2136
    %v2210 = vadd.f32 %v1840, %v2138
    %v2211 = vadd.f32 %v1841, %v2140
    %v2212 = vadd.f32 %v1842, %v2144
    %v2213 = vadd.f32 %v1843, %v2146
    %v2214 = vadd.f32 %v1844, %v2148
    %v2215 = vadd.f32 %v1845, %v2150
    %v2216 = vld [vmem:[%s4] sm:$0x3]
    %v2218 = vlaneseq
    %v2219 = vshrl.u32 %v2218, 7
    %v2220 = vsub.s32 0, %v2219
    %v2221 = vrot.slane %v2216, %v2220
    %v2222 = vlaneseq
    %v2223 = vshrl.u32 %v2222, 7
    %v2224 = vsub.s32 1, %v2223
    %v2225 = vrot.slane %v2216, %v2224
    %v2228 = vadd.f32 %v2152, %v2221
    %v2229 = vadd.f32 %v2153, %v2225
    %v2230 = vadd.f32 %v2154, %v2221
    %v2231 = vadd.f32 %v2155, %v2225
    %v2232 = vadd.f32 %v2156, %v2221
    %v2233 = vadd.f32 %v2157, %v2225
    %v2234 = vadd.f32 %v2158, %v2221
    %v2235 = vadd.f32 %v2159, %v2225
    %v2236 = vadd.f32 %v2160, %v2221
    %v2237 = vadd.f32 %v2161, %v2225
    %v2238 = vadd.f32 %v2162, %v2221
    %v2239 = vadd.f32 %v2163, %v2225
    %v2240 = vadd.f32 %v2164, %v2221
    %v2241 = vadd.f32 %v2165, %v2225
    %v2242 = vadd.f32 %v2166, %v2221
    %v2243 = vadd.f32 %v2167, %v2225
    %v2244 = vadd.f32 %v2168, %v2221
    %v2245 = vadd.f32 %v2169, %v2225
    %v2246 = vadd.f32 %v2170, %v2221
    %v2247 = vadd.f32 %v2171, %v2225
    %v2248 = vadd.f32 %v2172, %v2221
    %v2249 = vadd.f32 %v2173, %v2225
    %v2250 = vadd.f32 %v2174, %v2221
    %v2251 = vadd.f32 %v2175, %v2225
    %v2252 = vadd.f32 %v2176, %v2221
    %v2253 = vadd.f32 %v2177, %v2225
    %v2254 = vadd.f32 %v2178, %v2221
    %v2255 = vadd.f32 %v2179, %v2225
    %v2256 = vadd.f32 %v2180, %v2221
    %v2257 = vadd.f32 %v2181, %v2225
    %v2258 = vadd.f32 %v2182, %v2221
    %v2259 = vadd.f32 %v2183, %v2225
    %v2260 = vadd.f32 %v2184, %v2221
    %v2261 = vadd.f32 %v2185, %v2225
    %v2262 = vadd.f32 %v2186, %v2221
    %v2263 = vadd.f32 %v2187, %v2225
    %v2264 = vadd.f32 %v2188, %v2221
    %v2265 = vadd.f32 %v2189, %v2225
    %v2266 = vadd.f32 %v2190, %v2221
    %v2267 = vadd.f32 %v2191, %v2225
    %v2268 = vadd.f32 %v2192, %v2221
    %v2269 = vadd.f32 %v2193, %v2225
    %v2270 = vadd.f32 %v2194, %v2221
    %v2271 = vadd.f32 %v2195, %v2225
    %v2272 = vadd.f32 %v2196, %v2221
    %v2273 = vadd.f32 %v2197, %v2225
    %v2274 = vadd.f32 %v2198, %v2221
    %v2275 = vadd.f32 %v2199, %v2225
    %v2276 = vadd.f32 %v2200, %v2221
    %v2277 = vadd.f32 %v2201, %v2225
    %v2278 = vadd.f32 %v2202, %v2221
    %v2279 = vadd.f32 %v2203, %v2225
    %v2280 = vadd.f32 %v2204, %v2221
    %v2281 = vadd.f32 %v2205, %v2225
    %v2282 = vadd.f32 %v2206, %v2221
    %v2283 = vadd.f32 %v2207, %v2225
    %v2284 = vadd.f32 %v2208, %v2221
    %v2285 = vadd.f32 %v2209, %v2225
    %v2286 = vadd.f32 %v2210, %v2221
    %v2287 = vadd.f32 %v2211, %v2225
    %v2288 = vadd.f32 %v2212, %v2221
    %v2289 = vadd.f32 %v2213, %v2225
    %v2290 = vadd.f32 %v2214, %v2221
    %v2291 = vadd.f32 %v2215, %v2225
    %v2292 = vmax.f32 %v2228, 0.0
    %v2293 = vmax.f32 %v2229, 0.0
    %v2294 = vmax.f32 %v2230, 0.0
    %v2295 = vmax.f32 %v2231, 0.0
    %v2296 = vmax.f32 %v2232, 0.0
    %v2297 = vmax.f32 %v2233, 0.0
    %v2298 = vmax.f32 %v2234, 0.0
    %v2299 = vmax.f32 %v2235, 0.0
    %v2300 = vmax.f32 %v2236, 0.0
    %v2301 = vmax.f32 %v2237, 0.0
    %v2302 = vmax.f32 %v2238, 0.0
    %v2303 = vmax.f32 %v2239, 0.0
    %v2304 = vmax.f32 %v2240, 0.0
    %v2305 = vmax.f32 %v2241, 0.0
    %v2306 = vmax.f32 %v2242, 0.0
    %v2307 = vmax.f32 %v2243, 0.0
    %v2308 = vmax.f32 %v2244, 0.0
    %v2309 = vmax.f32 %v2245, 0.0
    %v2310 = vmax.f32 %v2246, 0.0
    %v2311 = vmax.f32 %v2247, 0.0
    %v2312 = vmax.f32 %v2248, 0.0
    %v2313 = vmax.f32 %v2249, 0.0
    %v2314 = vmax.f32 %v2250, 0.0
    %v2315 = vmax.f32 %v2251, 0.0
    %v2316 = vmax.f32 %v2252, 0.0
    %v2317 = vmax.f32 %v2253, 0.0
    %v2318 = vmax.f32 %v2254, 0.0
    %v2319 = vmax.f32 %v2255, 0.0
    %v2320 = vmax.f32 %v2256, 0.0
    %v2321 = vmax.f32 %v2257, 0.0
    %v2322 = vmax.f32 %v2258, 0.0
    %v2323 = vmax.f32 %v2259, 0.0
    %v2324 = vmax.f32 %v2260, 0.0
    %v2325 = vmax.f32 %v2261, 0.0
    %v2326 = vmax.f32 %v2262, 0.0
    %v2327 = vmax.f32 %v2263, 0.0
    %v2328 = vmax.f32 %v2264, 0.0
    %v2329 = vmax.f32 %v2265, 0.0
    %v2330 = vmax.f32 %v2266, 0.0
    %v2331 = vmax.f32 %v2267, 0.0
    %v2332 = vmax.f32 %v2268, 0.0
    %v2333 = vmax.f32 %v2269, 0.0
    %v2334 = vmax.f32 %v2270, 0.0
    %v2335 = vmax.f32 %v2271, 0.0
    %v2336 = vmax.f32 %v2272, 0.0
    %v2337 = vmax.f32 %v2273, 0.0
    %v2338 = vmax.f32 %v2274, 0.0
    %v2339 = vmax.f32 %v2275, 0.0
    %v2340 = vmax.f32 %v2276, 0.0
    %v2341 = vmax.f32 %v2277, 0.0
    %v2342 = vmax.f32 %v2278, 0.0
    %v2343 = vmax.f32 %v2279, 0.0
    %v2344 = vmax.f32 %v2280, 0.0
    %v2345 = vmax.f32 %v2281, 0.0
    %v2346 = vmax.f32 %v2282, 0.0
    %v2347 = vmax.f32 %v2283, 0.0
    %v2348 = vmax.f32 %v2284, 0.0
    %v2349 = vmax.f32 %v2285, 0.0
    %v2350 = vmax.f32 %v2286, 0.0
    %v2351 = vmax.f32 %v2287, 0.0
    %v2352 = vmax.f32 %v2288, 0.0
    %v2353 = vmax.f32 %v2289, 0.0
    %v2354 = vmax.f32 %v2290, 0.0
    %v2355 = vmax.f32 %v2291, 0.0
    %2356 = vst [vmem:[#allocation3] sm:$0xff] 0
    %2357 = vst [vmem:[#allocation3 + $0x8] sm:$0xff] 0
    %2358 = vst [vmem:[#allocation3 + $0x10] sm:$0xff] 0
    %2359 = vst [vmem:[#allocation3 + $0x18] sm:$0xff] 0
    %2360 = vst [vmem:[#allocation3 + $0x20] sm:$0xff] 0
    %2361 = vst [vmem:[#allocation3 + $0x28] sm:$0xff] 0
    %s2362 = scalar_lea.vmem [#allocation3], 304
    %2363 = vst [vmem:[%s2362] sm:$0xff] 0
    %2364 = vst [vmem:[%s2362 + $0x8] sm:$0xff] 0
    %2365 = vst [vmem:[%s2362 + $0x10] sm:$0xff] 0
    %2366 = vst [vmem:[%s2362 + $0x18] sm:$0xff] 0
    %2367 = vst [vmem:[%s2362 + $0x20] sm:$0xff] 0
    %2368 = vst [vmem:[%s2362 + $0x28] sm:$0xff] 0
    %2369 = vst [vmem:[%s2362 + $0x30] sm:$0xff] 0
    %2370 = vst [vmem:[%s2362 + $0x38] sm:$0xff] 0
    %v2371 = vpack.c.bf16 %v2294, %v2292
    %v2372 = vpack.c.bf16 %v2295, %v2293
    %v2373 = vpack.c.bf16 %v2298, %v2296
    %v2374 = vpack.c.bf16 %v2299, %v2297
    %v2375 = vpack.c.bf16 %v2302, %v2300
    %v2376 = vpack.c.bf16 %v2303, %v2301
    %v2377 = vpack.c.bf16 %v2306, %v2304
    %v2378 = vpack.c.bf16 %v2307, %v2305
    %v2379 = vpack.c.bf16 %v2310, %v2308
    %v2380 = vpack.c.bf16 %v2311, %v2309
    %v2381 = vpack.c.bf16 %v2314, %v2312
    %v2382 = vpack.c.bf16 %v2315, %v2313
    %v2383 = vpack.c.bf16 %v2318, %v2316
    %v2384 = vpack.c.bf16 %v2319, %v2317
    %v2385 = vpack.c.bf16 %v2322, %v2320
    %v2386 = vpack.c.bf16 %v2323, %v2321
    %v2387 = vpack.c.bf16 %v2326, %v2324
    %v2388 = vpack.c.bf16 %v2327, %v2325
    %v2389 = vpack.c.bf16 %v2330, %v2328
    %v2390 = vpack.c.bf16 %v2331, %v2329
    %v2391 = vpack.c.bf16 %v2334, %v2332
    %v2392 = vpack.c.bf16 %v2335, %v2333
    %v2393 = vpack.c.bf16 %v2338, %v2336
    %v2394 = vpack.c.bf16 %v2339, %v2337
    %v2395 = vpack.c.bf16 %v2342, %v2340
    %v2396 = vpack.c.bf16 %v2343, %v2341
    %v2397 = vpack.c.bf16 %v2346, %v2344
    %v2398 = vpack.c.bf16 %v2347, %v2345
    %v2399 = vpack.c.bf16 %v2350, %v2348
    %v2400 = vpack.c.bf16 %v2351, %v2349
    %v2401 = vpack.c.bf16 %v2354, %v2352
    %v2402 = vpack.c.bf16 %v2355, %v2353
    %s2403 = scalar_lea.vmem [#allocation3], 48
    %2404 = vst [vmem:[%s2403] sm:$0xff] %v2371
    %2405 = vst [vmem:[%s2403 + $0x8] sm:$0xff] %v2372
    %2406 = vst [vmem:[%s2403 + $0x10] sm:$0xff] %v2373
    %2407 = vst [vmem:[%s2403 + $0x18] sm:$0xff] %v2374
    %2408 = vst [vmem:[%s2403 + $0x20] sm:$0xff] %v2375
    %2409 = vst [vmem:[%s2403 + $0x28] sm:$0xff] %v2376
    %2410 = vst [vmem:[%s2403 + $0x30] sm:$0xff] %v2377
    %2411 = vst [vmem:[%s2403 + $0x38] sm:$0xff] %v2378
    %2412 = vst [vmem:[%s2403 + $0x40] sm:$0xff] %v2379
    %2413 = vst [vmem:[%s2403 + $0x48] sm:$0xff] %v2380
    %2414 = vst [vmem:[%s2403 + $0x50] sm:$0xff] %v2381
    %2415 = vst [vmem:[%s2403 + $0x58] sm:$0xff] %v2382
    %2416 = vst [vmem:[%s2403 + $0x60] sm:$0xff] %v2383
    %2417 = vst [vmem:[%s2403 + $0x68] sm:$0xff] %v2384
    %2418 = vst [vmem:[%s2403 + $0x70] sm:$0xff] %v2385
    %2419 = vst [vmem:[%s2403 + $0x78] sm:$0xff] %v2386
    %2420 = vst [vmem:[%s2403 + $0x80] sm:$0xff] %v2387
    %2421 = vst [vmem:[%s2403 + $0x88] sm:$0xff] %v2388
    %2422 = vst [vmem:[%s2403 + $0x90] sm:$0xff] %v2389
    %2423 = vst [vmem:[%s2403 + $0x98] sm:$0xff] %v2390
    %2424 = vst [vmem:[%s2403 + $0xa0] sm:$0xff] %v2391
    %2425 = vst [vmem:[%s2403 + $0xa8] sm:$0xff] %v2392
    %2426 = vst [vmem:[%s2403 + $0xb0] sm:$0xff] %v2393
    %2427 = vst [vmem:[%s2403 + $0xb8] sm:$0xff] %v2394
    %2428 = vst [vmem:[%s2403 + $0xc0] sm:$0xff] %v2395
    %2429 = vst [vmem:[%s2403 + $0xc8] sm:$0xff] %v2396
    %2430 = vst [vmem:[%s2403 + $0xd0] sm:$0xff] %v2397
    %2431 = vst [vmem:[%s2403 + $0xd8] sm:$0xff] %v2398
    %2432 = vst [vmem:[%s2403 + $0xe0] sm:$0xff] %v2399
    %2433 = vst [vmem:[%s2403 + $0xe8] sm:$0xff] %v2400
    %2434 = vst [vmem:[%s2403 + $0xf0] sm:$0xff] %v2401
    %2435 = vst [vmem:[%s2403 + $0xf8] sm:$0xff] %v2402
    %v2436 = vld [vmem:[#allocation3] sm:$0xff]
    %v2437 = vld [vmem:[#allocation3 + $0x8] sm:$0xff]
    %v2438 = vld [vmem:[#allocation3 + $0x10] sm:$0xff]
    %v2439 = vld [vmem:[#allocation3 + $0x18] sm:$0xff]
    %v2440 = vld [vmem:[#allocation3 + $0x20] sm:$0xff]
    %v2441 = vld [vmem:[#allocation3 + $0x28] sm:$0xff]
    %v2442 = vld [vmem:[#allocation3 + $0x30] sm:$0xff]
    %v2443 = vld [vmem:[#allocation3 + $0x38] sm:$0xff]
    %v2444 = vld [vmem:[#allocation3 + $0x40] sm:$0xff]
    %v2445 = vld [vmem:[#allocation3 + $0x48] sm:$0xff]
    %v2446 = vld [vmem:[#allocation3 + $0x50] sm:$0xff]
    %v2447 = vld [vmem:[#allocation3 + $0x58] sm:$0xff]
    %v2448 = vld [vmem:[#allocation3 + $0x60] sm:$0xff]
    %v2449 = vld [vmem:[#allocation3 + $0x68] sm:$0xff]
    %v2450 = vld [vmem:[#allocation3 + $0x70] sm:$0xff]
    %v2451 = vld [vmem:[#allocation3 + $0x78] sm:$0xff]
    %v2452 = vld [vmem:[#allocation3 + $0x80] sm:$0xff]
    %v2453 = vld [vmem:[#allocation3 + $0x88] sm:$0xff]
    %v2454 = vld [vmem:[#allocation3 + $0x90] sm:$0xff]
    %v2455 = vld [vmem:[#allocation3 + $0x98] sm:$0xff]
    %v2456 = vld [vmem:[#allocation3 + $0xa0] sm:$0xff]
    %v2457 = vld [vmem:[#allocation3 + $0xa8] sm:$0xff]
    %v2458 = vld [vmem:[#allocation3 + $0xb0] sm:$0xff]
    %v2459 = vld [vmem:[#allocation3 + $0xb8] sm:$0xff]
    %v2460 = vld [vmem:[#allocation3 + $0xc0] sm:$0xff]
    %v2461 = vld [vmem:[#allocation3 + $0xc8] sm:$0xff]
    %v2462 = vld [vmem:[#allocation3 + $0xd0] sm:$0xff]
    %v2463 = vld [vmem:[#allocation3 + $0xd8] sm:$0xff]
    %v2464 = vld [vmem:[#allocation3 + $0xe0] sm:$0xff]
    %v2465 = vld [vmem:[#allocation3 + $0xe8] sm:$0xff]
    %v2466 = vld [vmem:[#allocation3 + $0xf0] sm:$0xff]
    %v2467 = vld [vmem:[#allocation3 + $0xf8] sm:$0xff]
    %v2468 = vld [vmem:[#allocation9] sm:$0xf]
    %v2469 = vld [vmem:[#allocation9 + $0x4] sm:$0xf]
    %v2470 = vld [vmem:[#allocation9 + $0x8] sm:$0xf]
    %v2471 = vld [vmem:[#allocation9 + $0xc] sm:$0xf]
    %v2472 = vld [vmem:[#allocation9 + $0x10] sm:$0xf]
    %v2473 = vld [vmem:[#allocation9 + $0x14] sm:$0xf]
    %v2474 = vld [vmem:[#allocation9 + $0x18] sm:$0xf]
    %v2475 = vld [vmem:[#allocation9 + $0x1c] sm:$0xf]
    %v2476 = vld [vmem:[#allocation9 + $0x20] sm:$0xf]
    %v2477 = vld [vmem:[#allocation9 + $0x24] sm:$0xf]
    %v2478 = vld [vmem:[#allocation9 + $0x28] sm:$0xf]
    %v2479 = vld [vmem:[#allocation9 + $0x2c] sm:$0xf]
    %v2480 = vld [vmem:[#allocation9 + $0x30] sm:$0xf]
    %v2481 = vld [vmem:[#allocation9 + $0x34] sm:$0xf]
    %v2482 = vld [vmem:[#allocation9 + $0x38] sm:$0xf]
    %v2483 = vld [vmem:[#allocation9 + $0x3c] sm:$0xf]
    %v2484 = vld [vmem:[#allocation9 + $0x40] sm:$0xf]
    %v2485 = vld [vmem:[#allocation9 + $0x44] sm:$0xf]
    %v2486 = vld [vmem:[#allocation9 + $0x48] sm:$0xf]
    %v2487 = vld [vmem:[#allocation9 + $0x4c] sm:$0xf]
    %v2488 = vld [vmem:[#allocation9 + $0x50] sm:$0xf]
    %v2489 = vld [vmem:[#allocation9 + $0x54] sm:$0xf]
    %v2490 = vld [vmem:[#allocation9 + $0x58] sm:$0xf]
    %v2491 = vld [vmem:[#allocation9 + $0x5c] sm:$0xf]
    %v2492 = vld [vmem:[#allocation9 + $0x60] sm:$0xf]
    %v2493 = vld [vmem:[#allocation9 + $0x64] sm:$0xf]
    %v2494 = vld [vmem:[#allocation9 + $0x68] sm:$0xf]
    %v2495 = vld [vmem:[#allocation9 + $0x6c] sm:$0xf]
    %v2496 = vld [vmem:[#allocation9 + $0x70] sm:$0xf]
    %v2497 = vld [vmem:[#allocation9 + $0x74] sm:$0xf]
    %v2498 = vld [vmem:[#allocation9 + $0x78] sm:$0xf]
    %v2499 = vld [vmem:[#allocation9 + $0x7c] sm:$0xf]
    %s2500 = scalar_lea.vmem [#allocation3], 16
    %v2501 = vld [vmem:[%s2500] sm:$0xff]
    %v2502 = vld [vmem:[%s2500 + $0x8] sm:$0xff]
    %v2503 = vld [vmem:[%s2500 + $0x10] sm:$0xff]
    %v2504 = vld [vmem:[%s2500 + $0x18] sm:$0xff]
    %v2505 = vld [vmem:[%s2500 + $0x20] sm:$0xff]
    %v2506 = vld [vmem:[%s2500 + $0x28] sm:$0xff]
    %v2507 = vld [vmem:[%s2500 + $0x30] sm:$0xff]
    %v2508 = vld [vmem:[%s2500 + $0x38] sm:$0xff]
    %v2509 = vld [vmem:[%s2500 + $0x40] sm:$0xff]
    %v2510 = vld [vmem:[%s2500 + $0x48] sm:$0xff]
    %v2511 = vld [vmem:[%s2500 + $0x50] sm:$0xff]
    %v2512 = vld [vmem:[%s2500 + $0x58] sm:$0xff]
    %v2513 = vld [vmem:[%s2500 + $0x60] sm:$0xff]
    %v2514 = vld [vmem:[%s2500 + $0x68] sm:$0xff]
    %v2515 = vld [vmem:[%s2500 + $0x70] sm:$0xff]
    %v2516 = vld [vmem:[%s2500 + $0x78] sm:$0xff]
    %v2517 = vld [vmem:[%s2500 + $0x80] sm:$0xff]
    %v2518 = vld [vmem:[%s2500 + $0x88] sm:$0xff]
    %v2519 = vld [vmem:[%s2500 + $0x90] sm:$0xff]
    %v2520 = vld [vmem:[%s2500 + $0x98] sm:$0xff]
    %v2521 = vld [vmem:[%s2500 + $0xa0] sm:$0xff]
    %v2522 = vld [vmem:[%s2500 + $0xa8] sm:$0xff]
    %v2523 = vld [vmem:[%s2500 + $0xb0] sm:$0xff]
    %v2524 = vld [vmem:[%s2500 + $0xb8] sm:$0xff]
    %v2525 = vld [vmem:[%s2500 + $0xc0] sm:$0xff]
    %v2526 = vld [vmem:[%s2500 + $0xc8] sm:$0xff]
    %v2527 = vld [vmem:[%s2500 + $0xd0] sm:$0xff]
    %v2528 = vld [vmem:[%s2500 + $0xd8] sm:$0xff]
    %v2529 = vld [vmem:[%s2500 + $0xe0] sm:$0xff]
    %v2530 = vld [vmem:[%s2500 + $0xe8] sm:$0xff]
    %v2531 = vld [vmem:[%s2500 + $0xf0] sm:$0xff]
    %v2532 = vld [vmem:[%s2500 + $0xf8] sm:$0xff]
    %v2533 = vld [vmem:[#allocation9 + $0x80] sm:$0xf]
    %v2534 = vld [vmem:[#allocation9 + $0x84] sm:$0xf]
    %v2535 = vld [vmem:[#allocation9 + $0x88] sm:$0xf]
    %v2536 = vld [vmem:[#allocation9 + $0x8c] sm:$0xf]
    %v2537 = vld [vmem:[#allocation9 + $0x90] sm:$0xf]
    %v2538 = vld [vmem:[#allocation9 + $0x94] sm:$0xf]
    %v2539 = vld [vmem:[#allocation9 + $0x98] sm:$0xf]
    %v2540 = vld [vmem:[#allocation9 + $0x9c] sm:$0xf]
    %v2541 = vld [vmem:[#allocation9 + $0xa0] sm:$0xf]
    %v2542 = vld [vmem:[#allocation9 + $0xa4] sm:$0xf]
    %v2543 = vld [vmem:[#allocation9 + $0xa8] sm:$0xf]
    %v2544 = vld [vmem:[#allocation9 + $0xac] sm:$0xf]
    %v2545 = vld [vmem:[#allocation9 + $0xb0] sm:$0xf]
    %v2546 = vld [vmem:[#allocation9 + $0xb4] sm:$0xf]
    %v2547 = vld [vmem:[#allocation9 + $0xb8] sm:$0xf]
    %v2548 = vld [vmem:[#allocation9 + $0xbc] sm:$0xf]
    %v2549 = vld [vmem:[#allocation9 + $0xc0] sm:$0xf]
    %v2550 = vld [vmem:[#allocation9 + $0xc4] sm:$0xf]
    %v2551 = vld [vmem:[#allocation9 + $0xc8] sm:$0xf]
    %v2552 = vld [vmem:[#allocation9 + $0xcc] sm:$0xf]
    %v2553 = vld [vmem:[#allocation9 + $0xd0] sm:$0xf]
    %v2554 = vld [vmem:[#allocation9 + $0xd4] sm:$0xf]
    %v2555 = vld [vmem:[#allocation9 + $0xd8] sm:$0xf]
    %v2556 = vld [vmem:[#allocation9 + $0xdc] sm:$0xf]
    %v2557 = vld [vmem:[#allocation9 + $0xe0] sm:$0xf]
    %v2558 = vld [vmem:[#allocation9 + $0xe4] sm:$0xf]
    %v2559 = vld [vmem:[#allocation9 + $0xe8] sm:$0xf]
    %v2560 = vld [vmem:[#allocation9 + $0xec] sm:$0xf]
    %v2561 = vld [vmem:[#allocation9 + $0xf0] sm:$0xf]
    %v2562 = vld [vmem:[#allocation9 + $0xf4] sm:$0xf]
    %v2563 = vld [vmem:[#allocation9 + $0xf8] sm:$0xf]
    %v2564 = vld [vmem:[#allocation9 + $0xfc] sm:$0xf]
    %v2597 = vunpack.c.l.b16 %v2533
    %v2598 = vunpack.c.l.b16 %v2534
    %v2599 = vunpack.c.l.b16 %v2535
    %v2600 = vunpack.c.l.b16 %v2536
    %v2601 = vunpack.c.l.b16 %v2537
    %v2602 = vunpack.c.l.b16 %v2538
    %v2603 = vunpack.c.l.b16 %v2539
    %v2604 = vunpack.c.l.b16 %v2540
    %v2605 = vunpack.c.l.b16 %v2541
    %v2606 = vunpack.c.l.b16 %v2542
    %v2607 = vunpack.c.l.b16 %v2543
    %v2608 = vunpack.c.l.b16 %v2544
    %v2609 = vunpack.c.l.b16 %v2545
    %v2610 = vunpack.c.l.b16 %v2546
    %v2611 = vunpack.c.l.b16 %v2547
    %v2612 = vunpack.c.l.b16 %v2548
    %v2613 = vunpack.c.l.b16 %v2549
    %v2614 = vunpack.c.l.b16 %v2550
    %v2615 = vunpack.c.l.b16 %v2551
    %v2616 = vunpack.c.l.b16 %v2552
    %v2617 = vunpack.c.l.b16 %v2553
    %v2618 = vunpack.c.l.b16 %v2554
    %v2619 = vunpack.c.l.b16 %v2555
    %v2620 = vunpack.c.l.b16 %v2556
    %v2621 = vunpack.c.l.b16 %v2557
    %v2622 = vunpack.c.l.b16 %v2558
    %v2623 = vunpack.c.l.b16 %v2559
    %v2624 = vunpack.c.l.b16 %v2560
    %v2625 = vunpack.c.l.b16 %v2561
    %v2626 = vunpack.c.l.b16 %v2562
    %v2627 = vunpack.c.l.b16 %v2563
    %v2628 = vunpack.c.l.b16 %v2564
    %v2629 = vpack.c.b16 %v2598, %v2597
    %v2630 = vpack.c.b16 %v2600, %v2599
    %v2631 = vpack.c.b16 %v2602, %v2601
    %v2632 = vpack.c.b16 %v2604, %v2603
    %v2633 = vpack.c.b16 %v2606, %v2605
    %v2634 = vpack.c.b16 %v2608, %v2607
    %v2635 = vpack.c.b16 %v2610, %v2609
    %v2636 = vpack.c.b16 %v2612, %v2611
    %v2637 = vpack.c.b16 %v2614, %v2613
    %v2638 = vpack.c.b16 %v2616, %v2615
    %v2639 = vpack.c.b16 %v2618, %v2617
    %v2640 = vpack.c.b16 %v2620, %v2619
    %v2641 = vpack.c.b16 %v2622, %v2621
    %v2642 = vpack.c.b16 %v2624, %v2623
    %v2643 = vpack.c.b16 %v2626, %v2625
    %v2644 = vpack.c.b16 %v2628, %v2627
    %2661 = vmatprep.subr.bf16.mxu0 0
    %2662 = vmatpush1.bf16.msra.mxu0 %v2629
    %2663 = vmatprep.subr.bf16.mxu0 0
    %2664 = vmatpush1.bf16.msra.mxu0 %v2630
    %2665 = vmatprep.subr.bf16.mxu0 0
    %2666 = vmatpush1.bf16.msra.mxu0 %v2631
    %2667 = vmatprep.subr.bf16.mxu0 0
    %2668 = vmatpush1.bf16.msra.mxu0 %v2632
    %2669 = vmatprep.subr.bf16.mxu0 0
    %2670 = vmatpush1.bf16.msra.mxu0 %v2633
    %2671 = vmatprep.subr.bf16.mxu0 0
    %2672 = vmatpush1.bf16.msra.mxu0 %v2634
    %2673 = vmatprep.subr.bf16.mxu0 0
    %2674 = vmatpush1.bf16.msra.mxu0 %v2635
    %2675 = vmatprep.subr.bf16.mxu0 0
    %2676 = vmatpush1.bf16.msra.mxu0 %v2636
    %2677 = vmatprep.subr.bf16.mxu0 0
    %2678 = vmatpush1.bf16.msra.mxu0 %v2637
    %2679 = vmatprep.subr.bf16.mxu0 0
    %2680 = vmatpush1.bf16.msra.mxu0 %v2638
    %2681 = vmatprep.subr.bf16.mxu0 0
    %2682 = vmatpush1.bf16.msra.mxu0 %v2639
    %2683 = vmatprep.subr.bf16.mxu0 0
    %2684 = vmatpush1.bf16.msra.mxu0 %v2640
    %2685 = vmatprep.subr.bf16.mxu0 0
    %2686 = vmatpush1.bf16.msra.mxu0 %v2641
    %2687 = vmatprep.subr.bf16.mxu0 0
    %2688 = vmatpush1.bf16.msra.mxu0 %v2642
    %2689 = vmatprep.subr.bf16.mxu0 0
    %2690 = vmatpush1.bf16.msra.mxu0 %v2643
    %2691 = vmatprep.subr.bf16.mxu0 0
    %2692 = vmatpush1.bf16.msra.mxu0 %v2644
    %2693 = vmatprep.mubr.bf16.mxu0 %v2502
    %2694 = vmatmul.mubr.bf16.gmra.mrb[0].mxu0 %v2501
    %v2695 = vpop.f32.mrb[0].mxu0
    %v2696 = vadd.f32 0.0, %v2695
    %v2697 = vpop.f32.mrb[0].mxu0
    %v2698 = vpop.f32.mrb[0].mxu0
    %v2699 = vadd.f32 0.0, %v2698
    %v2700 = vpop.f32.mrb[0].mxu0
    %2701 = vmatprep.mubr.bf16.mxu0 %v2504
    %2702 = vmatmul.mubr.bf16.gmra.mrb[0].mxu0 %v2503
    %v2703 = vpop.f32.mrb[0].mxu0
    %v2704 = vadd.f32 0.0, %v2703
    %v2705 = vpop.f32.mrb[0].mxu0
    %v2706 = vpop.f32.mrb[0].mxu0
    %v2707 = vadd.f32 0.0, %v2706
    %v2708 = vpop.f32.mrb[0].mxu0
    %2709 = vmatprep.mubr.bf16.mxu0 %v2506
    %2710 = vmatmul.mubr.bf16.gmra.mrb[0].mxu0 %v2505
    %v2711 = vpop.f32.mrb[0].mxu0
    %v2712 = vadd.f32 0.0, %v2711
    %v2713 = vpop.f32.mrb[0].mxu0
    %v2714 = vpop.f32.mrb[0].mxu0
    %v2715 = vadd.f32 0.0, %v2714
    %v2716 = vpop.f32.mrb[0].mxu0
    %2717 = vmatprep.mubr.bf16.mxu0 %v2508
    %2718 = vmatmul.mubr.bf16.gmra.mrb[0].mxu0 %v2507
    %v2719 = vpop.f32.mrb[0].mxu0
    %v2720 = vadd.f32 0.0, %v2719
    %v2721 = vpop.f32.mrb[0].mxu0
    %v2722 = vpop.f32.mrb[0].mxu0
    %v2723 = vadd.f32 0.0, %v2722
    %v2724 = vpop.f32.mrb[0].mxu0
    %2725 = vmatprep.mubr.bf16.mxu0 %v2510
    %2726 = vmatmul.mubr.bf16.gmra.mrb[0].mxu0 %v2509
    %v2727 = vpop.f32.mrb[0].mxu0
    %v2728 = vadd.f32 0.0, %v2727
    %v2729 = vpop.f32.mrb[0].mxu0
    %v2730 = vpop.f32.mrb[0].mxu0
    %v2731 = vadd.f32 0.0, %v2730
    %v2732 = vpop.f32.mrb[0].mxu0
    %2733 = vmatprep.mubr.bf16.mxu0 %v2512
    %2734 = vmatmul.mubr.bf16.gmra.mrb[0].mxu0 %v2511
    %v2735 = vpop.f32.mrb[0].mxu0
    %v2736 = vadd.f32 0.0, %v2735
    %v2737 = vpop.f32.mrb[0].mxu0
    %v2738 = vpop.f32.mrb[0].mxu0
    %v2739 = vadd.f32 0.0, %v2738
    %v2740 = vpop.f32.mrb[0].mxu0
    %2741 = vmatprep.mubr.bf16.mxu0 %v2514
    %2742 = vmatmul.mubr.bf16.gmra.mrb[0].mxu0 %v2513
    %v2743 = vpop.f32.mrb[0].mxu0
    %v2744 = vadd.f32 0.0, %v2743
    %v2745 = vpop.f32.mrb[0].mxu0
    %v2746 = vpop.f32.mrb[0].mxu0
    %v2747 = vadd.f32 0.0, %v2746
    %v2748 = vpop.f32.mrb[0].mxu0
    %2749 = vmatprep.mubr.bf16.mxu0 %v2516
    %2750 = vmatmul.mubr.bf16.gmra.mrb[0].mxu0 %v2515
    %v2751 = vpop.f32.mrb[0].mxu0
    %v2752 = vadd.f32 0.0, %v2751
    %v2753 = vpop.f32.mrb[0].mxu0
    %v2754 = vpop.f32.mrb[0].mxu0
    %v2755 = vadd.f32 0.0, %v2754
    %v2756 = vpop.f32.mrb[0].mxu0
    %2757 = vmatprep.mubr.bf16.mxu0 %v2518
    %2758 = vmatmul.mubr.bf16.gmra.mrb[0].mxu0 %v2517
    %v2759 = vpop.f32.mrb[0].mxu0
    %v2760 = vadd.f32 0.0, %v2759
    %v2761 = vpop.f32.mrb[0].mxu0
    %v2762 = vpop.f32.mrb[0].mxu0
    %v2763 = vadd.f32 0.0, %v2762
    %v2764 = vpop.f32.mrb[0].mxu0
    %2765 = vmatprep.mubr.bf16.mxu0 %v2520
    %2766 = vmatmul.mubr.bf16.gmra.mrb[0].mxu0 %v2519
    %v2767 = vpop.f32.mrb[0].mxu0
    %v2768 = vadd.f32 0.0, %v2767
    %v2769 = vpop.f32.mrb[0].mxu0
    %v2770 = vpop.f32.mrb[0].mxu0
    %v2771 = vadd.f32 0.0, %v2770
    %v2772 = vpop.f32.mrb[0].mxu0
    %2773 = vmatprep.mubr.bf16.mxu0 %v2522
    %2774 = vmatmul.mubr.bf16.gmra.mrb[0].mxu0 %v2521
    %v2775 = vpop.f32.mrb[0].mxu0
    %v2776 = vadd.f32 0.0, %v2775
    %v2777 = vpop.f32.mrb[0].mxu0
    %v2778 = vpop.f32.mrb[0].mxu0
    %v2779 = vadd.f32 0.0, %v2778
    %v2780 = vpop.f32.mrb[0].mxu0
    %2781 = vmatprep.mubr.bf16.mxu0 %v2524
    %2782 = vmatmul.mubr.bf16.gmra.mrb[0].mxu0 %v2523
    %v2783 = vpop.f32.mrb[0].mxu0
    %v2784 = vadd.f32 0.0, %v2783
    %v2785 = vpop.f32.mrb[0].mxu0
    %v2786 = vpop.f32.mrb[0].mxu0
    %v2787 = vadd.f32 0.0, %v2786
    %v2788 = vpop.f32.mrb[0].mxu0
    %2789 = vmatprep.mubr.bf16.mxu0 %v2526
    %2790 = vmatmul.mubr.bf16.gmra.mrb[0].mxu0 %v2525
    %v2791 = vpop.f32.mrb[0].mxu0
    %v2792 = vadd.f32 0.0, %v2791
    %v2793 = vpop.f32.mrb[0].mxu0
    %v2794 = vpop.f32.mrb[0].mxu0
    %v2795 = vadd.f32 0.0, %v2794
    %v2796 = vpop.f32.mrb[0].mxu0
    %2797 = vmatprep.mubr.bf16.mxu0 %v2528
    %2798 = vmatmul.mubr.bf16.gmra.mrb[0].mxu0 %v2527
    %v2799 = vpop.f32.mrb[0].mxu0
    %v2800 = vadd.f32 0.0, %v2799
    %v2801 = vpop.f32.mrb[0].mxu0
    %v2802 = vpop.f32.mrb[0].mxu0
    %v2803 = vadd.f32 0.0, %v2802
    %v2804 = vpop.f32.mrb[0].mxu0
    %2805 = vmatprep.mubr.bf16.mxu0 %v2530
    %2806 = vmatmul.mubr.bf16.gmra.mrb[0].mxu0 %v2529
    %v2807 = vpop.f32.mrb[0].mxu0
    %v2808 = vadd.f32 0.0, %v2807
    %v2809 = vpop.f32.mrb[0].mxu0
    %v2810 = vpop.f32.mrb[0].mxu0
    %v2811 = vadd.f32 0.0, %v2810
    %v2812 = vpop.f32.mrb[0].mxu0
    %2813 = vmatprep.mubr.bf16.mxu0 %v2532
    %2814 = vmatmul.mubr.bf16.gmra.mrb[0].mxu0 %v2531
    %v2815 = vpop.f32.mrb[0].mxu0
    %v2816 = vadd.f32 0.0, %v2815
    %v2817 = vpop.f32.mrb[0].mxu0
    %v2818 = vpop.f32.mrb[0].mxu0
    %v2819 = vadd.f32 0.0, %v2818
    %v2820 = vpop.f32.mrb[0].mxu0
    %2821 = vdwg.mxu0
    %v2854 = vunpack.c.l.b16 %v2468
    %v2855 = vunpack.c.l.b16 %v2469
    %v2856 = vunpack.c.l.b16 %v2470
    %v2857 = vunpack.c.l.b16 %v2471
    %v2858 = vunpack.c.l.b16 %v2472
    %v2859 = vunpack.c.l.b16 %v2473
    %v2860 = vunpack.c.l.b16 %v2474
    %v2861 = vunpack.c.l.b16 %v2475
    %v2862 = vunpack.c.l.b16 %v2476
    %v2863 = vunpack.c.l.b16 %v2477
    %v2864 = vunpack.c.l.b16 %v2478
    %v2865 = vunpack.c.l.b16 %v2479
    %v2866 = vunpack.c.l.b16 %v2480
    %v2867 = vunpack.c.l.b16 %v2481
    %v2868 = vunpack.c.l.b16 %v2482
    %v2869 = vunpack.c.l.b16 %v2483
    %v2870 = vunpack.c.l.b16 %v2484
    %v2871 = vunpack.c.l.b16 %v2485
    %v2872 = vunpack.c.l.b16 %v2486
    %v2873 = vunpack.c.l.b16 %v2487
    %v2874 = vunpack.c.l.b16 %v2488
    %v2875 = vunpack.c.l.b16 %v2489
    %v2876 = vunpack.c.l.b16 %v2490
    %v2877 = vunpack.c.l.b16 %v2491
    %v2878 = vunpack.c.l.b16 %v2492
    %v2879 = vunpack.c.l.b16 %v2493
    %v2880 = vunpack.c.l.b16 %v2494
    %v2881 = vunpack.c.l.b16 %v2495
    %v2882 = vunpack.c.l.b16 %v2496
    %v2883 = vunpack.c.l.b16 %v2497
    %v2884 = vunpack.c.l.b16 %v2498
    %v2885 = vunpack.c.l.b16 %v2499
    %v2886 = vpack.c.b16 %v2855, %v2854
    %v2887 = vpack.c.b16 %v2857, %v2856
    %v2888 = vpack.c.b16 %v2859, %v2858
    %v2889 = vpack.c.b16 %v2861, %v2860
    %v2890 = vpack.c.b16 %v2863, %v2862
    %v2891 = vpack.c.b16 %v2865, %v2864
    %v2892 = vpack.c.b16 %v2867, %v2866
    %v2893 = vpack.c.b16 %v2869, %v2868
    %v2894 = vpack.c.b16 %v2871, %v2870
    %v2895 = vpack.c.b16 %v2873, %v2872
    %v2896 = vpack.c.b16 %v2875, %v2874
    %v2897 = vpack.c.b16 %v2877, %v2876
    %v2898 = vpack.c.b16 %v2879, %v2878
    %v2899 = vpack.c.b16 %v2881, %v2880
    %v2900 = vpack.c.b16 %v2883, %v2882
    %v2901 = vpack.c.b16 %v2885, %v2884
    %2918 = vmatprep.subr.bf16.mxu0 0
    %2919 = vmatpush1.bf16.msra.mxu0 %v2886
    %2920 = vmatprep.subr.bf16.mxu0 0
    %2921 = vmatpush1.bf16.msra.mxu0 %v2887
    %2922 = vmatprep.subr.bf16.mxu0 0
    %2923 = vmatpush1.bf16.msra.mxu0 %v2888
    %2924 = vmatprep.subr.bf16.mxu0 0
    %2925 = vmatpush1.bf16.msra.mxu0 %v2889
    %2926 = vmatprep.subr.bf16.mxu0 0
    %2927 = vmatpush1.bf16.msra.mxu0 %v2890
    %2928 = vmatprep.subr.bf16.mxu0 0
    %2929 = vmatpush1.bf16.msra.mxu0 %v2891
    %2930 = vmatprep.subr.bf16.mxu0 0
    %2931 = vmatpush1.bf16.msra.mxu0 %v2892
    %2932 = vmatprep.subr.bf16.mxu0 0
    %2933 = vmatpush1.bf16.msra.mxu0 %v2893
    %2934 = vmatprep.subr.bf16.mxu0 0
    %2935 = vmatpush1.bf16.msra.mxu0 %v2894
    %2936 = vmatprep.subr.bf16.mxu0 0
    %2937 = vmatpush1.bf16.msra.mxu0 %v2895
    %2938 = vmatprep.subr.bf16.mxu0 0
    %2939 = vmatpush1.bf16.msra.mxu0 %v2896
    %2940 = vmatprep.subr.bf16.mxu0 0
    %2941 = vmatpush1.bf16.msra.mxu0 %v2897
    %2942 = vmatprep.subr.bf16.mxu0 0
    %2943 = vmatpush1.bf16.msra.mxu0 %v2898
    %2944 = vmatprep.subr.bf16.mxu0 0
    %2945 = vmatpush1.bf16.msra.mxu0 %v2899
    %2946 = vmatprep.subr.bf16.mxu0 0
    %2947 = vmatpush1.bf16.msra.mxu0 %v2900
    %2948 = vmatprep.subr.bf16.mxu0 0
    %2949 = vmatpush1.bf16.msra.mxu0 %v2901
    %2950 = vmatprep.mubr.bf16.mxu0 %v2437
    %2951 = vmatmul.mubr.bf16.gmra.mrb[0].mxu0 %v2436
    %v2952 = vpop.f32.mrb[0].mxu0
    %v2953 = vadd.f32 %v2696, %v2952
    %v2954 = vpop.f32.mrb[0].mxu0
    %v2955 = vpop.f32.mrb[0].mxu0
    %v2956 = vadd.f32 %v2699, %v2955
    %v2957 = vpop.f32.mrb[0].mxu0
    %2958 = vmatprep.mubr.bf16.mxu0 %v2439
    %2959 = vmatmul.mubr.bf16.gmra.mrb[0].mxu0 %v2438
    %v2960 = vpop.f32.mrb[0].mxu0
    %v2961 = vadd.f32 %v2704, %v2960
    %v2962 = vpop.f32.mrb[0].mxu0
    %v2963 = vpop.f32.mrb[0].mxu0
    %v2964 = vadd.f32 %v2707, %v2963
    %v2965 = vpop.f32.mrb[0].mxu0
    %2966 = vmatprep.mubr.bf16.mxu0 %v2441
    %2967 = vmatmul.mubr.bf16.gmra.mrb[0].mxu0 %v2440
    %v2968 = vpop.f32.mrb[0].mxu0
    %v2969 = vadd.f32 %v2712, %v2968
    %v2970 = vpop.f32.mrb[0].mxu0
    %v2971 = vpop.f32.mrb[0].mxu0
    %v2972 = vadd.f32 %v2715, %v2971
    %v2973 = vpop.f32.mrb[0].mxu0
    %2974 = vmatprep.mubr.bf16.mxu0 %v2443
    %2975 = vmatmul.mubr.bf16.gmra.mrb[0].mxu0 %v2442
    %v2976 = vpop.f32.mrb[0].mxu0
    %v2977 = vadd.f32 %v2720, %v2976
    %v2978 = vpop.f32.mrb[0].mxu0
    %v2979 = vpop.f32.mrb[0].mxu0
    %v2980 = vadd.f32 %v2723, %v2979
    %v2981 = vpop.f32.mrb[0].mxu0
    %2982 = vmatprep.mubr.bf16.mxu0 %v2445
    %2983 = vmatmul.mubr.bf16.gmra.mrb[0].mxu0 %v2444
    %v2984 = vpop.f32.mrb[0].mxu0
    %v2985 = vadd.f32 %v2728, %v2984
    %v2986 = vpop.f32.mrb[0].mxu0
    %v2987 = vpop.f32.mrb[0].mxu0
    %v2988 = vadd.f32 %v2731, %v2987
    %v2989 = vpop.f32.mrb[0].mxu0
    %2990 = vmatprep.mubr.bf16.mxu0 %v2447
    %2991 = vmatmul.mubr.bf16.gmra.mrb[0].mxu0 %v2446
    %v2992 = vpop.f32.mrb[0].mxu0
    %v2993 = vadd.f32 %v2736, %v2992
    %v2994 = vpop.f32.mrb[0].mxu0
    %v2995 = vpop.f32.mrb[0].mxu0
    %v2996 = vadd.f32 %v2739, %v2995
    %v2997 = vpop.f32.mrb[0].mxu0
    %2998 = vmatprep.mubr.bf16.mxu0 %v2449
    %2999 = vmatmul.mubr.bf16.gmra.mrb[0].mxu0 %v2448
    %v3000 = vpop.f32.mrb[0].mxu0
    %v3001 = vadd.f32 %v2744, %v3000
    %v3002 = vpop.f32.mrb[0].mxu0
    %v3003 = vpop.f32.mrb[0].mxu0
    %v3004 = vadd.f32 %v2747, %v3003
    %v3005 = vpop.f32.mrb[0].mxu0
    %3006 = vmatprep.mubr.bf16.mxu0 %v2451
    %3007 = vmatmul.mubr.bf16.gmra.mrb[0].mxu0 %v2450
    %v3008 = vpop.f32.mrb[0].mxu0
    %v3009 = vadd.f32 %v2752, %v3008
    %v3010 = vpop.f32.mrb[0].mxu0
    %v3011 = vpop.f32.mrb[0].mxu0
    %v3012 = vadd.f32 %v2755, %v3011
    %v3013 = vpop.f32.mrb[0].mxu0
    %3014 = vmatprep.mubr.bf16.mxu0 %v2453
    %3015 = vmatmul.mubr.bf16.gmra.mrb[0].mxu0 %v2452
    %v3016 = vpop.f32.mrb[0].mxu0
    %v3017 = vadd.f32 %v2760, %v3016
    %v3018 = vpop.f32.mrb[0].mxu0
    %v3019 = vpop.f32.mrb[0].mxu0
    %v3020 = vadd.f32 %v2763, %v3019
    %v3021 = vpop.f32.mrb[0].mxu0
    %3022 = vmatprep.mubr.bf16.mxu0 %v2455
    %3023 = vmatmul.mubr.bf16.gmra.mrb[0].mxu0 %v2454
    %v3024 = vpop.f32.mrb[0].mxu0
    %v3025 = vadd.f32 %v2768, %v3024
    %v3026 = vpop.f32.mrb[0].mxu0
    %v3027 = vpop.f32.mrb[0].mxu0
    %v3028 = vadd.f32 %v2771, %v3027
    %v3029 = vpop.f32.mrb[0].mxu0
    %3030 = vmatprep.mubr.bf16.mxu0 %v2457
    %3031 = vmatmul.mubr.bf16.gmra.mrb[0].mxu0 %v2456
    %v3032 = vpop.f32.mrb[0].mxu0
    %v3033 = vadd.f32 %v2776, %v3032
    %v3034 = vpop.f32.mrb[0].mxu0
    %v3035 = vpop.f32.mrb[0].mxu0
    %v3036 = vadd.f32 %v2779, %v3035
    %v3037 = vpop.f32.mrb[0].mxu0
    %3038 = vmatprep.mubr.bf16.mxu0 %v2459
    %3039 = vmatmul.mubr.bf16.gmra.mrb[0].mxu0 %v2458
    %v3040 = vpop.f32.mrb[0].mxu0
    %v3041 = vadd.f32 %v2784, %v3040
    %v3042 = vpop.f32.mrb[0].mxu0
    %v3043 = vpop.f32.mrb[0].mxu0
    %v3044 = vadd.f32 %v2787, %v3043
    %v3045 = vpop.f32.mrb[0].mxu0
    %3046 = vmatprep.mubr.bf16.mxu0 %v2461
    %3047 = vmatmul.mubr.bf16.gmra.mrb[0].mxu0 %v2460
    %v3048 = vpop.f32.mrb[0].mxu0
    %v3049 = vadd.f32 %v2792, %v3048
    %v3050 = vpop.f32.mrb[0].mxu0
    %v3051 = vpop.f32.mrb[0].mxu0
    %v3052 = vadd.f32 %v2795, %v3051
    %v3053 = vpop.f32.mrb[0].mxu0
    %3054 = vmatprep.mubr.bf16.mxu0 %v2463
    %3055 = vmatmul.mubr.bf16.gmra.mrb[0].mxu0 %v2462
    %v3056 = vpop.f32.mrb[0].mxu0
    %v3057 = vadd.f32 %v2800, %v3056
    %v3058 = vpop.f32.mrb[0].mxu0
    %v3059 = vpop.f32.mrb[0].mxu0
    %v3060 = vadd.f32 %v2803, %v3059
    %v3061 = vpop.f32.mrb[0].mxu0
    %3062 = vmatprep.mubr.bf16.mxu0 %v2465
    %3063 = vmatmul.mubr.bf16.gmra.mrb[0].mxu0 %v2464
    %v3064 = vpop.f32.mrb[0].mxu0
    %v3065 = vadd.f32 %v2808, %v3064
    %v3066 = vpop.f32.mrb[0].mxu0
    %v3067 = vpop.f32.mrb[0].mxu0
    %v3068 = vadd.f32 %v2811, %v3067
    %v3069 = vpop.f32.mrb[0].mxu0
    %3070 = vmatprep.mubr.bf16.mxu0 %v2467
    %3071 = vmatmul.mubr.bf16.gmra.mrb[0].mxu0 %v2466
    %v3072 = vpop.f32.mrb[0].mxu0
    %v3073 = vadd.f32 %v2816, %v3072
    %v3074 = vpop.f32.mrb[0].mxu0
    %v3075 = vpop.f32.mrb[0].mxu0
    %v3076 = vadd.f32 %v2819, %v3075
    %v3077 = vpop.f32.mrb[0].mxu0
    %3078 = vdwg.mxu0
    %s3079 = scalar_lea.vmem [#allocation3], 32
    %v3080 = vld [vmem:[%s3079] sm:$0xff]
    %v3081 = vld [vmem:[%s3079 + $0x8] sm:$0xff]
    %v3082 = vld [vmem:[%s3079 + $0x10] sm:$0xff]
    %v3083 = vld [vmem:[%s3079 + $0x18] sm:$0xff]
    %v3084 = vld [vmem:[%s3079 + $0x20] sm:$0xff]
    %v3085 = vld [vmem:[%s3079 + $0x28] sm:$0xff]
    %v3086 = vld [vmem:[%s3079 + $0x30] sm:$0xff]
    %v3087 = vld [vmem:[%s3079 + $0x38] sm:$0xff]
    %v3088 = vld [vmem:[%s3079 + $0x40] sm:$0xff]
    %v3089 = vld [vmem:[%s3079 + $0x48] sm:$0xff]
    %v3090 = vld [vmem:[%s3079 + $0x50] sm:$0xff]
    %v3091 = vld [vmem:[%s3079 + $0x58] sm:$0xff]
    %v3092 = vld [vmem:[%s3079 + $0x60] sm:$0xff]
    %v3093 = vld [vmem:[%s3079 + $0x68] sm:$0xff]
    %v3094 = vld [vmem:[%s3079 + $0x70] sm:$0xff]
    %v3095 = vld [vmem:[%s3079 + $0x78] sm:$0xff]
    %v3096 = vld [vmem:[%s3079 + $0x80] sm:$0xff]
    %v3097 = vld [vmem:[%s3079 + $0x88] sm:$0xff]
    %v3098 = vld [vmem:[%s3079 + $0x90] sm:$0xff]
    %v3099 = vld [vmem:[%s3079 + $0x98] sm:$0xff]
    %v3100 = vld [vmem:[%s3079 + $0xa0] sm:$0xff]
    %v3101 = vld [vmem:[%s3079 + $0xa8] sm:$0xff]
    %v3102 = vld [vmem:[%s3079 + $0xb0] sm:$0xff]
    %v3103 = vld [vmem:[%s3079 + $0xb8] sm:$0xff]
    %v3104 = vld [vmem:[%s3079 + $0xc0] sm:$0xff]
    %v3105 = vld [vmem:[%s3079 + $0xc8] sm:$0xff]
    %v3106 = vld [vmem:[%s3079 + $0xd0] sm:$0xff]
    %v3107 = vld [vmem:[%s3079 + $0xd8] sm:$0xff]
    %v3108 = vld [vmem:[%s3079 + $0xe0] sm:$0xff]
    %v3109 = vld [vmem:[%s3079 + $0xe8] sm:$0xff]
    %v3110 = vld [vmem:[%s3079 + $0xf0] sm:$0xff]
    %v3111 = vld [vmem:[%s3079 + $0xf8] sm:$0xff]
    %v3112 = vld [vmem:[#allocation9 + $0x100] sm:$0xf]
    %v3113 = vld [vmem:[#allocation9 + $0x104] sm:$0xf]
    %v3114 = vld [vmem:[#allocation9 + $0x108] sm:$0xf]
    %v3115 = vld [vmem:[#allocation9 + $0x10c] sm:$0xf]
    %v3116 = vld [vmem:[#allocation9 + $0x110] sm:$0xf]
    %v3117 = vld [vmem:[#allocation9 + $0x114] sm:$0xf]
    %v3118 = vld [vmem:[#allocation9 + $0x118] sm:$0xf]
    %v3119 = vld [vmem:[#allocation9 + $0x11c] sm:$0xf]
    %v3120 = vld [vmem:[#allocation9 + $0x120] sm:$0xf]
    %v3121 = vld [vmem:[#allocation9 + $0x124] sm:$0xf]
    %v3122 = vld [vmem:[#allocation9 + $0x128] sm:$0xf]
    %v3123 = vld [vmem:[#allocation9 + $0x12c] sm:$0xf]
    %v3124 = vld [vmem:[#allocation9 + $0x130] sm:$0xf]
    %v3125 = vld [vmem:[#allocation9 + $0x134] sm:$0xf]
    %v3126 = vld [vmem:[#allocation9 + $0x138] sm:$0xf]
    %v3127 = vld [vmem:[#allocation9 + $0x13c] sm:$0xf]
    %v3128 = vld [vmem:[#allocation9 + $0x140] sm:$0xf]
    %v3129 = vld [vmem:[#allocation9 + $0x144] sm:$0xf]
    %v3130 = vld [vmem:[#allocation9 + $0x148] sm:$0xf]
    %v3131 = vld [vmem:[#allocation9 + $0x14c] sm:$0xf]
    %v3132 = vld [vmem:[#allocation9 + $0x150] sm:$0xf]
    %v3133 = vld [vmem:[#allocation9 + $0x154] sm:$0xf]
    %v3134 = vld [vmem:[#allocation9 + $0x158] sm:$0xf]
    %v3135 = vld [vmem:[#allocation9 + $0x15c] sm:$0xf]
    %v3136 = vld [vmem:[#allocation9 + $0x160] sm:$0xf]
    %v3137 = vld [vmem:[#allocation9 + $0x164] sm:$0xf]
    %v3138 = vld [vmem:[#allocation9 + $0x168] sm:$0xf]
    %v3139 = vld [vmem:[#allocation9 + $0x16c] sm:$0xf]
    %v3140 = vld [vmem:[#allocation9 + $0x170] sm:$0xf]
    %v3141 = vld [vmem:[#allocation9 + $0x174] sm:$0xf]
    %v3142 = vld [vmem:[#allocation9 + $0x178] sm:$0xf]
    %v3143 = vld [vmem:[#allocation9 + $0x17c] sm:$0xf]
    %v3176 = vunpack.c.l.b16 %v3112
    %v3177 = vunpack.c.l.b16 %v3113
    %v3178 = vunpack.c.l.b16 %v3114
    %v3179 = vunpack.c.l.b16 %v3115
    %v3180 = vunpack.c.l.b16 %v3116
    %v3181 = vunpack.c.l.b16 %v3117
    %v3182 = vunpack.c.l.b16 %v3118
    %v3183 = vunpack.c.l.b16 %v3119
    %v3184 = vunpack.c.l.b16 %v3120
    %v3185 = vunpack.c.l.b16 %v3121
    %v3186 = vunpack.c.l.b16 %v3122
    %v3187 = vunpack.c.l.b16 %v3123
    %v3188 = vunpack.c.l.b16 %v3124
    %v3189 = vunpack.c.l.b16 %v3125
    %v3190 = vunpack.c.l.b16 %v3126
    %v3191 = vunpack.c.l.b16 %v3127
    %v3192 = vunpack.c.l.b16 %v3128
    %v3193 = vunpack.c.l.b16 %v3129
    %v3194 = vunpack.c.l.b16 %v3130
    %v3195 = vunpack.c.l.b16 %v3131
    %v3196 = vunpack.c.l.b16 %v3132
    %v3197 = vunpack.c.l.b16 %v3133
    %v3198 = vunpack.c.l.b16 %v3134
    %v3199 = vunpack.c.l.b16 %v3135
    %v3200 = vunpack.c.l.b16 %v3136
    %v3201 = vunpack.c.l.b16 %v3137
    %v3202 = vunpack.c.l.b16 %v3138
    %v3203 = vunpack.c.l.b16 %v3139
    %v3204 = vunpack.c.l.b16 %v3140
    %v3205 = vunpack.c.l.b16 %v3141
    %v3206 = vunpack.c.l.b16 %v3142
    %v3207 = vunpack.c.l.b16 %v3143
    %v3208 = vpack.c.b16 %v3177, %v3176
    %v3209 = vpack.c.b16 %v3179, %v3178
    %v3210 = vpack.c.b16 %v3181, %v3180
    %v3211 = vpack.c.b16 %v3183, %v3182
    %v3212 = vpack.c.b16 %v3185, %v3184
    %v3213 = vpack.c.b16 %v3187, %v3186
    %v3214 = vpack.c.b16 %v3189, %v3188
    %v3215 = vpack.c.b16 %v3191, %v3190
    %v3216 = vpack.c.b16 %v3193, %v3192
    %v3217 = vpack.c.b16 %v3195, %v3194
    %v3218 = vpack.c.b16 %v3197, %v3196
    %v3219 = vpack.c.b16 %v3199, %v3198
    %v3220 = vpack.c.b16 %v3201, %v3200
    %v3221 = vpack.c.b16 %v3203, %v3202
    %v3222 = vpack.c.b16 %v3205, %v3204
    %v3223 = vpack.c.b16 %v3207, %v3206
    %3240 = vmatprep.subr.bf16.mxu0 0
    %3241 = vmatpush1.bf16.msra.mxu0 %v3208
    %3242 = vmatprep.subr.bf16.mxu0 0
    %3243 = vmatpush1.bf16.msra.mxu0 %v3209
    %3244 = vmatprep.subr.bf16.mxu0 0
    %3245 = vmatpush1.bf16.msra.mxu0 %v3210
    %3246 = vmatprep.subr.bf16.mxu0 0
    %3247 = vmatpush1.bf16.msra.mxu0 %v3211
    %3248 = vmatprep.subr.bf16.mxu0 0
    %3249 = vmatpush1.bf16.msra.mxu0 %v3212
    %3250 = vmatprep.subr.bf16.mxu0 0
    %3251 = vmatpush1.bf16.msra.mxu0 %v3213
    %3252 = vmatprep.subr.bf16.mxu0 0
    %3253 = vmatpush1.bf16.msra.mxu0 %v3214
    %3254 = vmatprep.subr.bf16.mxu0 0
    %3255 = vmatpush1.bf16.msra.mxu0 %v3215
    %3256 = vmatprep.subr.bf16.mxu0 0
    %3257 = vmatpush1.bf16.msra.mxu0 %v3216
    %3258 = vmatprep.subr.bf16.mxu0 0
    %3259 = vmatpush1.bf16.msra.mxu0 %v3217
    %3260 = vmatprep.subr.bf16.mxu0 0
    %3261 = vmatpush1.bf16.msra.mxu0 %v3218
    %3262 = vmatprep.subr.bf16.mxu0 0
    %3263 = vmatpush1.bf16.msra.mxu0 %v3219
    %3264 = vmatprep.subr.bf16.mxu0 0
    %3265 = vmatpush1.bf16.msra.mxu0 %v3220
    %3266 = vmatprep.subr.bf16.mxu0 0
    %3267 = vmatpush1.bf16.msra.mxu0 %v3221
    %3268 = vmatprep.subr.bf16.mxu0 0
    %3269 = vmatpush1.bf16.msra.mxu0 %v3222
    %3270 = vmatprep.subr.bf16.mxu0 0
    %3271 = vmatpush1.bf16.msra.mxu0 %v3223
    %3272 = vmatprep.mubr.bf16.mxu0 %v3081
    %3273 = vmatmul.mubr.bf16.gmra.mrb[0].mxu0 %v3080
    %v3274 = vpop.f32.mrb[0].mxu0
    %v3275 = vadd.f32 0.0, %v3274
    %v3276 = vpop.f32.mrb[0].mxu0
    %v3277 = vpop.f32.mrb[0].mxu0
    %v3278 = vadd.f32 0.0, %v3277
    %v3279 = vpop.f32.mrb[0].mxu0
    %3280 = vmatprep.mubr.bf16.mxu0 %v3083
    %3281 = vmatmul.mubr.bf16.gmra.mrb[0].mxu0 %v3082
    %v3282 = vpop.f32.mrb[0].mxu0
    %v3283 = vadd.f32 0.0, %v3282
    %v3284 = vpop.f32.mrb[0].mxu0
    %v3285 = vpop.f32.mrb[0].mxu0
    %v3286 = vadd.f32 0.0, %v3285
    %v3287 = vpop.f32.mrb[0].mxu0
    %3288 = vmatprep.mubr.bf16.mxu0 %v3085
    %3289 = vmatmul.mubr.bf16.gmra.mrb[0].mxu0 %v3084
    %v3290 = vpop.f32.mrb[0].mxu0
    %v3291 = vadd.f32 0.0, %v3290
    %v3292 = vpop.f32.mrb[0].mxu0
    %v3293 = vpop.f32.mrb[0].mxu0
    %v3294 = vadd.f32 0.0, %v3293
    %v3295 = vpop.f32.mrb[0].mxu0
    %3296 = vmatprep.mubr.bf16.mxu0 %v3087
    %3297 = vmatmul.mubr.bf16.gmra.mrb[0].mxu0 %v3086
    %v3298 = vpop.f32.mrb[0].mxu0
    %v3299 = vadd.f32 0.0, %v3298
    %v3300 = vpop.f32.mrb[0].mxu0
    %v3301 = vpop.f32.mrb[0].mxu0
    %v3302 = vadd.f32 0.0, %v3301
    %v3303 = vpop.f32.mrb[0].mxu0
    %3304 = vmatprep.mubr.bf16.mxu0 %v3089
    %3305 = vmatmul.mubr.bf16.gmra.mrb[0].mxu0 %v3088
    %v3306 = vpop.f32.mrb[0].mxu0
    %v3307 = vadd.f32 0.0, %v3306
    %v3308 = vpop.f32.mrb[0].mxu0
    %v3309 = vpop.f32.mrb[0].mxu0
    %v3310 = vadd.f32 0.0, %v3309
    %v3311 = vpop.f32.mrb[0].mxu0
    %3312 = vmatprep.mubr.bf16.mxu0 %v3091
    %3313 = vmatmul.mubr.bf16.gmra.mrb[0].mxu0 %v3090
    %v3314 = vpop.f32.mrb[0].mxu0
    %v3315 = vadd.f32 0.0, %v3314
    %v3316 = vpop.f32.mrb[0].mxu0
    %v3317 = vpop.f32.mrb[0].mxu0
    %v3318 = vadd.f32 0.0, %v3317
    %v3319 = vpop.f32.mrb[0].mxu0
    %3320 = vmatprep.mubr.bf16.mxu0 %v3093
    %3321 = vmatmul.mubr.bf16.gmra.mrb[0].mxu0 %v3092
    %v3322 = vpop.f32.mrb[0].mxu0
    %v3323 = vadd.f32 0.0, %v3322
    %v3324 = vpop.f32.mrb[0].mxu0
    %v3325 = vpop.f32.mrb[0].mxu0
    %v3326 = vadd.f32 0.0, %v3325
    %v3327 = vpop.f32.mrb[0].mxu0
    %3328 = vmatprep.mubr.bf16.mxu0 %v3095
    %3329 = vmatmul.mubr.bf16.gmra.mrb[0].mxu0 %v3094
    %v3330 = vpop.f32.mrb[0].mxu0
    %v3331 = vadd.f32 0.0, %v3330
    %v3332 = vpop.f32.mrb[0].mxu0
    %v3333 = vpop.f32.mrb[0].mxu0
    %v3334 = vadd.f32 0.0, %v3333
    %v3335 = vpop.f32.mrb[0].mxu0
    %3336 = vmatprep.mubr.bf16.mxu0 %v3097
    %3337 = vmatmul.mubr.bf16.gmra.mrb[0].mxu0 %v3096
    %v3338 = vpop.f32.mrb[0].mxu0
    %v3339 = vadd.f32 0.0, %v3338
    %v3340 = vpop.f32.mrb[0].mxu0
    %v3341 = vpop.f32.mrb[0].mxu0
    %v3342 = vadd.f32 0.0, %v3341
    %v3343 = vpop.f32.mrb[0].mxu0
    %3344 = vmatprep.mubr.bf16.mxu0 %v3099
    %3345 = vmatmul.mubr.bf16.gmra.mrb[0].mxu0 %v3098
    %v3346 = vpop.f32.mrb[0].mxu0
    %v3347 = vadd.f32 0.0, %v3346
    %v3348 = vpop.f32.mrb[0].mxu0
    %v3349 = vpop.f32.mrb[0].mxu0
    %v3350 = vadd.f32 0.0, %v3349
    %v3351 = vpop.f32.mrb[0].mxu0
    %3352 = vmatprep.mubr.bf16.mxu0 %v3101
    %3353 = vmatmul.mubr.bf16.gmra.mrb[0].mxu0 %v3100
    %v3354 = vpop.f32.mrb[0].mxu0
    %v3355 = vadd.f32 0.0, %v3354
    %v3356 = vpop.f32.mrb[0].mxu0
    %v3357 = vpop.f32.mrb[0].mxu0
    %v3358 = vadd.f32 0.0, %v3357
    %v3359 = vpop.f32.mrb[0].mxu0
    %3360 = vmatprep.mubr.bf16.mxu0 %v3103
    %3361 = vmatmul.mubr.bf16.gmra.mrb[0].mxu0 %v3102
    %v3362 = vpop.f32.mrb[0].mxu0
    %v3363 = vadd.f32 0.0, %v3362
    %v3364 = vpop.f32.mrb[0].mxu0
    %v3365 = vpop.f32.mrb[0].mxu0
    %v3366 = vadd.f32 0.0, %v3365
    %v3367 = vpop.f32.mrb[0].mxu0
    %3368 = vmatprep.mubr.bf16.mxu0 %v3105
    %3369 = vmatmul.mubr.bf16.gmra.mrb[0].mxu0 %v3104
    %v3370 = vpop.f32.mrb[0].mxu0
    %v3371 = vadd.f32 0.0, %v3370
    %v3372 = vpop.f32.mrb[0].mxu0
    %v3373 = vpop.f32.mrb[0].mxu0
    %v3374 = vadd.f32 0.0, %v3373
    %v3375 = vpop.f32.mrb[0].mxu0
    %3376 = vmatprep.mubr.bf16.mxu0 %v3107
    %3377 = vmatmul.mubr.bf16.gmra.mrb[0].mxu0 %v3106
    %v3378 = vpop.f32.mrb[0].mxu0
    %v3379 = vadd.f32 0.0, %v3378
    %v3380 = vpop.f32.mrb[0].mxu0
    %v3381 = vpop.f32.mrb[0].mxu0
    %v3382 = vadd.f32 0.0, %v3381
    %v3383 = vpop.f32.mrb[0].mxu0
    %3384 = vmatprep.mubr.bf16.mxu0 %v3109
    %3385 = vmatmul.mubr.bf16.gmra.mrb[0].mxu0 %v3108
    %v3386 = vpop.f32.mrb[0].mxu0
    %v3387 = vadd.f32 0.0, %v3386
    %v3388 = vpop.f32.mrb[0].mxu0
    %v3389 = vpop.f32.mrb[0].mxu0
    %v3390 = vadd.f32 0.0, %v3389
    %v3391 = vpop.f32.mrb[0].mxu0
    %3392 = vmatprep.mubr.bf16.mxu0 %v3111
    %3393 = vmatmul.mubr.bf16.gmra.mrb[0].mxu0 %v3110
    %v3394 = vpop.f32.mrb[0].mxu0
    %v3395 = vadd.f32 0.0, %v3394
    %v3396 = vpop.f32.mrb[0].mxu0
    %v3397 = vpop.f32.mrb[0].mxu0
    %v3398 = vadd.f32 0.0, %v3397
    %v3399 = vpop.f32.mrb[0].mxu0
    %3400 = vdwg.mxu0
    %v3401 = vadd.f32 %v2953, %v3275
    %v3402 = vadd.f32 %v2956, %v3278
    %v3403 = vadd.f32 %v2961, %v3283
    %v3404 = vadd.f32 %v2964, %v3286
    %v3405 = vadd.f32 %v2969, %v3291
    %v3406 = vadd.f32 %v2972, %v3294
    %v3407 = vadd.f32 %v2977, %v3299
    %v3408 = vadd.f32 %v2980, %v3302
    %v3409 = vadd.f32 %v2985, %v3307
    %v3410 = vadd.f32 %v2988, %v3310
    %v3411 = vadd.f32 %v2993, %v3315
    %v3412 = vadd.f32 %v2996, %v3318
    %v3413 = vadd.f32 %v3001, %v3323
    %v3414 = vadd.f32 %v3004, %v3326
    %v3415 = vadd.f32 %v3009, %v3331
    %v3416 = vadd.f32 %v3012, %v3334
    %v3417 = vadd.f32 %v3017, %v3339
    %v3418 = vadd.f32 %v3020, %v3342
    %v3419 = vadd.f32 %v3025, %v3347
    %v3420 = vadd.f32 %v3028, %v3350
    %v3421 = vadd.f32 %v3033, %v3355
    %v3422 = vadd.f32 %v3036, %v3358
    %v3423 = vadd.f32 %v3041, %v3363
    %v3424 = vadd.f32 %v3044, %v3366
    %v3425 = vadd.f32 %v3049, %v3371
    %v3426 = vadd.f32 %v3052, %v3374
    %v3427 = vadd.f32 %v3057, %v3379
    %v3428 = vadd.f32 %v3060, %v3382
    %v3429 = vadd.f32 %v3065, %v3387
    %v3430 = vadd.f32 %v3068, %v3390
    %v3431 = vadd.f32 %v3073, %v3395
    %v3432 = vadd.f32 %v3076, %v3398
    %v3433 = vld [vmem:[%s2403] sm:$0xff]
    %v3434 = vld [vmem:[%s2403 + $0x8] sm:$0xff]
    %v3435 = vld [vmem:[%s2403 + $0x10] sm:$0xff]
    %v3436 = vld [vmem:[%s2403 + $0x18] sm:$0xff]
    %v3437 = vld [vmem:[%s2403 + $0x20] sm:$0xff]
    %v3438 = vld [vmem:[%s2403 + $0x28] sm:$0xff]
    %v3439 = vld [vmem:[%s2403 + $0x30] sm:$0xff]
    %v3440 = vld [vmem:[%s2403 + $0x38] sm:$0xff]
    %v3441 = vld [vmem:[%s2403 + $0x40] sm:$0xff]
    %v3442 = vld [vmem:[%s2403 + $0x48] sm:$0xff]
    %v3443 = vld [vmem:[%s2403 + $0x50] sm:$0xff]
    %v3444 = vld [vmem:[%s2403 + $0x58] sm:$0xff]
    %v3445 = vld [vmem:[%s2403 + $0x60] sm:$0xff]
    %v3446 = vld [vmem:[%s2403 + $0x68] sm:$0xff]
    %v3447 = vld [vmem:[%s2403 + $0x70] sm:$0xff]
    %v3448 = vld [vmem:[%s2403 + $0x78] sm:$0xff]
    %v3449 = vld [vmem:[%s2403 + $0x80] sm:$0xff]
    %v3450 = vld [vmem:[%s2403 + $0x88] sm:$0xff]
    %v3451 = vld [vmem:[%s2403 + $0x90] sm:$0xff]
    %v3452 = vld [vmem:[%s2403 + $0x98] sm:$0xff]
    %v3453 = vld [vmem:[%s2403 + $0xa0] sm:$0xff]
    %v3454 = vld [vmem:[%s2403 + $0xa8] sm:$0xff]
    %v3455 = vld [vmem:[%s2403 + $0xb0] sm:$0xff]
    %v3456 = vld [vmem:[%s2403 + $0xb8] sm:$0xff]
    %v3457 = vld [vmem:[%s2403 + $0xc0] sm:$0xff]
    %v3458 = vld [vmem:[%s2403 + $0xc8] sm:$0xff]
    %v3459 = vld [vmem:[%s2403 + $0xd0] sm:$0xff]
    %v3460 = vld [vmem:[%s2403 + $0xd8] sm:$0xff]
    %v3461 = vld [vmem:[%s2403 + $0xe0] sm:$0xff]
    %v3462 = vld [vmem:[%s2403 + $0xe8] sm:$0xff]
    %v3463 = vld [vmem:[%s2403 + $0xf0] sm:$0xff]
    %v3464 = vld [vmem:[%s2403 + $0xf8] sm:$0xff]
    %v3465 = vld [vmem:[#allocation9 + $0x180] sm:$0xf]
    %v3466 = vld [vmem:[#allocation9 + $0x184] sm:$0xf]
    %v3467 = vld [vmem:[#allocation9 + $0x188] sm:$0xf]
    %v3468 = vld [vmem:[#allocation9 + $0x18c] sm:$0xf]
    %v3469 = vld [vmem:[#allocation9 + $0x190] sm:$0xf]
    %v3470 = vld [vmem:[#allocation9 + $0x194] sm:$0xf]
    %v3471 = vld [vmem:[#allocation9 + $0x198] sm:$0xf]
    %v3472 = vld [vmem:[#allocation9 + $0x19c] sm:$0xf]
    %v3473 = vld [vmem:[#allocation9 + $0x1a0] sm:$0xf]
    %v3474 = vld [vmem:[#allocation9 + $0x1a4] sm:$0xf]
    %v3475 = vld [vmem:[#allocation9 + $0x1a8] sm:$0xf]
    %v3476 = vld [vmem:[#allocation9 + $0x1ac] sm:$0xf]
    %v3477 = vld [vmem:[#allocation9 + $0x1b0] sm:$0xf]
    %v3478 = vld [vmem:[#allocation9 + $0x1b4] sm:$0xf]
    %v3479 = vld [vmem:[#allocation9 + $0x1b8] sm:$0xf]
    %v3480 = vld [vmem:[#allocation9 + $0x1bc] sm:$0xf]
    %v3481 = vld [vmem:[#allocation9 + $0x1c0] sm:$0xf]
    %v3482 = vld [vmem:[#allocation9 + $0x1c4] sm:$0xf]
    %v3483 = vld [vmem:[#allocation9 + $0x1c8] sm:$0xf]
    %v3484 = vld [vmem:[#allocation9 + $0x1cc] sm:$0xf]
    %v3485 = vld [vmem:[#allocation9 + $0x1d0] sm:$0xf]
    %v3486 = vld [vmem:[#allocation9 + $0x1d4] sm:$0xf]
    %v3487 = vld [vmem:[#allocation9 + $0x1d8] sm:$0xf]
    %v3488 = vld [vmem:[#allocation9 + $0x1dc] sm:$0xf]
    %v3489 = vld [vmem:[#allocation9 + $0x1e0] sm:$0xf]
    %v3490 = vld [vmem:[#allocation9 + $0x1e4] sm:$0xf]
    %v3491 = vld [vmem:[#allocation9 + $0x1e8] sm:$0xf]
    %v3492 = vld [vmem:[#allocation9 + $0x1ec] sm:$0xf]
    %v3493 = vld [vmem:[#allocation9 + $0x1f0] sm:$0xf]
    %v3494 = vld [vmem:[#allocation9 + $0x1f4] sm:$0xf]
    %v3495 = vld [vmem:[#allocation9 + $0x1f8] sm:$0xf]
    %v3496 = vld [vmem:[#allocation9 + $0x1fc] sm:$0xf]
    %v3529 = vunpack.c.l.b16 %v3465
    %v3530 = vunpack.c.l.b16 %v3466
    %v3531 = vunpack.c.l.b16 %v3467
    %v3532 = vunpack.c.l.b16 %v3468
    %v3533 = vunpack.c.l.b16 %v3469
    %v3534 = vunpack.c.l.b16 %v3470
    %v3535 = vunpack.c.l.b16 %v3471
    %v3536 = vunpack.c.l.b16 %v3472
    %v3537 = vunpack.c.l.b16 %v3473
    %v3538 = vunpack.c.l.b16 %v3474
    %v3539 = vunpack.c.l.b16 %v3475
    %v3540 = vunpack.c.l.b16 %v3476
    %v3541 = vunpack.c.l.b16 %v3477
    %v3542 = vunpack.c.l.b16 %v3478
    %v3543 = vunpack.c.l.b16 %v3479
    %v3544 = vunpack.c.l.b16 %v3480
    %v3545 = vunpack.c.l.b16 %v3481
    %v3546 = vunpack.c.l.b16 %v3482
    %v3547 = vunpack.c.l.b16 %v3483
    %v3548 = vunpack.c.l.b16 %v3484
    %v3549 = vunpack.c.l.b16 %v3485
    %v3550 = vunpack.c.l.b16 %v3486
    %v3551 = vunpack.c.l.b16 %v3487
    %v3552 = vunpack.c.l.b16 %v3488
    %v3553 = vunpack.c.l.b16 %v3489
    %v3554 = vunpack.c.l.b16 %v3490
    %v3555 = vunpack.c.l.b16 %v3491
    %v3556 = vunpack.c.l.b16 %v3492
    %v3557 = vunpack.c.l.b16 %v3493
    %v3558 = vunpack.c.l.b16 %v3494
    %v3559 = vunpack.c.l.b16 %v3495
    %v3560 = vunpack.c.l.b16 %v3496
    %v3561 = vpack.c.b16 %v3530, %v3529
    %v3562 = vpack.c.b16 %v3532, %v3531
    %v3563 = vpack.c.b16 %v3534, %v3533
    %v3564 = vpack.c.b16 %v3536, %v3535
    %v3565 = vpack.c.b16 %v3538, %v3537
    %v3566 = vpack.c.b16 %v3540, %v3539
    %v3567 = vpack.c.b16 %v3542, %v3541
    %v3568 = vpack.c.b16 %v3544, %v3543
    %v3569 = vpack.c.b16 %v3546, %v3545
    %v3570 = vpack.c.b16 %v3548, %v3547
    %v3571 = vpack.c.b16 %v3550, %v3549
    %v3572 = vpack.c.b16 %v3552, %v3551
    %v3573 = vpack.c.b16 %v3554, %v3553
    %v3574 = vpack.c.b16 %v3556, %v3555
    %v3575 = vpack.c.b16 %v3558, %v3557
    %v3576 = vpack.c.b16 %v3560, %v3559
    %3593 = vmatprep.subr.bf16.mxu0 0
    %3594 = vmatpush1.bf16.msra.mxu0 %v3561
    %3595 = vmatprep.subr.bf16.mxu0 0
    %3596 = vmatpush1.bf16.msra.mxu0 %v3562
    %3597 = vmatprep.subr.bf16.mxu0 0
    %3598 = vmatpush1.bf16.msra.mxu0 %v3563
    %3599 = vmatprep.subr.bf16.mxu0 0
    %3600 = vmatpush1.bf16.msra.mxu0 %v3564
    %3601 = vmatprep.subr.bf16.mxu0 0
    %3602 = vmatpush1.bf16.msra.mxu0 %v3565
    %3603 = vmatprep.subr.bf16.mxu0 0
    %3604 = vmatpush1.bf16.msra.mxu0 %v3566
    %3605 = vmatprep.subr.bf16.mxu0 0
    %3606 = vmatpush1.bf16.msra.mxu0 %v3567
    %3607 = vmatprep.subr.bf16.mxu0 0
    %3608 = vmatpush1.bf16.msra.mxu0 %v3568
    %3609 = vmatprep.subr.bf16.mxu0 0
    %3610 = vmatpush1.bf16.msra.mxu0 %v3569
    %3611 = vmatprep.subr.bf16.mxu0 0
    %3612 = vmatpush1.bf16.msra.mxu0 %v3570
    %3613 = vmatprep.subr.bf16.mxu0 0
    %3614 = vmatpush1.bf16.msra.mxu0 %v3571
    %3615 = vmatprep.subr.bf16.mxu0 0
    %3616 = vmatpush1.bf16.msra.mxu0 %v3572
    %3617 = vmatprep.subr.bf16.mxu0 0
    %3618 = vmatpush1.bf16.msra.mxu0 %v3573
    %3619 = vmatprep.subr.bf16.mxu0 0
    %3620 = vmatpush1.bf16.msra.mxu0 %v3574
    %3621 = vmatprep.subr.bf16.mxu0 0
    %3622 = vmatpush1.bf16.msra.mxu0 %v3575
    %3623 = vmatprep.subr.bf16.mxu0 0
    %3624 = vmatpush1.bf16.msra.mxu0 %v3576
    %3625 = vmatprep.mubr.bf16.mxu0 %v3434
    %3626 = vmatmul.mubr.bf16.gmra.mrb[0].mxu0 %v3433
    %v3627 = vpop.f32.mrb[0].mxu0
    %v3628 = vadd.f32 0.0, %v3627
    %v3629 = vpop.f32.mrb[0].mxu0
    %v3630 = vpop.f32.mrb[0].mxu0
    %v3631 = vadd.f32 0.0, %v3630
    %v3632 = vpop.f32.mrb[0].mxu0
    %3633 = vmatprep.mubr.bf16.mxu0 %v3436
    %3634 = vmatmul.mubr.bf16.gmra.mrb[0].mxu0 %v3435
    %v3635 = vpop.f32.mrb[0].mxu0
    %v3636 = vadd.f32 0.0, %v3635
    %v3637 = vpop.f32.mrb[0].mxu0
    %v3638 = vpop.f32.mrb[0].mxu0
    %v3639 = vadd.f32 0.0, %v3638
    %v3640 = vpop.f32.mrb[0].mxu0
    %3641 = vmatprep.mubr.bf16.mxu0 %v3438
    %3642 = vmatmul.mubr.bf16.gmra.mrb[0].mxu0 %v3437
    %v3643 = vpop.f32.mrb[0].mxu0
    %v3644 = vadd.f32 0.0, %v3643
    %v3645 = vpop.f32.mrb[0].mxu0
    %v3646 = vpop.f32.mrb[0].mxu0
    %v3647 = vadd.f32 0.0, %v3646
    %v3648 = vpop.f32.mrb[0].mxu0
    %3649 = vmatprep.mubr.bf16.mxu0 %v3440
    %3650 = vmatmul.mubr.bf16.gmra.mrb[0].mxu0 %v3439
    %v3651 = vpop.f32.mrb[0].mxu0
    %v3652 = vadd.f32 0.0, %v3651
    %v3653 = vpop.f32.mrb[0].mxu0
    %v3654 = vpop.f32.mrb[0].mxu0
    %v3655 = vadd.f32 0.0, %v3654
    %v3656 = vpop.f32.mrb[0].mxu0
    %3657 = vmatprep.mubr.bf16.mxu0 %v3442
    %3658 = vmatmul.mubr.bf16.gmra.mrb[0].mxu0 %v3441
    %v3659 = vpop.f32.mrb[0].mxu0
    %v3660 = vadd.f32 0.0, %v3659
    %v3661 = vpop.f32.mrb[0].mxu0
    %v3662 = vpop.f32.mrb[0].mxu0
    %v3663 = vadd.f32 0.0, %v3662
    %v3664 = vpop.f32.mrb[0].mxu0
    %3665 = vmatprep.mubr.bf16.mxu0 %v3444
    %3666 = vmatmul.mubr.bf16.gmra.mrb[0].mxu0 %v3443
    %v3667 = vpop.f32.mrb[0].mxu0
    %v3668 = vadd.f32 0.0, %v3667
    %v3669 = vpop.f32.mrb[0].mxu0
    %v3670 = vpop.f32.mrb[0].mxu0
    %v3671 = vadd.f32 0.0, %v3670
    %v3672 = vpop.f32.mrb[0].mxu0
    %3673 = vmatprep.mubr.bf16.mxu0 %v3446
    %3674 = vmatmul.mubr.bf16.gmra.mrb[0].mxu0 %v3445
    %v3675 = vpop.f32.mrb[0].mxu0
    %v3676 = vadd.f32 0.0, %v3675
    %v3677 = vpop.f32.mrb[0].mxu0
    %v3678 = vpop.f32.mrb[0].mxu0
    %v3679 = vadd.f32 0.0, %v3678
    %v3680 = vpop.f32.mrb[0].mxu0
    %3681 = vmatprep.mubr.bf16.mxu0 %v3448
    %3682 = vmatmul.mubr.bf16.gmra.mrb[0].mxu0 %v3447
    %v3683 = vpop.f32.mrb[0].mxu0
    %v3684 = vadd.f32 0.0, %v3683
    %v3685 = vpop.f32.mrb[0].mxu0
    %v3686 = vpop.f32.mrb[0].mxu0
    %v3687 = vadd.f32 0.0, %v3686
    %v3688 = vpop.f32.mrb[0].mxu0
    %3689 = vmatprep.mubr.bf16.mxu0 %v3450
    %3690 = vmatmul.mubr.bf16.gmra.mrb[0].mxu0 %v3449
    %v3691 = vpop.f32.mrb[0].mxu0
    %v3692 = vadd.f32 0.0, %v3691
    %v3693 = vpop.f32.mrb[0].mxu0
    %v3694 = vpop.f32.mrb[0].mxu0
    %v3695 = vadd.f32 0.0, %v3694
    %v3696 = vpop.f32.mrb[0].mxu0
    %3697 = vmatprep.mubr.bf16.mxu0 %v3452
    %3698 = vmatmul.mubr.bf16.gmra.mrb[0].mxu0 %v3451
    %v3699 = vpop.f32.mrb[0].mxu0
    %v3700 = vadd.f32 0.0, %v3699
    %v3701 = vpop.f32.mrb[0].mxu0
    %v3702 = vpop.f32.mrb[0].mxu0
    %v3703 = vadd.f32 0.0, %v3702
    %v3704 = vpop.f32.mrb[0].mxu0
    %3705 = vmatprep.mubr.bf16.mxu0 %v3454
    %3706 = vmatmul.mubr.bf16.gmra.mrb[0].mxu0 %v3453
    %v3707 = vpop.f32.mrb[0].mxu0
    %v3708 = vadd.f32 0.0, %v3707
    %v3709 = vpop.f32.mrb[0].mxu0
    %v3710 = vpop.f32.mrb[0].mxu0
    %v3711 = vadd.f32 0.0, %v3710
    %v3712 = vpop.f32.mrb[0].mxu0
    %3713 = vmatprep.mubr.bf16.mxu0 %v3456
    %3714 = vmatmul.mubr.bf16.gmra.mrb[0].mxu0 %v3455
    %v3715 = vpop.f32.mrb[0].mxu0
    %v3716 = vadd.f32 0.0, %v3715
    %v3717 = vpop.f32.mrb[0].mxu0
    %v3718 = vpop.f32.mrb[0].mxu0
    %v3719 = vadd.f32 0.0, %v3718
    %v3720 = vpop.f32.mrb[0].mxu0
    %3721 = vmatprep.mubr.bf16.mxu0 %v3458
    %3722 = vmatmul.mubr.bf16.gmra.mrb[0].mxu0 %v3457
    %v3723 = vpop.f32.mrb[0].mxu0
    %v3724 = vadd.f32 0.0, %v3723
    %v3725 = vpop.f32.mrb[0].mxu0
    %v3726 = vpop.f32.mrb[0].mxu0
    %v3727 = vadd.f32 0.0, %v3726
    %v3728 = vpop.f32.mrb[0].mxu0
    %3729 = vmatprep.mubr.bf16.mxu0 %v3460
    %3730 = vmatmul.mubr.bf16.gmra.mrb[0].mxu0 %v3459
    %v3731 = vpop.f32.mrb[0].mxu0
    %v3732 = vadd.f32 0.0, %v3731
    %v3733 = vpop.f32.mrb[0].mxu0
    %v3734 = vpop.f32.mrb[0].mxu0
    %v3735 = vadd.f32 0.0, %v3734
    %v3736 = vpop.f32.mrb[0].mxu0
    %3737 = vmatprep.mubr.bf16.mxu0 %v3462
    %3738 = vmatmul.mubr.bf16.gmra.mrb[0].mxu0 %v3461
    %v3739 = vpop.f32.mrb[0].mxu0
    %v3740 = vadd.f32 0.0, %v3739
    %v3741 = vpop.f32.mrb[0].mxu0
    %v3742 = vpop.f32.mrb[0].mxu0
    %v3743 = vadd.f32 0.0, %v3742
    %v3744 = vpop.f32.mrb[0].mxu0
    %3745 = vmatprep.mubr.bf16.mxu0 %v3464
    %3746 = vmatmul.mubr.bf16.gmra.mrb[0].mxu0 %v3463
    %v3747 = vpop.f32.mrb[0].mxu0
    %v3748 = vadd.f32 0.0, %v3747
    %v3749 = vpop.f32.mrb[0].mxu0
    %v3750 = vpop.f32.mrb[0].mxu0
    %v3751 = vadd.f32 0.0, %v3750
    %v3752 = vpop.f32.mrb[0].mxu0
    %3753 = vdwg.mxu0
    %v3754 = vadd.f32 %v3401, %v3628
    %v3755 = vadd.f32 %v3402, %v3631
    %v3756 = vadd.f32 %v3403, %v3636
    %v3757 = vadd.f32 %v3404, %v3639
    %v3758 = vadd.f32 %v3405, %v3644
    %v3759 = vadd.f32 %v3406, %v3647
    %v3760 = vadd.f32 %v3407, %v3652
    %v3761 = vadd.f32 %v3408, %v3655
    %v3762 = vadd.f32 %v3409, %v3660
    %v3763 = vadd.f32 %v3410, %v3663
    %v3764 = vadd.f32 %v3411, %v3668
    %v3765 = vadd.f32 %v3412, %v3671
    %v3766 = vadd.f32 %v3413, %v3676
    %v3767 = vadd.f32 %v3414, %v3679
    %v3768 = vadd.f32 %v3415, %v3684
    %v3769 = vadd.f32 %v3416, %v3687
    %v3770 = vadd.f32 %v3417, %v3692
    %v3771 = vadd.f32 %v3418, %v3695
    %v3772 = vadd.f32 %v3419, %v3700
    %v3773 = vadd.f32 %v3420, %v3703
    %v3774 = vadd.f32 %v3421, %v3708
    %v3775 = vadd.f32 %v3422, %v3711
    %v3776 = vadd.f32 %v3423, %v3716
    %v3777 = vadd.f32 %v3424, %v3719
    %v3778 = vadd.f32 %v3425, %v3724
    %v3779 = vadd.f32 %v3426, %v3727
    %v3780 = vadd.f32 %v3427, %v3732
    %v3781 = vadd.f32 %v3428, %v3735
    %v3782 = vadd.f32 %v3429, %v3740
    %v3783 = vadd.f32 %v3430, %v3743
    %v3784 = vadd.f32 %v3431, %v3748
    %v3785 = vadd.f32 %v3432, %v3751
    %s3786 = scalar_lea.vmem [#allocation3], 64
    %v3787 = vld [vmem:[%s3786] sm:$0xff]
    %v3788 = vld [vmem:[%s3786 + $0x8] sm:$0xff]
    %v3789 = vld [vmem:[%s3786 + $0x10] sm:$0xff]
    %v3790 = vld [vmem:[%s3786 + $0x18] sm:$0xff]
    %v3791 = vld [vmem:[%s3786 + $0x20] sm:$0xff]
    %v3792 = vld [vmem:[%s3786 + $0x28] sm:$0xff]
    %v3793 = vld [vmem:[%s3786 + $0x30] sm:$0xff]
    %v3794 = vld [vmem:[%s3786 + $0x38] sm:$0xff]
    %v3795 = vld [vmem:[%s3786 + $0x40] sm:$0xff]
    %v3796 = vld [vmem:[%s3786 + $0x48] sm:$0xff]
    %v3797 = vld [vmem:[%s3786 + $0x50] sm:$0xff]
    %v3798 = vld [vmem:[%s3786 + $0x58] sm:$0xff]
    %v3799 = vld [vmem:[%s3786 + $0x60] sm:$0xff]
    %v3800 = vld [vmem:[%s3786 + $0x68] sm:$0xff]
    %v3801 = vld [vmem:[%s3786 + $0x70] sm:$0xff]
    %v3802 = vld [vmem:[%s3786 + $0x78] sm:$0xff]
    %v3803 = vld [vmem:[%s3786 + $0x80] sm:$0xff]
    %v3804 = vld [vmem:[%s3786 + $0x88] sm:$0xff]
    %v3805 = vld [vmem:[%s3786 + $0x90] sm:$0xff]
    %v3806 = vld [vmem:[%s3786 + $0x98] sm:$0xff]
    %v3807 = vld [vmem:[%s3786 + $0xa0] sm:$0xff]
    %v3808 = vld [vmem:[%s3786 + $0xa8] sm:$0xff]
    %v3809 = vld [vmem:[%s3786 + $0xb0] sm:$0xff]
    %v3810 = vld [vmem:[%s3786 + $0xb8] sm:$0xff]
    %v3811 = vld [vmem:[%s3786 + $0xc0] sm:$0xff]
    %v3812 = vld [vmem:[%s3786 + $0xc8] sm:$0xff]
    %v3813 = vld [vmem:[%s3786 + $0xd0] sm:$0xff]
    %v3814 = vld [vmem:[%s3786 + $0xd8] sm:$0xff]
    %v3815 = vld [vmem:[%s3786 + $0xe0] sm:$0xff]
    %v3816 = vld [vmem:[%s3786 + $0xe8] sm:$0xff]
    %v3817 = vld [vmem:[%s3786 + $0xf0] sm:$0xff]
    %v3818 = vld [vmem:[%s3786 + $0xf8] sm:$0xff]
    %v3819 = vld [vmem:[#allocation9 + $0x200] sm:$0xf]
    %v3820 = vld [vmem:[#allocation9 + $0x204] sm:$0xf]
    %v3821 = vld [vmem:[#allocation9 + $0x208] sm:$0xf]
    %v3822 = vld [vmem:[#allocation9 + $0x20c] sm:$0xf]
    %v3823 = vld [vmem:[#allocation9 + $0x210] sm:$0xf]
    %v3824 = vld [vmem:[#allocation9 + $0x214] sm:$0xf]
    %v3825 = vld [vmem:[#allocation9 + $0x218] sm:$0xf]
    %v3826 = vld [vmem:[#allocation9 + $0x21c] sm:$0xf]
    %v3827 = vld [vmem:[#allocation9 + $0x220] sm:$0xf]
    %v3828 = vld [vmem:[#allocation9 + $0x224] sm:$0xf]
    %v3829 = vld [vmem:[#allocation9 + $0x228] sm:$0xf]
    %v3830 = vld [vmem:[#allocation9 + $0x22c] sm:$0xf]
    %v3831 = vld [vmem:[#allocation9 + $0x230] sm:$0xf]
    %v3832 = vld [vmem:[#allocation9 + $0x234] sm:$0xf]
    %v3833 = vld [vmem:[#allocation9 + $0x238] sm:$0xf]
    %v3834 = vld [vmem:[#allocation9 + $0x23c] sm:$0xf]
    %v3835 = vld [vmem:[#allocation9 + $0x240] sm:$0xf]
    %v3836 = vld [vmem:[#allocation9 + $0x244] sm:$0xf]
    %v3837 = vld [vmem:[#allocation9 + $0x248] sm:$0xf]
    %v3838 = vld [vmem:[#allocation9 + $0x24c] sm:$0xf]
    %v3839 = vld [vmem:[#allocation9 + $0x250] sm:$0xf]
    %v3840 = vld [vmem:[#allocation9 + $0x254] sm:$0xf]
    %v3841 = vld [vmem:[#allocation9 + $0x258] sm:$0xf]
    %v3842 = vld [vmem:[#allocation9 + $0x25c] sm:$0xf]
    %v3843 = vld [vmem:[#allocation9 + $0x260] sm:$0xf]
    %v3844 = vld [vmem:[#allocation9 + $0x264] sm:$0xf]
    %v3845 = vld [vmem:[#allocation9 + $0x268] sm:$0xf]
    %v3846 = vld [vmem:[#allocation9 + $0x26c] sm:$0xf]
    %v3847 = vld [vmem:[#allocation9 + $0x270] sm:$0xf]
    %v3848 = vld [vmem:[#allocation9 + $0x274] sm:$0xf]
    %v3849 = vld [vmem:[#allocation9 + $0x278] sm:$0xf]
    %v3850 = vld [vmem:[#allocation9 + $0x27c] sm:$0xf]
    %v3883 = vunpack.c.l.b16 %v3819
    %v3884 = vunpack.c.l.b16 %v3820
    %v3885 = vunpack.c.l.b16 %v3821
    %v3886 = vunpack.c.l.b16 %v3822
    %v3887 = vunpack.c.l.b16 %v3823
    %v3888 = vunpack.c.l.b16 %v3824
    %v3889 = vunpack.c.l.b16 %v3825
    %v3890 = vunpack.c.l.b16 %v3826
    %v3891 = vunpack.c.l.b16 %v3827
    %v3892 = vunpack.c.l.b16 %v3828
    %v3893 = vunpack.c.l.b16 %v3829
    %v3894 = vunpack.c.l.b16 %v3830
    %v3895 = vunpack.c.l.b16 %v3831
    %v3896 = vunpack.c.l.b16 %v3832
    %v3897 = vunpack.c.l.b16 %v3833
    %v3898 = vunpack.c.l.b16 %v3834
    %v3899 = vunpack.c.l.b16 %v3835
    %v3900 = vunpack.c.l.b16 %v3836
    %v3901 = vunpack.c.l.b16 %v3837
    %v3902 = vunpack.c.l.b16 %v3838
    %v3903 = vunpack.c.l.b16 %v3839
    %v3904 = vunpack.c.l.b16 %v3840
    %v3905 = vunpack.c.l.b16 %v3841
    %v3906 = vunpack.c.l.b16 %v3842
    %v3907 = vunpack.c.l.b16 %v3843
    %v3908 = vunpack.c.l.b16 %v3844
    %v3909 = vunpack.c.l.b16 %v3845
    %v3910 = vunpack.c.l.b16 %v3846
    %v3911 = vunpack.c.l.b16 %v3847
    %v3912 = vunpack.c.l.b16 %v3848
    %v3913 = vunpack.c.l.b16 %v3849
    %v3914 = vunpack.c.l.b16 %v3850
    %v3915 = vpack.c.b16 %v3884, %v3883
    %v3916 = vpack.c.b16 %v3886, %v3885
    %v3917 = vpack.c.b16 %v3888, %v3887
    %v3918 = vpack.c.b16 %v3890, %v3889
    %v3919 = vpack.c.b16 %v3892, %v3891
    %v3920 = vpack.c.b16 %v3894, %v3893
    %v3921 = vpack.c.b16 %v3896, %v3895
    %v3922 = vpack.c.b16 %v3898, %v3897
    %v3923 = vpack.c.b16 %v3900, %v3899
    %v3924 = vpack.c.b16 %v3902, %v3901
    %v3925 = vpack.c.b16 %v3904, %v3903
    %v3926 = vpack.c.b16 %v3906, %v3905
    %v3927 = vpack.c.b16 %v3908, %v3907
    %v3928 = vpack.c.b16 %v3910, %v3909
    %v3929 = vpack.c.b16 %v3912, %v3911
    %v3930 = vpack.c.b16 %v3914, %v3913
    %3947 = vmatprep.subr.bf16.mxu0 0
    %3948 = vmatpush1.bf16.msra.mxu0 %v3915
    %3949 = vmatprep.subr.bf16.mxu0 0
    %3950 = vmatpush1.bf16.msra.mxu0 %v3916
    %3951 = vmatprep.subr.bf16.mxu0 0
    %3952 = vmatpush1.bf16.msra.mxu0 %v3917
    %3953 = vmatprep.subr.bf16.mxu0 0
    %3954 = vmatpush1.bf16.msra.mxu0 %v3918
    %3955 = vmatprep.subr.bf16.mxu0 0
    %3956 = vmatpush1.bf16.msra.mxu0 %v3919
    %3957 = vmatprep.subr.bf16.mxu0 0
    %3958 = vmatpush1.bf16.msra.mxu0 %v3920
    %3959 = vmatprep.subr.bf16.mxu0 0
    %3960 = vmatpush1.bf16.msra.mxu0 %v3921
    %3961 = vmatprep.subr.bf16.mxu0 0
    %3962 = vmatpush1.bf16.msra.mxu0 %v3922
    %3963 = vmatprep.subr.bf16.mxu0 0
    %3964 = vmatpush1.bf16.msra.mxu0 %v3923
    %3965 = vmatprep.subr.bf16.mxu0 0
    %3966 = vmatpush1.bf16.msra.mxu0 %v3924
    %3967 = vmatprep.subr.bf16.mxu0 0
    %3968 = vmatpush1.bf16.msra.mxu0 %v3925
    %3969 = vmatprep.subr.bf16.mxu0 0
    %3970 = vmatpush1.bf16.msra.mxu0 %v3926
    %3971 = vmatprep.subr.bf16.mxu0 0
    %3972 = vmatpush1.bf16.msra.mxu0 %v3927
    %3973 = vmatprep.subr.bf16.mxu0 0
    %3974 = vmatpush1.bf16.msra.mxu0 %v3928
    %3975 = vmatprep.subr.bf16.mxu0 0
    %3976 = vmatpush1.bf16.msra.mxu0 %v3929
    %3977 = vmatprep.subr.bf16.mxu0 0
    %3978 = vmatpush1.bf16.msra.mxu0 %v3930
    %3979 = vmatprep.mubr.bf16.mxu0 %v3788
    %3980 = vmatmul.mubr.bf16.gmra.mrb[0].mxu0 %v3787
    %v3981 = vpop.f32.mrb[0].mxu0
    %v3982 = vadd.f32 0.0, %v3981
    %v3983 = vpop.f32.mrb[0].mxu0
    %v3984 = vpop.f32.mrb[0].mxu0
    %v3985 = vadd.f32 0.0, %v3984
    %v3986 = vpop.f32.mrb[0].mxu0
    %3987 = vmatprep.mubr.bf16.mxu0 %v3790
    %3988 = vmatmul.mubr.bf16.gmra.mrb[0].mxu0 %v3789
    %v3989 = vpop.f32.mrb[0].mxu0
    %v3990 = vadd.f32 0.0, %v3989
    %v3991 = vpop.f32.mrb[0].mxu0
    %v3992 = vpop.f32.mrb[0].mxu0
    %v3993 = vadd.f32 0.0, %v3992
    %v3994 = vpop.f32.mrb[0].mxu0
    %3995 = vmatprep.mubr.bf16.mxu0 %v3792
    %3996 = vmatmul.mubr.bf16.gmra.mrb[0].mxu0 %v3791
    %v3997 = vpop.f32.mrb[0].mxu0
    %v3998 = vadd.f32 0.0, %v3997
    %v3999 = vpop.f32.mrb[0].mxu0
    %v4000 = vpop.f32.mrb[0].mxu0
    %v4001 = vadd.f32 0.0, %v4000
    %v4002 = vpop.f32.mrb[0].mxu0
    %4003 = vmatprep.mubr.bf16.mxu0 %v3794
    %4004 = vmatmul.mubr.bf16.gmra.mrb[0].mxu0 %v3793
    %v4005 = vpop.f32.mrb[0].mxu0
    %v4006 = vadd.f32 0.0, %v4005
    %v4007 = vpop.f32.mrb[0].mxu0
    %v4008 = vpop.f32.mrb[0].mxu0
    %v4009 = vadd.f32 0.0, %v4008
    %v4010 = vpop.f32.mrb[0].mxu0
    %4011 = vmatprep.mubr.bf16.mxu0 %v3796
    %4012 = vmatmul.mubr.bf16.gmra.mrb[0].mxu0 %v3795
    %v4013 = vpop.f32.mrb[0].mxu0
    %v4014 = vadd.f32 0.0, %v4013
    %v4015 = vpop.f32.mrb[0].mxu0
    %v4016 = vpop.f32.mrb[0].mxu0
    %v4017 = vadd.f32 0.0, %v4016
    %v4018 = vpop.f32.mrb[0].mxu0
    %4019 = vmatprep.mubr.bf16.mxu0 %v3798
    %4020 = vmatmul.mubr.bf16.gmra.mrb[0].mxu0 %v3797
    %v4021 = vpop.f32.mrb[0].mxu0
    %v4022 = vadd.f32 0.0, %v4021
    %v4023 = vpop.f32.mrb[0].mxu0
    %v4024 = vpop.f32.mrb[0].mxu0
    %v4025 = vadd.f32 0.0, %v4024
    %v4026 = vpop.f32.mrb[0].mxu0
    %4027 = vmatprep.mubr.bf16.mxu0 %v3800
    %4028 = vmatmul.mubr.bf16.gmra.mrb[0].mxu0 %v3799
    %v4029 = vpop.f32.mrb[0].mxu0
    %v4030 = vadd.f32 0.0, %v4029
    %v4031 = vpop.f32.mrb[0].mxu0
    %v4032 = vpop.f32.mrb[0].mxu0
    %v4033 = vadd.f32 0.0, %v4032
    %v4034 = vpop.f32.mrb[0].mxu0
    %4035 = vmatprep.mubr.bf16.mxu0 %v3802
    %4036 = vmatmul.mubr.bf16.gmra.mrb[0].mxu0 %v3801
    %v4037 = vpop.f32.mrb[0].mxu0
    %v4038 = vadd.f32 0.0, %v4037
    %v4039 = vpop.f32.mrb[0].mxu0
    %v4040 = vpop.f32.mrb[0].mxu0
    %v4041 = vadd.f32 0.0, %v4040
    %v4042 = vpop.f32.mrb[0].mxu0
    %4043 = vmatprep.mubr.bf16.mxu0 %v3804
    %4044 = vmatmul.mubr.bf16.gmra.mrb[0].mxu0 %v3803
    %v4045 = vpop.f32.mrb[0].mxu0
    %v4046 = vadd.f32 0.0, %v4045
    %v4047 = vpop.f32.mrb[0].mxu0
    %v4048 = vpop.f32.mrb[0].mxu0
    %v4049 = vadd.f32 0.0, %v4048
    %v4050 = vpop.f32.mrb[0].mxu0
    %4051 = vmatprep.mubr.bf16.mxu0 %v3806
    %4052 = vmatmul.mubr.bf16.gmra.mrb[0].mxu0 %v3805
    %v4053 = vpop.f32.mrb[0].mxu0
    %v4054 = vadd.f32 0.0, %v4053
    %v4055 = vpop.f32.mrb[0].mxu0
    %v4056 = vpop.f32.mrb[0].mxu0
    %v4057 = vadd.f32 0.0, %v4056
    %v4058 = vpop.f32.mrb[0].mxu0
    %4059 = vmatprep.mubr.bf16.mxu0 %v3808
    %4060 = vmatmul.mubr.bf16.gmra.mrb[0].mxu0 %v3807
    %v4061 = vpop.f32.mrb[0].mxu0
    %v4062 = vadd.f32 0.0, %v4061
    %v4063 = vpop.f32.mrb[0].mxu0
    %v4064 = vpop.f32.mrb[0].mxu0
    %v4065 = vadd.f32 0.0, %v4064
    %v4066 = vpop.f32.mrb[0].mxu0
    %4067 = vmatprep.mubr.bf16.mxu0 %v3810
    %4068 = vmatmul.mubr.bf16.gmra.mrb[0].mxu0 %v3809
    %v4069 = vpop.f32.mrb[0].mxu0
    %v4070 = vadd.f32 0.0, %v4069
    %v4071 = vpop.f32.mrb[0].mxu0
    %v4072 = vpop.f32.mrb[0].mxu0
    %v4073 = vadd.f32 0.0, %v4072
    %v4074 = vpop.f32.mrb[0].mxu0
    %4075 = vmatprep.mubr.bf16.mxu0 %v3812
    %4076 = vmatmul.mubr.bf16.gmra.mrb[0].mxu0 %v3811
    %v4077 = vpop.f32.mrb[0].mxu0
    %v4078 = vadd.f32 0.0, %v4077
    %v4079 = vpop.f32.mrb[0].mxu0
    %v4080 = vpop.f32.mrb[0].mxu0
    %v4081 = vadd.f32 0.0, %v4080
    %v4082 = vpop.f32.mrb[0].mxu0
    %4083 = vmatprep.mubr.bf16.mxu0 %v3814
    %4084 = vmatmul.mubr.bf16.gmra.mrb[0].mxu0 %v3813
    %v4085 = vpop.f32.mrb[0].mxu0
    %v4086 = vadd.f32 0.0, %v4085
    %v4087 = vpop.f32.mrb[0].mxu0
    %v4088 = vpop.f32.mrb[0].mxu0
    %v4089 = vadd.f32 0.0, %v4088
    %v4090 = vpop.f32.mrb[0].mxu0
    %4091 = vmatprep.mubr.bf16.mxu0 %v3816
    %4092 = vmatmul.mubr.bf16.gmra.mrb[0].mxu0 %v3815
    %v4093 = vpop.f32.mrb[0].mxu0
    %v4094 = vadd.f32 0.0, %v4093
    %v4095 = vpop.f32.mrb[0].mxu0
    %v4096 = vpop.f32.mrb[0].mxu0
    %v4097 = vadd.f32 0.0, %v4096
    %v4098 = vpop.f32.mrb[0].mxu0
    %4099 = vmatprep.mubr.bf16.mxu0 %v3818
    %4100 = vmatmul.mubr.bf16.gmra.mrb[0].mxu0 %v3817
    %v4101 = vpop.f32.mrb[0].mxu0
    %v4102 = vadd.f32 0.0, %v4101
    %v4103 = vpop.f32.mrb[0].mxu0
    %v4104 = vpop.f32.mrb[0].mxu0
    %v4105 = vadd.f32 0.0, %v4104
    %v4106 = vpop.f32.mrb[0].mxu0
    %4107 = vdwg.mxu0
    %v4108 = vadd.f32 %v3754, %v3982
    %v4109 = vadd.f32 %v3755, %v3985
    %v4110 = vadd.f32 %v3756, %v3990
    %v4111 = vadd.f32 %v3757, %v3993
    %v4112 = vadd.f32 %v3758, %v3998
    %v4113 = vadd.f32 %v3759, %v4001
    %v4114 = vadd.f32 %v3760, %v4006
    %v4115 = vadd.f32 %v3761, %v4009
    %v4116 = vadd.f32 %v3762, %v4014
    %v4117 = vadd.f32 %v3763, %v4017
    %v4118 = vadd.f32 %v3764, %v4022
    %v4119 = vadd.f32 %v3765, %v4025
    %v4120 = vadd.f32 %v3766, %v4030
    %v4121 = vadd.f32 %v3767, %v4033
    %v4122 = vadd.f32 %v3768, %v4038
    %v4123 = vadd.f32 %v3769, %v4041
    %v4124 = vadd.f32 %v3770, %v4046
    %v4125 = vadd.f32 %v3771, %v4049
    %v4126 = vadd.f32 %v3772, %v4054
    %v4127 = vadd.f32 %v3773, %v4057
    %v4128 = vadd.f32 %v3774, %v4062
    %v4129 = vadd.f32 %v3775, %v4065
    %v4130 = vadd.f32 %v3776, %v4070
    %v4131 = vadd.f32 %v3777, %v4073
    %v4132 = vadd.f32 %v3778, %v4078
    %v4133 = vadd.f32 %v3779, %v4081
    %v4134 = vadd.f32 %v3780, %v4086
    %v4135 = vadd.f32 %v3781, %v4089
    %v4136 = vadd.f32 %v3782, %v4094
    %v4137 = vadd.f32 %v3783, %v4097
    %v4138 = vadd.f32 %v3784, %v4102
    %v4139 = vadd.f32 %v3785, %v4105
    %s4140 = scalar_lea.vmem [#allocation3], 80
    %v4141 = vld [vmem:[%s4140] sm:$0xff]
    %v4142 = vld [vmem:[%s4140 + $0x8] sm:$0xff]
    %v4143 = vld [vmem:[%s4140 + $0x10] sm:$0xff]
    %v4144 = vld [vmem:[%s4140 + $0x18] sm:$0xff]
    %v4145 = vld [vmem:[%s4140 + $0x20] sm:$0xff]
    %v4146 = vld [vmem:[%s4140 + $0x28] sm:$0xff]
    %v4147 = vld [vmem:[%s4140 + $0x30] sm:$0xff]
    %v4148 = vld [vmem:[%s4140 + $0x38] sm:$0xff]
    %v4149 = vld [vmem:[%s4140 + $0x40] sm:$0xff]
    %v4150 = vld [vmem:[%s4140 + $0x48] sm:$0xff]
    %v4151 = vld [vmem:[%s4140 + $0x50] sm:$0xff]
    %v4152 = vld [vmem:[%s4140 + $0x58] sm:$0xff]
    %v4153 = vld [vmem:[%s4140 + $0x60] sm:$0xff]
    %v4154 = vld [vmem:[%s4140 + $0x68] sm:$0xff]
    %v4155 = vld [vmem:[%s4140 + $0x70] sm:$0xff]
    %v4156 = vld [vmem:[%s4140 + $0x78] sm:$0xff]
    %v4157 = vld [vmem:[%s4140 + $0x80] sm:$0xff]
    %v4158 = vld [vmem:[%s4140 + $0x88] sm:$0xff]
    %v4159 = vld [vmem:[%s4140 + $0x90] sm:$0xff]
    %v4160 = vld [vmem:[%s4140 + $0x98] sm:$0xff]
    %v4161 = vld [vmem:[%s4140 + $0xa0] sm:$0xff]
    %v4162 = vld [vmem:[%s4140 + $0xa8] sm:$0xff]
    %v4163 = vld [vmem:[%s4140 + $0xb0] sm:$0xff]
    %v4164 = vld [vmem:[%s4140 + $0xb8] sm:$0xff]
    %v4165 = vld [vmem:[%s4140 + $0xc0] sm:$0xff]
    %v4166 = vld [vmem:[%s4140 + $0xc8] sm:$0xff]
    %v4167 = vld [vmem:[%s4140 + $0xd0] sm:$0xff]
    %v4168 = vld [vmem:[%s4140 + $0xd8] sm:$0xff]
    %v4169 = vld [vmem:[%s4140 + $0xe0] sm:$0xff]
    %v4170 = vld [vmem:[%s4140 + $0xe8] sm:$0xff]
    %v4171 = vld [vmem:[%s4140 + $0xf0] sm:$0xff]
    %v4172 = vld [vmem:[%s4140 + $0xf8] sm:$0xff]
    %v4173 = vld [vmem:[#allocation9 + $0x280] sm:$0xf]
    %v4174 = vld [vmem:[#allocation9 + $0x284] sm:$0xf]
    %v4175 = vld [vmem:[#allocation9 + $0x288] sm:$0xf]
    %v4176 = vld [vmem:[#allocation9 + $0x28c] sm:$0xf]
    %v4177 = vld [vmem:[#allocation9 + $0x290] sm:$0xf]
    %v4178 = vld [vmem:[#allocation9 + $0x294] sm:$0xf]
    %v4179 = vld [vmem:[#allocation9 + $0x298] sm:$0xf]
    %v4180 = vld [vmem:[#allocation9 + $0x29c] sm:$0xf]
    %v4181 = vld [vmem:[#allocation9 + $0x2a0] sm:$0xf]
    %v4182 = vld [vmem:[#allocation9 + $0x2a4] sm:$0xf]
    %v4183 = vld [vmem:[#allocation9 + $0x2a8] sm:$0xf]
    %v4184 = vld [vmem:[#allocation9 + $0x2ac] sm:$0xf]
    %v4185 = vld [vmem:[#allocation9 + $0x2b0] sm:$0xf]
    %v4186 = vld [vmem:[#allocation9 + $0x2b4] sm:$0xf]
    %v4187 = vld [vmem:[#allocation9 + $0x2b8] sm:$0xf]
    %v4188 = vld [vmem:[#allocation9 + $0x2bc] sm:$0xf]
    %v4189 = vld [vmem:[#allocation9 + $0x2c0] sm:$0xf]
    %v4190 = vld [vmem:[#allocation9 + $0x2c4] sm:$0xf]
    %v4191 = vld [vmem:[#allocation9 + $0x2c8] sm:$0xf]
    %v4192 = vld [vmem:[#allocation9 + $0x2cc] sm:$0xf]
    %v4193 = vld [vmem:[#allocation9 + $0x2d0] sm:$0xf]
    %v4194 = vld [vmem:[#allocation9 + $0x2d4] sm:$0xf]
    %v4195 = vld [vmem:[#allocation9 + $0x2d8] sm:$0xf]
    %v4196 = vld [vmem:[#allocation9 + $0x2dc] sm:$0xf]
    %v4197 = vld [vmem:[#allocation9 + $0x2e0] sm:$0xf]
    %v4198 = vld [vmem:[#allocation9 + $0x2e4] sm:$0xf]
    %v4199 = vld [vmem:[#allocation9 + $0x2e8] sm:$0xf]
    %v4200 = vld [vmem:[#allocation9 + $0x2ec] sm:$0xf]
    %v4201 = vld [vmem:[#allocation9 + $0x2f0] sm:$0xf]
    %v4202 = vld [vmem:[#allocation9 + $0x2f4] sm:$0xf]
    %v4203 = vld [vmem:[#allocation9 + $0x2f8] sm:$0xf]
    %v4204 = vld [vmem:[#allocation9 + $0x2fc] sm:$0xf]
    %v4237 = vunpack.c.l.b16 %v4173
    %v4238 = vunpack.c.l.b16 %v4174
    %v4239 = vunpack.c.l.b16 %v4175
    %v4240 = vunpack.c.l.b16 %v4176
    %v4241 = vunpack.c.l.b16 %v4177
    %v4242 = vunpack.c.l.b16 %v4178
    %v4243 = vunpack.c.l.b16 %v4179
    %v4244 = vunpack.c.l.b16 %v4180
    %v4245 = vunpack.c.l.b16 %v4181
    %v4246 = vunpack.c.l.b16 %v4182
    %v4247 = vunpack.c.l.b16 %v4183
    %v4248 = vunpack.c.l.b16 %v4184
    %v4249 = vunpack.c.l.b16 %v4185
    %v4250 = vunpack.c.l.b16 %v4186
    %v4251 = vunpack.c.l.b16 %v4187
    %v4252 = vunpack.c.l.b16 %v4188
    %v4253 = vunpack.c.l.b16 %v4189
    %v4254 = vunpack.c.l.b16 %v4190
    %v4255 = vunpack.c.l.b16 %v4191
    %v4256 = vunpack.c.l.b16 %v4192
    %v4257 = vunpack.c.l.b16 %v4193
    %v4258 = vunpack.c.l.b16 %v4194
    %v4259 = vunpack.c.l.b16 %v4195
    %v4260 = vunpack.c.l.b16 %v4196
    %v4261 = vunpack.c.l.b16 %v4197
    %v4262 = vunpack.c.l.b16 %v4198
    %v4263 = vunpack.c.l.b16 %v4199
    %v4264 = vunpack.c.l.b16 %v4200
    %v4265 = vunpack.c.l.b16 %v4201
    %v4266 = vunpack.c.l.b16 %v4202
    %v4267 = vunpack.c.l.b16 %v4203
    %v4268 = vunpack.c.l.b16 %v4204
    %v4269 = vpack.c.b16 %v4238, %v4237
    %v4270 = vpack.c.b16 %v4240, %v4239
    %v4271 = vpack.c.b16 %v4242, %v4241
    %v4272 = vpack.c.b16 %v4244, %v4243
    %v4273 = vpack.c.b16 %v4246, %v4245
    %v4274 = vpack.c.b16 %v4248, %v4247
    %v4275 = vpack.c.b16 %v4250, %v4249
    %v4276 = vpack.c.b16 %v4252, %v4251
    %v4277 = vpack.c.b16 %v4254, %v4253
    %v4278 = vpack.c.b16 %v4256, %v4255
    %v4279 = vpack.c.b16 %v4258, %v4257
    %v4280 = vpack.c.b16 %v4260, %v4259
    %v4281 = vpack.c.b16 %v4262, %v4261
    %v4282 = vpack.c.b16 %v4264, %v4263
    %v4283 = vpack.c.b16 %v4266, %v4265
    %v4284 = vpack.c.b16 %v4268, %v4267
    %4301 = vmatprep.subr.bf16.mxu0 0
    %4302 = vmatpush1.bf16.msra.mxu0 %v4269
    %4303 = vmatprep.subr.bf16.mxu0 0
    %4304 = vmatpush1.bf16.msra.mxu0 %v4270
    %4305 = vmatprep.subr.bf16.mxu0 0
    %4306 = vmatpush1.bf16.msra.mxu0 %v4271
    %4307 = vmatprep.subr.bf16.mxu0 0
    %4308 = vmatpush1.bf16.msra.mxu0 %v4272
    %4309 = vmatprep.subr.bf16.mxu0 0
    %4310 = vmatpush1.bf16.msra.mxu0 %v4273
    %4311 = vmatprep.subr.bf16.mxu0 0
    %4312 = vmatpush1.bf16.msra.mxu0 %v4274
    %4313 = vmatprep.subr.bf16.mxu0 0
    %4314 = vmatpush1.bf16.msra.mxu0 %v4275
    %4315 = vmatprep.subr.bf16.mxu0 0
    %4316 = vmatpush1.bf16.msra.mxu0 %v4276
    %4317 = vmatprep.subr.bf16.mxu0 0
    %4318 = vmatpush1.bf16.msra.mxu0 %v4277
    %4319 = vmatprep.subr.bf16.mxu0 0
    %4320 = vmatpush1.bf16.msra.mxu0 %v4278
    %4321 = vmatprep.subr.bf16.mxu0 0
    %4322 = vmatpush1.bf16.msra.mxu0 %v4279
    %4323 = vmatprep.subr.bf16.mxu0 0
    %4324 = vmatpush1.bf16.msra.mxu0 %v4280
    %4325 = vmatprep.subr.bf16.mxu0 0
    %4326 = vmatpush1.bf16.msra.mxu0 %v4281
    %4327 = vmatprep.subr.bf16.mxu0 0
    %4328 = vmatpush1.bf16.msra.mxu0 %v4282
    %4329 = vmatprep.subr.bf16.mxu0 0
    %4330 = vmatpush1.bf16.msra.mxu0 %v4283
    %4331 = vmatprep.subr.bf16.mxu0 0
    %4332 = vmatpush1.bf16.msra.mxu0 %v4284
    %4333 = vmatprep.mubr.bf16.mxu0 %v4142
    %4334 = vmatmul.mubr.bf16.gmra.mrb[0].mxu0 %v4141
    %v4335 = vpop.f32.mrb[0].mxu0
    %v4336 = vadd.f32 0.0, %v4335
    %v4337 = vpop.f32.mrb[0].mxu0
    %v4338 = vpop.f32.mrb[0].mxu0
    %v4339 = vadd.f32 0.0, %v4338
    %v4340 = vpop.f32.mrb[0].mxu0
    %4341 = vmatprep.mubr.bf16.mxu0 %v4144
    %4342 = vmatmul.mubr.bf16.gmra.mrb[0].mxu0 %v4143
    %v4343 = vpop.f32.mrb[0].mxu0
    %v4344 = vadd.f32 0.0, %v4343
    %v4345 = vpop.f32.mrb[0].mxu0
    %v4346 = vpop.f32.mrb[0].mxu0
    %v4347 = vadd.f32 0.0, %v4346
    %v4348 = vpop.f32.mrb[0].mxu0
    %4349 = vmatprep.mubr.bf16.mxu0 %v4146
    %4350 = vmatmul.mubr.bf16.gmra.mrb[0].mxu0 %v4145
    %v4351 = vpop.f32.mrb[0].mxu0
    %v4352 = vadd.f32 0.0, %v4351
    %v4353 = vpop.f32.mrb[0].mxu0
    %v4354 = vpop.f32.mrb[0].mxu0
    %v4355 = vadd.f32 0.0, %v4354
    %v4356 = vpop.f32.mrb[0].mxu0
    %4357 = vmatprep.mubr.bf16.mxu0 %v4148
    %4358 = vmatmul.mubr.bf16.gmra.mrb[0].mxu0 %v4147
    %v4359 = vpop.f32.mrb[0].mxu0
    %v4360 = vadd.f32 0.0, %v4359
    %v4361 = vpop.f32.mrb[0].mxu0
    %v4362 = vpop.f32.mrb[0].mxu0
    %v4363 = vadd.f32 0.0, %v4362
    %v4364 = vpop.f32.mrb[0].mxu0
    %4365 = vmatprep.mubr.bf16.mxu0 %v4150
    %4366 = vmatmul.mubr.bf16.gmra.mrb[0].mxu0 %v4149
    %v4367 = vpop.f32.mrb[0].mxu0
    %v4368 = vadd.f32 0.0, %v4367
    %v4369 = vpop.f32.mrb[0].mxu0
    %v4370 = vpop.f32.mrb[0].mxu0
    %v4371 = vadd.f32 0.0, %v4370
    %v4372 = vpop.f32.mrb[0].mxu0
    %4373 = vmatprep.mubr.bf16.mxu0 %v4152
    %4374 = vmatmul.mubr.bf16.gmra.mrb[0].mxu0 %v4151
    %v4375 = vpop.f32.mrb[0].mxu0
    %v4376 = vadd.f32 0.0, %v4375
    %v4377 = vpop.f32.mrb[0].mxu0
    %v4378 = vpop.f32.mrb[0].mxu0
    %v4379 = vadd.f32 0.0, %v4378
    %v4380 = vpop.f32.mrb[0].mxu0
    %4381 = vmatprep.mubr.bf16.mxu0 %v4154
    %4382 = vmatmul.mubr.bf16.gmra.mrb[0].mxu0 %v4153
    %v4383 = vpop.f32.mrb[0].mxu0
    %v4384 = vadd.f32 0.0, %v4383
    %v4385 = vpop.f32.mrb[0].mxu0
    %v4386 = vpop.f32.mrb[0].mxu0
    %v4387 = vadd.f32 0.0, %v4386
    %v4388 = vpop.f32.mrb[0].mxu0
    %4389 = vmatprep.mubr.bf16.mxu0 %v4156
    %4390 = vmatmul.mubr.bf16.gmra.mrb[0].mxu0 %v4155
    %v4391 = vpop.f32.mrb[0].mxu0
    %v4392 = vadd.f32 0.0, %v4391
    %v4393 = vpop.f32.mrb[0].mxu0
    %v4394 = vpop.f32.mrb[0].mxu0
    %v4395 = vadd.f32 0.0, %v4394
    %v4396 = vpop.f32.mrb[0].mxu0
    %4397 = vmatprep.mubr.bf16.mxu0 %v4158
    %4398 = vmatmul.mubr.bf16.gmra.mrb[0].mxu0 %v4157
    %v4399 = vpop.f32.mrb[0].mxu0
    %v4400 = vadd.f32 0.0, %v4399
    %v4401 = vpop.f32.mrb[0].mxu0
    %v4402 = vpop.f32.mrb[0].mxu0
    %v4403 = vadd.f32 0.0, %v4402
    %v4404 = vpop.f32.mrb[0].mxu0
    %4405 = vmatprep.mubr.bf16.mxu0 %v4160
    %4406 = vmatmul.mubr.bf16.gmra.mrb[0].mxu0 %v4159
    %v4407 = vpop.f32.mrb[0].mxu0
    %v4408 = vadd.f32 0.0, %v4407
    %v4409 = vpop.f32.mrb[0].mxu0
    %v4410 = vpop.f32.mrb[0].mxu0
    %v4411 = vadd.f32 0.0, %v4410
    %v4412 = vpop.f32.mrb[0].mxu0
    %4413 = vmatprep.mubr.bf16.mxu0 %v4162
    %4414 = vmatmul.mubr.bf16.gmra.mrb[0].mxu0 %v4161
    %v4415 = vpop.f32.mrb[0].mxu0
    %v4416 = vadd.f32 0.0, %v4415
    %v4417 = vpop.f32.mrb[0].mxu0
    %v4418 = vpop.f32.mrb[0].mxu0
    %v4419 = vadd.f32 0.0, %v4418
    %v4420 = vpop.f32.mrb[0].mxu0
    %4421 = vmatprep.mubr.bf16.mxu0 %v4164
    %4422 = vmatmul.mubr.bf16.gmra.mrb[0].mxu0 %v4163
    %v4423 = vpop.f32.mrb[0].mxu0
    %v4424 = vadd.f32 0.0, %v4423
    %v4425 = vpop.f32.mrb[0].mxu0
    %v4426 = vpop.f32.mrb[0].mxu0
    %v4427 = vadd.f32 0.0, %v4426
    %v4428 = vpop.f32.mrb[0].mxu0
    %4429 = vmatprep.mubr.bf16.mxu0 %v4166
    %4430 = vmatmul.mubr.bf16.gmra.mrb[0].mxu0 %v4165
    %v4431 = vpop.f32.mrb[0].mxu0
    %v4432 = vadd.f32 0.0, %v4431
    %v4433 = vpop.f32.mrb[0].mxu0
    %v4434 = vpop.f32.mrb[0].mxu0
    %v4435 = vadd.f32 0.0, %v4434
    %v4436 = vpop.f32.mrb[0].mxu0
    %4437 = vmatprep.mubr.bf16.mxu0 %v4168
    %4438 = vmatmul.mubr.bf16.gmra.mrb[0].mxu0 %v4167
    %v4439 = vpop.f32.mrb[0].mxu0
    %v4440 = vadd.f32 0.0, %v4439
    %v4441 = vpop.f32.mrb[0].mxu0
    %v4442 = vpop.f32.mrb[0].mxu0
    %v4443 = vadd.f32 0.0, %v4442
    %v4444 = vpop.f32.mrb[0].mxu0
    %4445 = vmatprep.mubr.bf16.mxu0 %v4170
    %4446 = vmatmul.mubr.bf16.gmra.mrb[0].mxu0 %v4169
    %v4447 = vpop.f32.mrb[0].mxu0
    %v4448 = vadd.f32 0.0, %v4447
    %v4449 = vpop.f32.mrb[0].mxu0
    %v4450 = vpop.f32.mrb[0].mxu0
    %v4451 = vadd.f32 0.0, %v4450
    %v4452 = vpop.f32.mrb[0].mxu0
    %4453 = vmatprep.mubr.bf16.mxu0 %v4172
    %4454 = vmatmul.mubr.bf16.gmra.mrb[0].mxu0 %v4171
    %v4455 = vpop.f32.mrb[0].mxu0
    %v4456 = vadd.f32 0.0, %v4455
    %v4457 = vpop.f32.mrb[0].mxu0
    %v4458 = vpop.f32.mrb[0].mxu0
    %v4459 = vadd.f32 0.0, %v4458
    %v4460 = vpop.f32.mrb[0].mxu0
    %4461 = vdwg.mxu0
    %v4462 = vadd.f32 %v4108, %v4336
    %v4463 = vadd.f32 %v4109, %v4339
    %v4464 = vadd.f32 %v4110, %v4344
    %v4465 = vadd.f32 %v4111, %v4347
    %v4466 = vadd.f32 %v4112, %v4352
    %v4467 = vadd.f32 %v4113, %v4355
    %v4468 = vadd.f32 %v4114, %v4360
    %v4469 = vadd.f32 %v4115, %v4363
    %v4470 = vadd.f32 %v4116, %v4368
    %v4471 = vadd.f32 %v4117, %v4371
    %v4472 = vadd.f32 %v4118, %v4376
    %v4473 = vadd.f32 %v4119, %v4379
    %v4474 = vadd.f32 %v4120, %v4384
    %v4475 = vadd.f32 %v4121, %v4387
    %v4476 = vadd.f32 %v4122, %v4392
    %v4477 = vadd.f32 %v4123, %v4395
    %v4478 = vadd.f32 %v4124, %v4400
    %v4479 = vadd.f32 %v4125, %v4403
    %v4480 = vadd.f32 %v4126, %v4408
    %v4481 = vadd.f32 %v4127, %v4411
    %v4482 = vadd.f32 %v4128, %v4416
    %v4483 = vadd.f32 %v4129, %v4419
    %v4484 = vadd.f32 %v4130, %v4424
    %v4485 = vadd.f32 %v4131, %v4427
    %v4486 = vadd.f32 %v4132, %v4432
    %v4487 = vadd.f32 %v4133, %v4435
    %v4488 = vadd.f32 %v4134, %v4440
    %v4489 = vadd.f32 %v4135, %v4443
    %v4490 = vadd.f32 %v4136, %v4448
    %v4491 = vadd.f32 %v4137, %v4451
    %v4492 = vadd.f32 %v4138, %v4456
    %v4493 = vadd.f32 %v4139, %v4459
    %s4494 = scalar_lea.vmem [#allocation3], 96
    %v4495 = vld [vmem:[%s4494] sm:$0xff]
    %v4496 = vld [vmem:[%s4494 + $0x8] sm:$0xff]
    %v4497 = vld [vmem:[%s4494 + $0x10] sm:$0xff]
    %v4498 = vld [vmem:[%s4494 + $0x18] sm:$0xff]
    %v4499 = vld [vmem:[%s4494 + $0x20] sm:$0xff]
    %v4500 = vld [vmem:[%s4494 + $0x28] sm:$0xff]
    %v4501 = vld [vmem:[%s4494 + $0x30] sm:$0xff]
    %v4502 = vld [vmem:[%s4494 + $0x38] sm:$0xff]
    %v4503 = vld [vmem:[%s4494 + $0x40] sm:$0xff]
    %v4504 = vld [vmem:[%s4494 + $0x48] sm:$0xff]
    %v4505 = vld [vmem:[%s4494 + $0x50] sm:$0xff]
    %v4506 = vld [vmem:[%s4494 + $0x58] sm:$0xff]
    %v4507 = vld [vmem:[%s4494 + $0x60] sm:$0xff]
    %v4508 = vld [vmem:[%s4494 + $0x68] sm:$0xff]
    %v4509 = vld [vmem:[%s4494 + $0x70] sm:$0xff]
    %v4510 = vld [vmem:[%s4494 + $0x78] sm:$0xff]
    %v4511 = vld [vmem:[%s4494 + $0x80] sm:$0xff]
    %v4512 = vld [vmem:[%s4494 + $0x88] sm:$0xff]
    %v4513 = vld [vmem:[%s4494 + $0x90] sm:$0xff]
    %v4514 = vld [vmem:[%s4494 + $0x98] sm:$0xff]
    %v4515 = vld [vmem:[%s4494 + $0xa0] sm:$0xff]
    %v4516 = vld [vmem:[%s4494 + $0xa8] sm:$0xff]
    %v4517 = vld [vmem:[%s4494 + $0xb0] sm:$0xff]
    %v4518 = vld [vmem:[%s4494 + $0xb8] sm:$0xff]
    %v4519 = vld [vmem:[%s4494 + $0xc0] sm:$0xff]
    %v4520 = vld [vmem:[%s4494 + $0xc8] sm:$0xff]
    %v4521 = vld [vmem:[%s4494 + $0xd0] sm:$0xff]
    %v4522 = vld [vmem:[%s4494 + $0xd8] sm:$0xff]
    %v4523 = vld [vmem:[%s4494 + $0xe0] sm:$0xff]
    %v4524 = vld [vmem:[%s4494 + $0xe8] sm:$0xff]
    %v4525 = vld [vmem:[%s4494 + $0xf0] sm:$0xff]
    %v4526 = vld [vmem:[%s4494 + $0xf8] sm:$0xff]
    %v4527 = vld [vmem:[#allocation9 + $0x300] sm:$0xf]
    %v4528 = vld [vmem:[#allocation9 + $0x304] sm:$0xf]
    %v4529 = vld [vmem:[#allocation9 + $0x308] sm:$0xf]
    %v4530 = vld [vmem:[#allocation9 + $0x30c] sm:$0xf]
    %v4531 = vld [vmem:[#allocation9 + $0x310] sm:$0xf]
    %v4532 = vld [vmem:[#allocation9 + $0x314] sm:$0xf]
    %v4533 = vld [vmem:[#allocation9 + $0x318] sm:$0xf]
    %v4534 = vld [vmem:[#allocation9 + $0x31c] sm:$0xf]
    %v4535 = vld [vmem:[#allocation9 + $0x320] sm:$0xf]
    %v4536 = vld [vmem:[#allocation9 + $0x324] sm:$0xf]
    %v4537 = vld [vmem:[#allocation9 + $0x328] sm:$0xf]
    %v4538 = vld [vmem:[#allocation9 + $0x32c] sm:$0xf]
    %v4539 = vld [vmem:[#allocation9 + $0x330] sm:$0xf]
    %v4540 = vld [vmem:[#allocation9 + $0x334] sm:$0xf]
    %v4541 = vld [vmem:[#allocation9 + $0x338] sm:$0xf]
    %v4542 = vld [vmem:[#allocation9 + $0x33c] sm:$0xf]
    %v4543 = vld [vmem:[#allocation9 + $0x340] sm:$0xf]
    %v4544 = vld [vmem:[#allocation9 + $0x344] sm:$0xf]
    %v4545 = vld [vmem:[#allocation9 + $0x348] sm:$0xf]
    %v4546 = vld [vmem:[#allocation9 + $0x34c] sm:$0xf]
    %v4547 = vld [vmem:[#allocation9 + $0x350] sm:$0xf]
    %v4548 = vld [vmem:[#allocation9 + $0x354] sm:$0xf]
    %v4549 = vld [vmem:[#allocation9 + $0x358] sm:$0xf]
    %v4550 = vld [vmem:[#allocation9 + $0x35c] sm:$0xf]
    %v4551 = vld [vmem:[#allocation9 + $0x360] sm:$0xf]
    %v4552 = vld [vmem:[#allocation9 + $0x364] sm:$0xf]
    %v4553 = vld [vmem:[#allocation9 + $0x368] sm:$0xf]
    %v4554 = vld [vmem:[#allocation9 + $0x36c] sm:$0xf]
    %v4555 = vld [vmem:[#allocation9 + $0x370] sm:$0xf]
    %v4556 = vld [vmem:[#allocation9 + $0x374] sm:$0xf]
    %v4557 = vld [vmem:[#allocation9 + $0x378] sm:$0xf]
    %v4558 = vld [vmem:[#allocation9 + $0x37c] sm:$0xf]
    %v4591 = vunpack.c.l.b16 %v4527
    %v4592 = vunpack.c.l.b16 %v4528
    %v4593 = vunpack.c.l.b16 %v4529
    %v4594 = vunpack.c.l.b16 %v4530
    %v4595 = vunpack.c.l.b16 %v4531
    %v4596 = vunpack.c.l.b16 %v4532
    %v4597 = vunpack.c.l.b16 %v4533
    %v4598 = vunpack.c.l.b16 %v4534
    %v4599 = vunpack.c.l.b16 %v4535
    %v4600 = vunpack.c.l.b16 %v4536
    %v4601 = vunpack.c.l.b16 %v4537
    %v4602 = vunpack.c.l.b16 %v4538
    %v4603 = vunpack.c.l.b16 %v4539
    %v4604 = vunpack.c.l.b16 %v4540
    %v4605 = vunpack.c.l.b16 %v4541
    %v4606 = vunpack.c.l.b16 %v4542
    %v4607 = vunpack.c.l.b16 %v4543
    %v4608 = vunpack.c.l.b16 %v4544
    %v4609 = vunpack.c.l.b16 %v4545
    %v4610 = vunpack.c.l.b16 %v4546
    %v4611 = vunpack.c.l.b16 %v4547
    %v4612 = vunpack.c.l.b16 %v4548
    %v4613 = vunpack.c.l.b16 %v4549
    %v4614 = vunpack.c.l.b16 %v4550
    %v4615 = vunpack.c.l.b16 %v4551
    %v4616 = vunpack.c.l.b16 %v4552
    %v4617 = vunpack.c.l.b16 %v4553
    %v4618 = vunpack.c.l.b16 %v4554
    %v4619 = vunpack.c.l.b16 %v4555
    %v4620 = vunpack.c.l.b16 %v4556
    %v4621 = vunpack.c.l.b16 %v4557
    %v4622 = vunpack.c.l.b16 %v4558
    %v4623 = vpack.c.b16 %v4592, %v4591
    %v4624 = vpack.c.b16 %v4594, %v4593
    %v4625 = vpack.c.b16 %v4596, %v4595
    %v4626 = vpack.c.b16 %v4598, %v4597
    %v4627 = vpack.c.b16 %v4600, %v4599
    %v4628 = vpack.c.b16 %v4602, %v4601
    %v4629 = vpack.c.b16 %v4604, %v4603
    %v4630 = vpack.c.b16 %v4606, %v4605
    %v4631 = vpack.c.b16 %v4608, %v4607
    %v4632 = vpack.c.b16 %v4610, %v4609
    %v4633 = vpack.c.b16 %v4612, %v4611
    %v4634 = vpack.c.b16 %v4614, %v4613
    %v4635 = vpack.c.b16 %v4616, %v4615
    %v4636 = vpack.c.b16 %v4618, %v4617
    %v4637 = vpack.c.b16 %v4620, %v4619
    %v4638 = vpack.c.b16 %v4622, %v4621
    %4655 = vmatprep.subr.bf16.mxu0 0
    %4656 = vmatpush1.bf16.msra.mxu0 %v4623
    %4657 = vmatprep.subr.bf16.mxu0 0
    %4658 = vmatpush1.bf16.msra.mxu0 %v4624
    %4659 = vmatprep.subr.bf16.mxu0 0
    %4660 = vmatpush1.bf16.msra.mxu0 %v4625
    %4661 = vmatprep.subr.bf16.mxu0 0
    %4662 = vmatpush1.bf16.msra.mxu0 %v4626
    %4663 = vmatprep.subr.bf16.mxu0 0
    %4664 = vmatpush1.bf16.msra.mxu0 %v4627
    %4665 = vmatprep.subr.bf16.mxu0 0
    %4666 = vmatpush1.bf16.msra.mxu0 %v4628
    %4667 = vmatprep.subr.bf16.mxu0 0
    %4668 = vmatpush1.bf16.msra.mxu0 %v4629
    %4669 = vmatprep.subr.bf16.mxu0 0
    %4670 = vmatpush1.bf16.msra.mxu0 %v4630
    %4671 = vmatprep.subr.bf16.mxu0 0
    %4672 = vmatpush1.bf16.msra.mxu0 %v4631
    %4673 = vmatprep.subr.bf16.mxu0 0
    %4674 = vmatpush1.bf16.msra.mxu0 %v4632
    %4675 = vmatprep.subr.bf16.mxu0 0
    %4676 = vmatpush1.bf16.msra.mxu0 %v4633
    %4677 = vmatprep.subr.bf16.mxu0 0
    %4678 = vmatpush1.bf16.msra.mxu0 %v4634
    %4679 = vmatprep.subr.bf16.mxu0 0
    %4680 = vmatpush1.bf16.msra.mxu0 %v4635
    %4681 = vmatprep.subr.bf16.mxu0 0
    %4682 = vmatpush1.bf16.msra.mxu0 %v4636
    %4683 = vmatprep.subr.bf16.mxu0 0
    %4684 = vmatpush1.bf16.msra.mxu0 %v4637
    %4685 = vmatprep.subr.bf16.mxu0 0
    %4686 = vmatpush1.bf16.msra.mxu0 %v4638
    %4687 = vmatprep.mubr.bf16.mxu0 %v4496
    %4688 = vmatmul.mubr.bf16.gmra.mrb[0].mxu0 %v4495
    %v4689 = vpop.f32.mrb[0].mxu0
    %v4690 = vadd.f32 0.0, %v4689
    %v4691 = vpop.f32.mrb[0].mxu0
    %v4692 = vpop.f32.mrb[0].mxu0
    %v4693 = vadd.f32 0.0, %v4692
    %v4694 = vpop.f32.mrb[0].mxu0
    %4695 = vmatprep.mubr.bf16.mxu0 %v4498
    %4696 = vmatmul.mubr.bf16.gmra.mrb[0].mxu0 %v4497
    %v4697 = vpop.f32.mrb[0].mxu0
    %v4698 = vadd.f32 0.0, %v4697
    %v4699 = vpop.f32.mrb[0].mxu0
    %v4700 = vpop.f32.mrb[0].mxu0
    %v4701 = vadd.f32 0.0, %v4700
    %v4702 = vpop.f32.mrb[0].mxu0
    %4703 = vmatprep.mubr.bf16.mxu0 %v4500
    %4704 = vmatmul.mubr.bf16.gmra.mrb[0].mxu0 %v4499
    %v4705 = vpop.f32.mrb[0].mxu0
    %v4706 = vadd.f32 0.0, %v4705
    %v4707 = vpop.f32.mrb[0].mxu0
    %v4708 = vpop.f32.mrb[0].mxu0
    %v4709 = vadd.f32 0.0, %v4708
    %v4710 = vpop.f32.mrb[0].mxu0
    %4711 = vmatprep.mubr.bf16.mxu0 %v4502
    %4712 = vmatmul.mubr.bf16.gmra.mrb[0].mxu0 %v4501
    %v4713 = vpop.f32.mrb[0].mxu0
    %v4714 = vadd.f32 0.0, %v4713
    %v4715 = vpop.f32.mrb[0].mxu0
    %v4716 = vpop.f32.mrb[0].mxu0
    %v4717 = vadd.f32 0.0, %v4716
    %v4718 = vpop.f32.mrb[0].mxu0
    %4719 = vmatprep.mubr.bf16.mxu0 %v4504
    %4720 = vmatmul.mubr.bf16.gmra.mrb[0].mxu0 %v4503
    %v4721 = vpop.f32.mrb[0].mxu0
    %v4722 = vadd.f32 0.0, %v4721
    %v4723 = vpop.f32.mrb[0].mxu0
    %v4724 = vpop.f32.mrb[0].mxu0
    %v4725 = vadd.f32 0.0, %v4724
    %v4726 = vpop.f32.mrb[0].mxu0
    %4727 = vmatprep.mubr.bf16.mxu0 %v4506
    %4728 = vmatmul.mubr.bf16.gmra.mrb[0].mxu0 %v4505
    %v4729 = vpop.f32.mrb[0].mxu0
    %v4730 = vadd.f32 0.0, %v4729
    %v4731 = vpop.f32.mrb[0].mxu0
    %v4732 = vpop.f32.mrb[0].mxu0
    %v4733 = vadd.f32 0.0, %v4732
    %v4734 = vpop.f32.mrb[0].mxu0
    %4735 = vmatprep.mubr.bf16.mxu0 %v4508
    %4736 = vmatmul.mubr.bf16.gmra.mrb[0].mxu0 %v4507
    %v4737 = vpop.f32.mrb[0].mxu0
    %v4738 = vadd.f32 0.0, %v4737
    %v4739 = vpop.f32.mrb[0].mxu0
    %v4740 = vpop.f32.mrb[0].mxu0
    %v4741 = vadd.f32 0.0, %v4740
    %v4742 = vpop.f32.mrb[0].mxu0
    %4743 = vmatprep.mubr.bf16.mxu0 %v4510
    %4744 = vmatmul.mubr.bf16.gmra.mrb[0].mxu0 %v4509
    %v4745 = vpop.f32.mrb[0].mxu0
    %v4746 = vadd.f32 0.0, %v4745
    %v4747 = vpop.f32.mrb[0].mxu0
    %v4748 = vpop.f32.mrb[0].mxu0
    %v4749 = vadd.f32 0.0, %v4748
    %v4750 = vpop.f32.mrb[0].mxu0
    %4751 = vmatprep.mubr.bf16.mxu0 %v4512
    %4752 = vmatmul.mubr.bf16.gmra.mrb[0].mxu0 %v4511
    %v4753 = vpop.f32.mrb[0].mxu0
    %v4754 = vadd.f32 0.0, %v4753
    %v4755 = vpop.f32.mrb[0].mxu0
    %v4756 = vpop.f32.mrb[0].mxu0
    %v4757 = vadd.f32 0.0, %v4756
    %v4758 = vpop.f32.mrb[0].mxu0
    %4759 = vmatprep.mubr.bf16.mxu0 %v4514
    %4760 = vmatmul.mubr.bf16.gmra.mrb[0].mxu0 %v4513
    %v4761 = vpop.f32.mrb[0].mxu0
    %v4762 = vadd.f32 0.0, %v4761
    %v4763 = vpop.f32.mrb[0].mxu0
    %v4764 = vpop.f32.mrb[0].mxu0
    %v4765 = vadd.f32 0.0, %v4764
    %v4766 = vpop.f32.mrb[0].mxu0
    %4767 = vmatprep.mubr.bf16.mxu0 %v4516
    %4768 = vmatmul.mubr.bf16.gmra.mrb[0].mxu0 %v4515
    %v4769 = vpop.f32.mrb[0].mxu0
    %v4770 = vadd.f32 0.0, %v4769
    %v4771 = vpop.f32.mrb[0].mxu0
    %v4772 = vpop.f32.mrb[0].mxu0
    %v4773 = vadd.f32 0.0, %v4772
    %v4774 = vpop.f32.mrb[0].mxu0
    %4775 = vmatprep.mubr.bf16.mxu0 %v4518
    %4776 = vmatmul.mubr.bf16.gmra.mrb[0].mxu0 %v4517
    %v4777 = vpop.f32.mrb[0].mxu0
    %v4778 = vadd.f32 0.0, %v4777
    %v4779 = vpop.f32.mrb[0].mxu0
    %v4780 = vpop.f32.mrb[0].mxu0
    %v4781 = vadd.f32 0.0, %v4780
    %v4782 = vpop.f32.mrb[0].mxu0
    %4783 = vmatprep.mubr.bf16.mxu0 %v4520
    %4784 = vmatmul.mubr.bf16.gmra.mrb[0].mxu0 %v4519
    %v4785 = vpop.f32.mrb[0].mxu0
    %v4786 = vadd.f32 0.0, %v4785
    %v4787 = vpop.f32.mrb[0].mxu0
    %v4788 = vpop.f32.mrb[0].mxu0
    %v4789 = vadd.f32 0.0, %v4788
    %v4790 = vpop.f32.mrb[0].mxu0
    %4791 = vmatprep.mubr.bf16.mxu0 %v4522
    %4792 = vmatmul.mubr.bf16.gmra.mrb[0].mxu0 %v4521
    %v4793 = vpop.f32.mrb[0].mxu0
    %v4794 = vadd.f32 0.0, %v4793
    %v4795 = vpop.f32.mrb[0].mxu0
    %v4796 = vpop.f32.mrb[0].mxu0
    %v4797 = vadd.f32 0.0, %v4796
    %v4798 = vpop.f32.mrb[0].mxu0
    %4799 = vmatprep.mubr.bf16.mxu0 %v4524
    %4800 = vmatmul.mubr.bf16.gmra.mrb[0].mxu0 %v4523
    %v4801 = vpop.f32.mrb[0].mxu0
    %v4802 = vadd.f32 0.0, %v4801
    %v4803 = vpop.f32.mrb[0].mxu0
    %v4804 = vpop.f32.mrb[0].mxu0
    %v4805 = vadd.f32 0.0, %v4804
    %v4806 = vpop.f32.mrb[0].mxu0
    %4807 = vmatprep.mubr.bf16.mxu0 %v4526
    %4808 = vmatmul.mubr.bf16.gmra.mrb[0].mxu0 %v4525
    %v4809 = vpop.f32.mrb[0].mxu0
    %v4810 = vadd.f32 0.0, %v4809
    %v4811 = vpop.f32.mrb[0].mxu0
    %v4812 = vpop.f32.mrb[0].mxu0
    %v4813 = vadd.f32 0.0, %v4812
    %v4814 = vpop.f32.mrb[0].mxu0
    %4815 = vdwg.mxu0
    %v4816 = vadd.f32 %v4462, %v4690
    %v4817 = vadd.f32 %v4463, %v4693
    %v4818 = vadd.f32 %v4464, %v4698
    %v4819 = vadd.f32 %v4465, %v4701
    %v4820 = vadd.f32 %v4466, %v4706
    %v4821 = vadd.f32 %v4467, %v4709
    %v4822 = vadd.f32 %v4468, %v4714
    %v4823 = vadd.f32 %v4469, %v4717
    %v4824 = vadd.f32 %v4470, %v4722
    %v4825 = vadd.f32 %v4471, %v4725
    %v4826 = vadd.f32 %v4472, %v4730
    %v4827 = vadd.f32 %v4473, %v4733
    %v4828 = vadd.f32 %v4474, %v4738
    %v4829 = vadd.f32 %v4475, %v4741
    %v4830 = vadd.f32 %v4476, %v4746
    %v4831 = vadd.f32 %v4477, %v4749
    %v4832 = vadd.f32 %v4478, %v4754
    %v4833 = vadd.f32 %v4479, %v4757
    %v4834 = vadd.f32 %v4480, %v4762
    %v4835 = vadd.f32 %v4481, %v4765
    %v4836 = vadd.f32 %v4482, %v4770
    %v4837 = vadd.f32 %v4483, %v4773
    %v4838 = vadd.f32 %v4484, %v4778
    %v4839 = vadd.f32 %v4485, %v4781
    %v4840 = vadd.f32 %v4486, %v4786
    %v4841 = vadd.f32 %v4487, %v4789
    %v4842 = vadd.f32 %v4488, %v4794
    %v4843 = vadd.f32 %v4489, %v4797
    %v4844 = vadd.f32 %v4490, %v4802
    %v4845 = vadd.f32 %v4491, %v4805
    %v4846 = vadd.f32 %v4492, %v4810
    %v4847 = vadd.f32 %v4493, %v4813
    %s4848 = scalar_lea.vmem [#allocation3], 112
    %v4849 = vld [vmem:[%s4848] sm:$0xff]
    %v4850 = vld [vmem:[%s4848 + $0x8] sm:$0xff]
    %v4851 = vld [vmem:[%s4848 + $0x10] sm:$0xff]
    %v4852 = vld [vmem:[%s4848 + $0x18] sm:$0xff]
    %v4853 = vld [vmem:[%s4848 + $0x20] sm:$0xff]
    %v4854 = vld [vmem:[%s4848 + $0x28] sm:$0xff]
    %v4855 = vld [vmem:[%s4848 + $0x30] sm:$0xff]
    %v4856 = vld [vmem:[%s4848 + $0x38] sm:$0xff]
    %v4857 = vld [vmem:[%s4848 + $0x40] sm:$0xff]
    %v4858 = vld [vmem:[%s4848 + $0x48] sm:$0xff]
    %v4859 = vld [vmem:[%s4848 + $0x50] sm:$0xff]
    %v4860 = vld [vmem:[%s4848 + $0x58] sm:$0xff]
    %v4861 = vld [vmem:[%s4848 + $0x60] sm:$0xff]
    %v4862 = vld [vmem:[%s4848 + $0x68] sm:$0xff]
    %v4863 = vld [vmem:[%s4848 + $0x70] sm:$0xff]
    %v4864 = vld [vmem:[%s4848 + $0x78] sm:$0xff]
    %v4865 = vld [vmem:[%s4848 + $0x80] sm:$0xff]
    %v4866 = vld [vmem:[%s4848 + $0x88] sm:$0xff]
    %v4867 = vld [vmem:[%s4848 + $0x90] sm:$0xff]
    %v4868 = vld [vmem:[%s4848 + $0x98] sm:$0xff]
    %v4869 = vld [vmem:[%s4848 + $0xa0] sm:$0xff]
    %v4870 = vld [vmem:[%s4848 + $0xa8] sm:$0xff]
    %v4871 = vld [vmem:[%s4848 + $0xb0] sm:$0xff]
    %v4872 = vld [vmem:[%s4848 + $0xb8] sm:$0xff]
    %v4873 = vld [vmem:[%s4848 + $0xc0] sm:$0xff]
    %v4874 = vld [vmem:[%s4848 + $0xc8] sm:$0xff]
    %v4875 = vld [vmem:[%s4848 + $0xd0] sm:$0xff]
    %v4876 = vld [vmem:[%s4848 + $0xd8] sm:$0xff]
    %v4877 = vld [vmem:[%s4848 + $0xe0] sm:$0xff]
    %v4878 = vld [vmem:[%s4848 + $0xe8] sm:$0xff]
    %v4879 = vld [vmem:[%s4848 + $0xf0] sm:$0xff]
    %v4880 = vld [vmem:[%s4848 + $0xf8] sm:$0xff]
    %v4881 = vld [vmem:[#allocation9 + $0x380] sm:$0xf]
    %v4882 = vld [vmem:[#allocation9 + $0x384] sm:$0xf]
    %v4883 = vld [vmem:[#allocation9 + $0x388] sm:$0xf]
    %v4884 = vld [vmem:[#allocation9 + $0x38c] sm:$0xf]
    %v4885 = vld [vmem:[#allocation9 + $0x390] sm:$0xf]
    %v4886 = vld [vmem:[#allocation9 + $0x394] sm:$0xf]
    %v4887 = vld [vmem:[#allocation9 + $0x398] sm:$0xf]
    %v4888 = vld [vmem:[#allocation9 + $0x39c] sm:$0xf]
    %v4889 = vld [vmem:[#allocation9 + $0x3a0] sm:$0xf]
    %v4890 = vld [vmem:[#allocation9 + $0x3a4] sm:$0xf]
    %v4891 = vld [vmem:[#allocation9 + $0x3a8] sm:$0xf]
    %v4892 = vld [vmem:[#allocation9 + $0x3ac] sm:$0xf]
    %v4893 = vld [vmem:[#allocation9 + $0x3b0] sm:$0xf]
    %v4894 = vld [vmem:[#allocation9 + $0x3b4] sm:$0xf]
    %v4895 = vld [vmem:[#allocation9 + $0x3b8] sm:$0xf]
    %v4896 = vld [vmem:[#allocation9 + $0x3bc] sm:$0xf]
    %v4897 = vld [vmem:[#allocation9 + $0x3c0] sm:$0xf]
    %v4898 = vld [vmem:[#allocation9 + $0x3c4] sm:$0xf]
    %v4899 = vld [vmem:[#allocation9 + $0x3c8] sm:$0xf]
    %v4900 = vld [vmem:[#allocation9 + $0x3cc] sm:$0xf]
    %v4901 = vld [vmem:[#allocation9 + $0x3d0] sm:$0xf]
    %v4902 = vld [vmem:[#allocation9 + $0x3d4] sm:$0xf]
    %v4903 = vld [vmem:[#allocation9 + $0x3d8] sm:$0xf]
    %v4904 = vld [vmem:[#allocation9 + $0x3dc] sm:$0xf]
    %v4905 = vld [vmem:[#allocation9 + $0x3e0] sm:$0xf]
    %v4906 = vld [vmem:[#allocation9 + $0x3e4] sm:$0xf]
    %v4907 = vld [vmem:[#allocation9 + $0x3e8] sm:$0xf]
    %v4908 = vld [vmem:[#allocation9 + $0x3ec] sm:$0xf]
    %v4909 = vld [vmem:[#allocation9 + $0x3f0] sm:$0xf]
    %v4910 = vld [vmem:[#allocation9 + $0x3f4] sm:$0xf]
    %v4911 = vld [vmem:[#allocation9 + $0x3f8] sm:$0xf]
    %v4912 = vld [vmem:[#allocation9 + $0x3fc] sm:$0xf]
    %v4945 = vunpack.c.l.b16 %v4881
    %v4946 = vunpack.c.l.b16 %v4882
    %v4947 = vunpack.c.l.b16 %v4883
    %v4948 = vunpack.c.l.b16 %v4884
    %v4949 = vunpack.c.l.b16 %v4885
    %v4950 = vunpack.c.l.b16 %v4886
    %v4951 = vunpack.c.l.b16 %v4887
    %v4952 = vunpack.c.l.b16 %v4888
    %v4953 = vunpack.c.l.b16 %v4889
    %v4954 = vunpack.c.l.b16 %v4890
    %v4955 = vunpack.c.l.b16 %v4891
    %v4956 = vunpack.c.l.b16 %v4892
    %v4957 = vunpack.c.l.b16 %v4893
    %v4958 = vunpack.c.l.b16 %v4894
    %v4959 = vunpack.c.l.b16 %v4895
    %v4960 = vunpack.c.l.b16 %v4896
    %v4961 = vunpack.c.l.b16 %v4897
    %v4962 = vunpack.c.l.b16 %v4898
    %v4963 = vunpack.c.l.b16 %v4899
    %v4964 = vunpack.c.l.b16 %v4900
    %v4965 = vunpack.c.l.b16 %v4901
    %v4966 = vunpack.c.l.b16 %v4902
    %v4967 = vunpack.c.l.b16 %v4903
    %v4968 = vunpack.c.l.b16 %v4904
    %v4969 = vunpack.c.l.b16 %v4905
    %v4970 = vunpack.c.l.b16 %v4906
    %v4971 = vunpack.c.l.b16 %v4907
    %v4972 = vunpack.c.l.b16 %v4908
    %v4973 = vunpack.c.l.b16 %v4909
    %v4974 = vunpack.c.l.b16 %v4910
    %v4975 = vunpack.c.l.b16 %v4911
    %v4976 = vunpack.c.l.b16 %v4912
    %v4977 = vpack.c.b16 %v4946, %v4945
    %v4978 = vpack.c.b16 %v4948, %v4947
    %v4979 = vpack.c.b16 %v4950, %v4949
    %v4980 = vpack.c.b16 %v4952, %v4951
    %v4981 = vpack.c.b16 %v4954, %v4953
    %v4982 = vpack.c.b16 %v4956, %v4955
    %v4983 = vpack.c.b16 %v4958, %v4957
    %v4984 = vpack.c.b16 %v4960, %v4959
    %v4985 = vpack.c.b16 %v4962, %v4961
    %v4986 = vpack.c.b16 %v4964, %v4963
    %v4987 = vpack.c.b16 %v4966, %v4965
    %v4988 = vpack.c.b16 %v4968, %v4967
    %v4989 = vpack.c.b16 %v4970, %v4969
    %v4990 = vpack.c.b16 %v4972, %v4971
    %v4991 = vpack.c.b16 %v4974, %v4973
    %v4992 = vpack.c.b16 %v4976, %v4975
    %5009 = vmatprep.subr.bf16.mxu0 0
    %5010 = vmatpush1.bf16.msra.mxu0 %v4977
    %5011 = vmatprep.subr.bf16.mxu0 0
    %5012 = vmatpush1.bf16.msra.mxu0 %v4978
    %5013 = vmatprep.subr.bf16.mxu0 0
    %5014 = vmatpush1.bf16.msra.mxu0 %v4979
    %5015 = vmatprep.subr.bf16.mxu0 0
    %5016 = vmatpush1.bf16.msra.mxu0 %v4980
    %5017 = vmatprep.subr.bf16.mxu0 0
    %5018 = vmatpush1.bf16.msra.mxu0 %v4981
    %5019 = vmatprep.subr.bf16.mxu0 0
    %5020 = vmatpush1.bf16.msra.mxu0 %v4982
    %5021 = vmatprep.subr.bf16.mxu0 0
    %5022 = vmatpush1.bf16.msra.mxu0 %v4983
    %5023 = vmatprep.subr.bf16.mxu0 0
    %5024 = vmatpush1.bf16.msra.mxu0 %v4984
    %5025 = vmatprep.subr.bf16.mxu0 0
    %5026 = vmatpush1.bf16.msra.mxu0 %v4985
    %5027 = vmatprep.subr.bf16.mxu0 0
    %5028 = vmatpush1.bf16.msra.mxu0 %v4986
    %5029 = vmatprep.subr.bf16.mxu0 0
    %5030 = vmatpush1.bf16.msra.mxu0 %v4987
    %5031 = vmatprep.subr.bf16.mxu0 0
    %5032 = vmatpush1.bf16.msra.mxu0 %v4988
    %5033 = vmatprep.subr.bf16.mxu0 0
    %5034 = vmatpush1.bf16.msra.mxu0 %v4989
    %5035 = vmatprep.subr.bf16.mxu0 0
    %5036 = vmatpush1.bf16.msra.mxu0 %v4990
    %5037 = vmatprep.subr.bf16.mxu0 0
    %5038 = vmatpush1.bf16.msra.mxu0 %v4991
    %5039 = vmatprep.subr.bf16.mxu0 0
    %5040 = vmatpush1.bf16.msra.mxu0 %v4992
    %5041 = vmatprep.mubr.bf16.mxu0 %v4850
    %5042 = vmatmul.mubr.bf16.gmra.mrb[0].mxu0 %v4849
    %v5043 = vpop.f32.mrb[0].mxu0
    %v5044 = vadd.f32 0.0, %v5043
    %v5045 = vpop.f32.mrb[0].mxu0
    %v5046 = vpop.f32.mrb[0].mxu0
    %v5047 = vadd.f32 0.0, %v5046
    %v5048 = vpop.f32.mrb[0].mxu0
    %5049 = vmatprep.mubr.bf16.mxu0 %v4852
    %5050 = vmatmul.mubr.bf16.gmra.mrb[0].mxu0 %v4851
    %v5051 = vpop.f32.mrb[0].mxu0
    %v5052 = vadd.f32 0.0, %v5051
    %v5053 = vpop.f32.mrb[0].mxu0
    %v5054 = vpop.f32.mrb[0].mxu0
    %v5055 = vadd.f32 0.0, %v5054
    %v5056 = vpop.f32.mrb[0].mxu0
    %5057 = vmatprep.mubr.bf16.mxu0 %v4854
    %5058 = vmatmul.mubr.bf16.gmra.mrb[0].mxu0 %v4853
    %v5059 = vpop.f32.mrb[0].mxu0
    %v5060 = vadd.f32 0.0, %v5059
    %v5061 = vpop.f32.mrb[0].mxu0
    %v5062 = vpop.f32.mrb[0].mxu0
    %v5063 = vadd.f32 0.0, %v5062
    %v5064 = vpop.f32.mrb[0].mxu0
    %5065 = vmatprep.mubr.bf16.mxu0 %v4856
    %5066 = vmatmul.mubr.bf16.gmra.mrb[0].mxu0 %v4855
    %v5067 = vpop.f32.mrb[0].mxu0
    %v5068 = vadd.f32 0.0, %v5067
    %v5069 = vpop.f32.mrb[0].mxu0
    %v5070 = vpop.f32.mrb[0].mxu0
    %v5071 = vadd.f32 0.0, %v5070
    %v5072 = vpop.f32.mrb[0].mxu0
    %5073 = vmatprep.mubr.bf16.mxu0 %v4858
    %5074 = vmatmul.mubr.bf16.gmra.mrb[0].mxu0 %v4857
    %v5075 = vpop.f32.mrb[0].mxu0
    %v5076 = vadd.f32 0.0, %v5075
    %v5077 = vpop.f32.mrb[0].mxu0
    %v5078 = vpop.f32.mrb[0].mxu0
    %v5079 = vadd.f32 0.0, %v5078
    %v5080 = vpop.f32.mrb[0].mxu0
    %5081 = vmatprep.mubr.bf16.mxu0 %v4860
    %5082 = vmatmul.mubr.bf16.gmra.mrb[0].mxu0 %v4859
    %v5083 = vpop.f32.mrb[0].mxu0
    %v5084 = vadd.f32 0.0, %v5083
    %v5085 = vpop.f32.mrb[0].mxu0
    %v5086 = vpop.f32.mrb[0].mxu0
    %v5087 = vadd.f32 0.0, %v5086
    %v5088 = vpop.f32.mrb[0].mxu0
    %5089 = vmatprep.mubr.bf16.mxu0 %v4862
    %5090 = vmatmul.mubr.bf16.gmra.mrb[0].mxu0 %v4861
    %v5091 = vpop.f32.mrb[0].mxu0
    %v5092 = vadd.f32 0.0, %v5091
    %v5093 = vpop.f32.mrb[0].mxu0
    %v5094 = vpop.f32.mrb[0].mxu0
    %v5095 = vadd.f32 0.0, %v5094
    %v5096 = vpop.f32.mrb[0].mxu0
    %5097 = vmatprep.mubr.bf16.mxu0 %v4864
    %5098 = vmatmul.mubr.bf16.gmra.mrb[0].mxu0 %v4863
    %v5099 = vpop.f32.mrb[0].mxu0
    %v5100 = vadd.f32 0.0, %v5099
    %v5101 = vpop.f32.mrb[0].mxu0
    %v5102 = vpop.f32.mrb[0].mxu0
    %v5103 = vadd.f32 0.0, %v5102
    %v5104 = vpop.f32.mrb[0].mxu0
    %5105 = vmatprep.mubr.bf16.mxu0 %v4866
    %5106 = vmatmul.mubr.bf16.gmra.mrb[0].mxu0 %v4865
    %v5107 = vpop.f32.mrb[0].mxu0
    %v5108 = vadd.f32 0.0, %v5107
    %v5109 = vpop.f32.mrb[0].mxu0
    %v5110 = vpop.f32.mrb[0].mxu0
    %v5111 = vadd.f32 0.0, %v5110
    %v5112 = vpop.f32.mrb[0].mxu0
    %5113 = vmatprep.mubr.bf16.mxu0 %v4868
    %5114 = vmatmul.mubr.bf16.gmra.mrb[0].mxu0 %v4867
    %v5115 = vpop.f32.mrb[0].mxu0
    %v5116 = vadd.f32 0.0, %v5115
    %v5117 = vpop.f32.mrb[0].mxu0
    %v5118 = vpop.f32.mrb[0].mxu0
    %v5119 = vadd.f32 0.0, %v5118
    %v5120 = vpop.f32.mrb[0].mxu0
    %5121 = vmatprep.mubr.bf16.mxu0 %v4870
    %5122 = vmatmul.mubr.bf16.gmra.mrb[0].mxu0 %v4869
    %v5123 = vpop.f32.mrb[0].mxu0
    %v5124 = vadd.f32 0.0, %v5123
    %v5125 = vpop.f32.mrb[0].mxu0
    %v5126 = vpop.f32.mrb[0].mxu0
    %v5127 = vadd.f32 0.0, %v5126
    %v5128 = vpop.f32.mrb[0].mxu0
    %5129 = vmatprep.mubr.bf16.mxu0 %v4872
    %5130 = vmatmul.mubr.bf16.gmra.mrb[0].mxu0 %v4871
    %v5131 = vpop.f32.mrb[0].mxu0
    %v5132 = vadd.f32 0.0, %v5131
    %v5133 = vpop.f32.mrb[0].mxu0
    %v5134 = vpop.f32.mrb[0].mxu0
    %v5135 = vadd.f32 0.0, %v5134
    %v5136 = vpop.f32.mrb[0].mxu0
    %5137 = vmatprep.mubr.bf16.mxu0 %v4874
    %5138 = vmatmul.mubr.bf16.gmra.mrb[0].mxu0 %v4873
    %v5139 = vpop.f32.mrb[0].mxu0
    %v5140 = vadd.f32 0.0, %v5139
    %v5141 = vpop.f32.mrb[0].mxu0
    %v5142 = vpop.f32.mrb[0].mxu0
    %v5143 = vadd.f32 0.0, %v5142
    %v5144 = vpop.f32.mrb[0].mxu0
    %5145 = vmatprep.mubr.bf16.mxu0 %v4876
    %5146 = vmatmul.mubr.bf16.gmra.mrb[0].mxu0 %v4875
    %v5147 = vpop.f32.mrb[0].mxu0
    %v5148 = vadd.f32 0.0, %v5147
    %v5149 = vpop.f32.mrb[0].mxu0
    %v5150 = vpop.f32.mrb[0].mxu0
    %v5151 = vadd.f32 0.0, %v5150
    %v5152 = vpop.f32.mrb[0].mxu0
    %5153 = vmatprep.mubr.bf16.mxu0 %v4878
    %5154 = vmatmul.mubr.bf16.gmra.mrb[0].mxu0 %v4877
    %v5155 = vpop.f32.mrb[0].mxu0
    %v5156 = vadd.f32 0.0, %v5155
    %v5157 = vpop.f32.mrb[0].mxu0
    %v5158 = vpop.f32.mrb[0].mxu0
    %v5159 = vadd.f32 0.0, %v5158
    %v5160 = vpop.f32.mrb[0].mxu0
    %5161 = vmatprep.mubr.bf16.mxu0 %v4880
    %5162 = vmatmul.mubr.bf16.gmra.mrb[0].mxu0 %v4879
    %v5163 = vpop.f32.mrb[0].mxu0
    %v5164 = vadd.f32 0.0, %v5163
    %v5165 = vpop.f32.mrb[0].mxu0
    %v5166 = vpop.f32.mrb[0].mxu0
    %v5167 = vadd.f32 0.0, %v5166
    %v5168 = vpop.f32.mrb[0].mxu0
    %5169 = vdwg.mxu0
    %v5170 = vadd.f32 %v4816, %v5044
    %v5171 = vadd.f32 %v4817, %v5047
    %v5172 = vadd.f32 %v4818, %v5052
    %v5173 = vadd.f32 %v4819, %v5055
    %v5174 = vadd.f32 %v4820, %v5060
    %v5175 = vadd.f32 %v4821, %v5063
    %v5176 = vadd.f32 %v4822, %v5068
    %v5177 = vadd.f32 %v4823, %v5071
    %v5178 = vadd.f32 %v4824, %v5076
    %v5179 = vadd.f32 %v4825, %v5079
    %v5180 = vadd.f32 %v4826, %v5084
    %v5181 = vadd.f32 %v4827, %v5087
    %v5182 = vadd.f32 %v4828, %v5092
    %v5183 = vadd.f32 %v4829, %v5095
    %v5184 = vadd.f32 %v4830, %v5100
    %v5185 = vadd.f32 %v4831, %v5103
    %v5186 = vadd.f32 %v4832, %v5108
    %v5187 = vadd.f32 %v4833, %v5111
    %v5188 = vadd.f32 %v4834, %v5116
    %v5189 = vadd.f32 %v4835, %v5119
    %v5190 = vadd.f32 %v4836, %v5124
    %v5191 = vadd.f32 %v4837, %v5127
    %v5192 = vadd.f32 %v4838, %v5132
    %v5193 = vadd.f32 %v4839, %v5135
    %v5194 = vadd.f32 %v4840, %v5140
    %v5195 = vadd.f32 %v4841, %v5143
    %v5196 = vadd.f32 %v4842, %v5148
    %v5197 = vadd.f32 %v4843, %v5151
    %v5198 = vadd.f32 %v4844, %v5156
    %v5199 = vadd.f32 %v4845, %v5159
    %v5200 = vadd.f32 %v4846, %v5164
    %v5201 = vadd.f32 %v4847, %v5167
    %v5202 = vld [vmem:[%s6] sm:$0x1]
    %v5204 = vlaneseq
    %v5205 = vshrl.u32 %v5204, 7
    %v5206 = vsub.s32 0, %v5205
    %v5207 = vrot.slane %v5202, %v5206
    %v5209 = vadd.f32 %v5170, %v5207
    %v5210 = vadd.f32 %v5171, %v5207
    %v5211 = vadd.f32 %v5172, %v5207
    %v5212 = vadd.f32 %v5173, %v5207
    %v5213 = vadd.f32 %v5174, %v5207
    %v5214 = vadd.f32 %v5175, %v5207
    %v5215 = vadd.f32 %v5176, %v5207
    %v5216 = vadd.f32 %v5177, %v5207
    %v5217 = vadd.f32 %v5178, %v5207
    %v5218 = vadd.f32 %v5179, %v5207
    %v5219 = vadd.f32 %v5180, %v5207
    %v5220 = vadd.f32 %v5181, %v5207
    %v5221 = vadd.f32 %v5182, %v5207
    %v5222 = vadd.f32 %v5183, %v5207
    %v5223 = vadd.f32 %v5184, %v5207
    %v5224 = vadd.f32 %v5185, %v5207
    %v5225 = vadd.f32 %v5186, %v5207
    %v5226 = vadd.f32 %v5187, %v5207
    %v5227 = vadd.f32 %v5188, %v5207
    %v5228 = vadd.f32 %v5189, %v5207
    %v5229 = vadd.f32 %v5190, %v5207
    %v5230 = vadd.f32 %v5191, %v5207
    %v5231 = vadd.f32 %v5192, %v5207
    %v5232 = vadd.f32 %v5193, %v5207
    %v5233 = vadd.f32 %v5194, %v5207
    %v5234 = vadd.f32 %v5195, %v5207
    %v5235 = vadd.f32 %v5196, %v5207
    %v5236 = vadd.f32 %v5197, %v5207
    %v5237 = vadd.f32 %v5198, %v5207
    %v5238 = vadd.f32 %v5199, %v5207
    %v5239 = vadd.f32 %v5200, %v5207
    %v5240 = vadd.f32 %v5201, %v5207
    %v5241 = vmax.f32 %v5209, 0.0
    %v5242 = vmax.f32 %v5210, 0.0
    %v5243 = vmax.f32 %v5211, 0.0
    %v5244 = vmax.f32 %v5212, 0.0
    %v5245 = vmax.f32 %v5213, 0.0
    %v5246 = vmax.f32 %v5214, 0.0
    %v5247 = vmax.f32 %v5215, 0.0
    %v5248 = vmax.f32 %v5216, 0.0
    %v5249 = vmax.f32 %v5217, 0.0
    %v5250 = vmax.f32 %v5218, 0.0
    %v5251 = vmax.f32 %v5219, 0.0
    %v5252 = vmax.f32 %v5220, 0.0
    %v5253 = vmax.f32 %v5221, 0.0
    %v5254 = vmax.f32 %v5222, 0.0
    %v5255 = vmax.f32 %v5223, 0.0
    %v5256 = vmax.f32 %v5224, 0.0
    %v5257 = vmax.f32 %v5225, 0.0
    %v5258 = vmax.f32 %v5226, 0.0
    %v5259 = vmax.f32 %v5227, 0.0
    %v5260 = vmax.f32 %v5228, 0.0
    %v5261 = vmax.f32 %v5229, 0.0
    %v5262 = vmax.f32 %v5230, 0.0
    %v5263 = vmax.f32 %v5231, 0.0
    %v5264 = vmax.f32 %v5232, 0.0
    %v5265 = vmax.f32 %v5233, 0.0
    %v5266 = vmax.f32 %v5234, 0.0
    %v5267 = vmax.f32 %v5235, 0.0
    %v5268 = vmax.f32 %v5236, 0.0
    %v5269 = vmax.f32 %v5237, 0.0
    %v5270 = vmax.f32 %v5238, 0.0
    %v5271 = vmax.f32 %v5239, 0.0
    %v5272 = vmax.f32 %v5240, 0.0
    %v5273 = vadd.f32 %v5241, %v5243
    %v5274 = vadd.f32 %v5273, %v5245
    %v5275 = vadd.f32 %v5274, %v5247
    %v5276 = vadd.f32 %v5275, %v5249
    %v5277 = vadd.f32 %v5276, %v5251
    %v5278 = vadd.f32 %v5277, %v5253
    %v5279 = vadd.f32 %v5278, %v5255
    %v5280 = vadd.f32 %v5279, %v5257
    %v5281 = vadd.f32 %v5280, %v5259
    %v5282 = vadd.f32 %v5281, %v5261
    %v5283 = vadd.f32 %v5282, %v5263
    %v5284 = vadd.f32 %v5283, %v5265
    %v5285 = vadd.f32 %v5284, %v5267
    %v5286 = vadd.f32 %v5285, %v5269
    %v5287 = vadd.f32 %v5286, %v5271
    %v5288 = vadd.f32 %v5242, %v5244
    %v5289 = vadd.f32 %v5288, %v5246
    %v5290 = vadd.f32 %v5289, %v5248
    %v5291 = vadd.f32 %v5290, %v5250
    %v5292 = vadd.f32 %v5291, %v5252
    %v5293 = vadd.f32 %v5292, %v5254
    %v5294 = vadd.f32 %v5293, %v5256
    %v5295 = vadd.f32 %v5294, %v5258
    %v5296 = vadd.f32 %v5295, %v5260
    %v5297 = vadd.f32 %v5296, %v5262
    %v5298 = vadd.f32 %v5297, %v5264
    %v5299 = vadd.f32 %v5298, %v5266
    %v5300 = vadd.f32 %v5299, %v5268
    %v5301 = vadd.f32 %v5300, %v5270
    %v5302 = vadd.f32 %v5301, %v5272
    %v5303 = vpack.c.bf16 %v5302, %v5287
    %v5304 = vld [vmem:[%s7] sm:$0xf]
    %v5305 = vld [vmem:[%s7 + $0x4] sm:$0xf]
    %v5306 = vld [vmem:[%s7 + $0x8] sm:$0xf]
    %v5307 = vld [vmem:[%s7 + $0xc] sm:$0xf]
    %v5308 = vld [vmem:[%s7 + $0x10] sm:$0xf]
    %v5309 = vld [vmem:[%s7 + $0x14] sm:$0xf]
    %v5310 = vld [vmem:[%s7 + $0x18] sm:$0xf]
    %v5311 = vld [vmem:[%s7 + $0x1c] sm:$0xf]
    %v5312 = vld [vmem:[%s7 + $0x20] sm:$0xf]
    %v5313 = vld [vmem:[%s7 + $0x24] sm:$0xf]
    %v5314 = vld [vmem:[%s7 + $0x28] sm:$0xf]
    %v5315 = vld [vmem:[%s7 + $0x2c] sm:$0xf]
    %v5316 = vld [vmem:[%s7 + $0x30] sm:$0xf]
    %v5317 = vld [vmem:[%s7 + $0x34] sm:$0xf]
    %v5318 = vld [vmem:[%s7 + $0x38] sm:$0xf]
    %v5319 = vld [vmem:[%s7 + $0x3c] sm:$0xf]
    %v5320 = vld [vmem:[%s8] sm:$0x1]
    %v5322 = vlaneseq
    %v5323 = vshrl.u32 %v5322, 7
    %v5324 = vsub.s32 0, %v5323
    %v5325 = vrot.slane %v5320, %v5324
    %v5343 = vunpack.c.l.b16 %v5304
    %v5344 = vunpack.c.l.b16 %v5305
    %v5345 = vunpack.c.l.b16 %v5306
    %v5346 = vunpack.c.l.b16 %v5307
    %v5347 = vunpack.c.l.b16 %v5308
    %v5348 = vunpack.c.l.b16 %v5309
    %v5349 = vunpack.c.l.b16 %v5310
    %v5350 = vunpack.c.l.b16 %v5311
    %v5351 = vunpack.c.l.b16 %v5312
    %v5352 = vunpack.c.l.b16 %v5313
    %v5353 = vunpack.c.l.b16 %v5314
    %v5354 = vunpack.c.l.b16 %v5315
    %v5355 = vunpack.c.l.b16 %v5316
    %v5356 = vunpack.c.l.b16 %v5317
    %v5357 = vunpack.c.l.b16 %v5318
    %v5358 = vunpack.c.l.b16 %v5319
    %v5359 = vpack.c.b16 %v5344, %v5343
    %v5360 = vpack.c.b16 %v5346, %v5345
    %v5361 = vpack.c.b16 %v5348, %v5347
    %v5362 = vpack.c.b16 %v5350, %v5349
    %v5363 = vpack.c.b16 %v5352, %v5351
    %v5364 = vpack.c.b16 %v5354, %v5353
    %v5365 = vpack.c.b16 %v5356, %v5355
    %v5366 = vpack.c.b16 %v5358, %v5357
    %5375 = vmatprep.subr.bf16.mxu0 0
    %5376 = vmatpush1.bf16.msra.mxu0 %v5359
    %5377 = vmatprep.subr.bf16.mxu0 0
    %5378 = vmatpush1.bf16.msra.mxu0 %v5360
    %5379 = vmatprep.subr.bf16.mxu0 0
    %5380 = vmatpush1.bf16.msra.mxu0 %v5361
    %5381 = vmatprep.subr.bf16.mxu0 0
    %5382 = vmatpush1.bf16.msra.mxu0 %v5362
    %5383 = vmatprep.subr.bf16.mxu0 0
    %5384 = vmatpush1.bf16.msra.mxu0 %v5363
    %5385 = vmatprep.subr.bf16.mxu0 0
    %5386 = vmatpush1.bf16.msra.mxu0 %v5364
    %5387 = vmatprep.subr.bf16.mxu0 0
    %5388 = vmatpush1.bf16.msra.mxu0 %v5365
    %5389 = vmatprep.subr.bf16.mxu0 0
    %5390 = vmatpush1.bf16.msra.mxu0 %v5366
    %5391 = vmatprep.subr.bf16.mxu0 0
    %5392 = vmatpush1.bf16.msra.mxu0 0
    %5393 = vmatprep.subr.bf16.mxu0 0
    %5394 = vmatpush1.bf16.msra.mxu0 0
    %5395 = vmatprep.subr.bf16.mxu0 0
    %5396 = vmatpush1.bf16.msra.mxu0 0
    %5397 = vmatprep.subr.bf16.mxu0 0
    %5398 = vmatpush1.bf16.msra.mxu0 0
    %5399 = vmatprep.subr.bf16.mxu0 0
    %5400 = vmatpush1.bf16.msra.mxu0 0
    %5401 = vmatprep.subr.bf16.mxu0 0
    %5402 = vmatpush1.bf16.msra.mxu0 0
    %5403 = vmatprep.subr.bf16.mxu0 0
    %5404 = vmatpush1.bf16.msra.mxu0 0
    %5405 = vmatprep.subr.bf16.mxu0 0
    %5406 = vmatpush1.bf16.msra.mxu0 0
    %5407 = vmatprep.mubr.bf16.mxu0 0
    %5408 = vmatmul.mubr.bf16.gmra.mrb[0].mxu0 %v5303
    %v5409 = vpop.f32.mrb[0].mxu0
    %v5410 = vadd.f32 %v5325, %v5409
    %v5411 = vpop.f32.mrb[0].mxu0
    %v5412 = vpop.f32.mrb[0].mxu0
    %v5413 = vadd.f32 %v5325, %v5412
    %v5414 = vpop.f32.mrb[0].mxu0
    %5415 = vdwg.mxu0
    %v5416 = vmax.f32 %v5410, 0.0
    %v5417 = vmax.f32 %v5413, 0.0
    %v5418 = vpack.c.bf16 %v5417, %v5416
    %v5419 = vld [vmem:[%s9] sm:$0xf]
    %v5420 = vld [vmem:[%s9 + $0x4] sm:$0xf]
    %v5421 = vld [vmem:[%s9 + $0x8] sm:$0xf]
    %v5422 = vld [vmem:[%s9 + $0xc] sm:$0xf]
    %v5423 = vld [vmem:[%s9 + $0x10] sm:$0xf]
    %v5424 = vld [vmem:[%s9 + $0x14] sm:$0xf]
    %v5425 = vld [vmem:[%s9 + $0x18] sm:$0xf]
    %v5426 = vld [vmem:[%s9 + $0x1c] sm:$0xf]
    %v5427 = vld [vmem:[%s10] sm:$0x1]
    %v5429 = vlaneseq
    %v5430 = vshrl.u32 %v5429, 7
    %v5431 = vsub.s32 0, %v5430
    %v5432 = vrot.slane %v5427, %v5431
    %v5442 = vunpack.c.l.b16 %v5419
    %v5443 = vunpack.c.l.b16 %v5420
    %v5444 = vunpack.c.l.b16 %v5421
    %v5445 = vunpack.c.l.b16 %v5422
    %v5446 = vunpack.c.l.b16 %v5423
    %v5447 = vunpack.c.l.b16 %v5424
    %v5448 = vunpack.c.l.b16 %v5425
    %v5449 = vunpack.c.l.b16 %v5426
    %v5450 = vpack.c.b16 %v5443, %v5442
    %v5451 = vpack.c.b16 %v5445, %v5444
    %v5452 = vpack.c.b16 %v5447, %v5446
    %v5453 = vpack.c.b16 %v5449, %v5448
    %vm5458 = vcmask 523264
    %v5460 = vsel %vm5458, %v5418, 0
    %5462 = vmatprep.subr.bf16.mxu0 0
    %5463 = vmatpush1.bf16.msra.mxu0 %v5450
    %5464 = vmatprep.subr.bf16.mxu0 0
    %5465 = vmatpush1.bf16.msra.mxu0 %v5451
    %5466 = vmatprep.subr.bf16.mxu0 0
    %5467 = vmatpush1.bf16.msra.mxu0 %v5452
    %5468 = vmatprep.subr.bf16.mxu0 0
    %5469 = vmatpush1.bf16.msra.mxu0 %v5453
    %5470 = vmatprep.subr.bf16.mxu0 0
    %5471 = vmatpush1.bf16.msra.mxu0 0
    %5472 = vmatprep.subr.bf16.mxu0 0
    %5473 = vmatpush1.bf16.msra.mxu0 0
    %5474 = vmatprep.subr.bf16.mxu0 0
    %5475 = vmatpush1.bf16.msra.mxu0 0
    %5476 = vmatprep.subr.bf16.mxu0 0
    %5477 = vmatpush1.bf16.msra.mxu0 0
    %5478 = vmatprep.subr.bf16.mxu0 0
    %5479 = vmatpush1.bf16.msra.mxu0 0
    %5480 = vmatprep.subr.bf16.mxu0 0
    %5481 = vmatpush1.bf16.msra.mxu0 0
    %5482 = vmatprep.subr.bf16.mxu0 0
    %5483 = vmatpush1.bf16.msra.mxu0 0
    %5484 = vmatprep.subr.bf16.mxu0 0
    %5485 = vmatpush1.bf16.msra.mxu0 0
    %5486 = vmatprep.subr.bf16.mxu0 0
    %5487 = vmatpush1.bf16.msra.mxu0 0
    %5488 = vmatprep.subr.bf16.mxu0 0
    %5489 = vmatpush1.bf16.msra.mxu0 0
    %5490 = vmatprep.subr.bf16.mxu0 0
    %5491 = vmatpush1.bf16.msra.mxu0 0
    %5492 = vmatprep.subr.bf16.mxu0 0
    %5493 = vmatpush1.bf16.msra.mxu0 0
    %5494 = vmatprep.mubr.bf16.mxu0 0
    %5495 = vmatmul.mubr.bf16.gmra.mrb[0].mxu0 %v5460
    %v5496 = vpop.f32.mrb[0].mxu0
    %v5497 = vadd.f32 %v5432, %v5496
    %v5498 = vpop.f32.mrb[0].mxu0
    %v5499 = vpop.f32.mrb[0].mxu0
    %v5500 = vadd.f32 %v5432, %v5499
    %v5501 = vpop.f32.mrb[0].mxu0
    %5502 = vdwg.mxu0
    %5503 = vst [vmem:[#allocation10] sm:$0xff] %v5497
    %5504 = vst [vmem:[#allocation10 + $0x8] sm:$0xff] %v5500
    // Predicated region
    $region58: #{tpu_custom_call.1} parent=1 // pred_check
      _
    $region59: #{tpu_custom_call.1} parent=1 // pred_check_branch
      %5506 = sbr.rel (0) target = $region61
    $region60: #{tpu_custom_call.1} parent=1 // pred_region
      %s5508 = ssub.s32 256, 256
      %5509 = vsyncadd [#allocation6], %s5508
      %s5510 = sshll.u32 [#allocation10], 4
      %s5511 = int_to_ptr.vmem [resolvable:$true] %s5510
      %5516 = dma.vmem_to_hbm [thread:$0]  %s5511, 256, %s11, [#allocation6], 128, 128, 8
    $region61: #{tpu_custom_call.1} parent=1 // pred_fallthru
      _
    // Predicated region
    $region62: #{tpu_custom_call.1} parent=1 // pred_check
      _
    $region63: #{tpu_custom_call.1} parent=1 // pred_check_branch
      %5518 = sbr.rel (0) target = $region65
    $region64: #{tpu_custom_call.1} parent=1 // pred_region
      %5519 = dma.done [#allocation6], 256
    $region65: #{tpu_custom_call.1} parent=1 // pred_fallthru
      _
    %5520 = vsyncpa [#allocation5], 1
    %5521 = vsyncpa [#allocation8], 1
    %5522 = vsyncpa [#allocation6], 1

</llo_original>
